<compile_context>
chip_gen: v7x
topology: tpu7x:2x2x1
jax: 0.10.0
libtpu: 0.0.40
codegen_flags: <defaults>
</compile_context>

<pallas_src>
import math

import jax
import jax.numpy as jnp
from jax import lax
from jax.experimental import pallas as pl
from jax.experimental.pallas import tpu as pltpu


def _layernorm(x, gamma, beta, eps=1e-5):
    # torch.nn.LayerNorm semantics: biased variance over the last dim, eps=1e-5.
    mu = jnp.mean(x, axis=-1, keepdims=True)
    var = jnp.mean((x - mu) ** 2, axis=-1, keepdims=True)
    return (x - mu) * lax.rsqrt(var + eps) * gamma + beta


def make_encoder_kernel(n_heads):
    H = n_heads

    def kernel(xq_ref, xkv_ref,
               wq_ref, bq_ref, wkv_ref, bkv_ref, wo_ref, bo_ref,
               g1_ref, be1_ref, w1_ref, b1_ref, w2_ref, b2_ref,
               g2_ref, be2_ref,
               out_ref, attn_ref,
               k_scr, v_scr):
        qi = pl.program_id(1)
        D = xq_ref.shape[-1]
        dk = D // H
        scale = 1.0 / math.sqrt(dk)

        # ---- K/V for the whole sequence, once per batch element -------------------
        # Fused (L, D) x (D, 2D) projection (bf16 MXU, f32 accumulate), written
        # head-major into bf16 scratch so later q-tiles do no K/V work at all.
        @pl.when(qi == 0)
        def _():
            xf = xkv_ref[0].astype(jnp.bfloat16)                     # (L, D)
            kv = jnp.dot(xf, wkv_ref[...],
                         preferred_element_type=jnp.float32) + bkv_ref[...]
            kvb = kv.astype(jnp.bfloat16)                            # single cast
            for h in range(H):                                       # static lane slices
                k_scr[h] = kvb[:, h * dk:(h + 1) * dk]
                v_scr[h] = kvb[:, D + h * dk:D + (h + 1) * dk]

        # ---- Q for this query tile; softmax scale folded into q -------------------
        xt = xq_ref[0]                                               # (TQ, D) f32
        xb = xt.astype(jnp.bfloat16)                                 # cast x once
        q = (jnp.dot(xb, wq_ref[...], preferred_element_type=jnp.float32)
             + bq_ref[...]) * scale
        qb = q.astype(jnp.bfloat16)
        qh = jnp.stack([qb[:, h * dk:(h + 1) * dk] for h in range(H)], axis=0)  # (H,TQ,dk)

        # ---- scores + exact softmax (f32) ------------------------------------------
        s = jnp.einsum('htd,hmd->htm', qh, k_scr[...],
                       preferred_element_type=jnp.float32)           # (H, TQ, L)
        s = s - jnp.max(s, axis=-1, keepdims=True)
        e = jnp.exp(s)
        inv = 1.0 / jnp.sum(e, axis=-1, keepdims=True)               # exact (torch parity)
        p = e * inv
        pb = p.astype(jnp.bfloat16)                                  # cast p once
        attn_ref[0] = pb                                             # bf16 writeback

        # ---- context + per-head output projection (head-major, no relayout) --------
        ctx = jnp.einsum('htm,hmd->htd', pb, v_scr[...],
                         preferred_element_type=jnp.float32)         # (H, TQ, dk)
        oh = jnp.einsum('htd,hde->hte', ctx.astype(jnp.bfloat16), wo_ref[...],
                        preferred_element_type=jnp.float32)          # (H, TQ, D)
        new_x = jnp.sum(oh, axis=0) + bo_ref[...]                    # (TQ, D)

        # ---- residual + norm1 (dropout = identity in eval) --------------------------
        x1 = xt + new_x
        y = _layernorm(x1, g1_ref[...], be1_ref[...])

        # ---- position-wise FFN: conv1(k=1) -> relu -> conv2(k=1) --------------------
        h1 = jnp.dot(y.astype(jnp.bfloat16), w1_ref[...],
                     preferred_element_type=jnp.float32) + b1_ref[...]
        h1 = jnp.maximum(h1, 0.0).astype(jnp.bfloat16)               # bf16 intermediate
        y2 = jnp.dot(h1, w2_ref[...],
                     preferred_element_type=jnp.float32) + b2_ref[...]

        # ---- residual + norm2 --------------------------------------------------------
        out_ref[0] = _layernorm(x1 + y2, g2_ref[...], be2_ref[...])

    return kernel


def encoder_layer_forward(x, params, n_heads, tq=None,
                          vmem_limit_bytes=48 * 1024 * 1024):
    B, L, D = x.shape
    H = n_heads
    dk = D // H
    dff = params["w1"].shape[1]

    if tq is None:
        # TODO(synk): per-generation tuning -- TQ=128 fits v7x's 64 MiB VMEM at
        # production sizes; 256-512 (with a larger vmem limit) pays off on v5e/v6e.
        tq = min(L, 128)
    nq = pl.cdiv(L, tq)

    bf16 = lambda a: jnp.asarray(a, jnp.bfloat16)
    f32 = lambda a: jnp.asarray(a, jnp.float32)

    # Host-side weight prep: fuse the K/V projections, head-major output projection.
    wkv = jnp.concatenate([f32(params["wk"]), f32(params["wv"])], axis=1)   # (D, 2D)
    bkv = jnp.concatenate([f32(params["bk"]), f32(params["bv"])], axis=1)   # (1, 2D)
    wo_hm = f32(params["wo"]).reshape(H, dk, D)                             # (H, dk, D)

    args = (
        f32(x), f32(x),
        bf16(params["wq"]), f32(params["bq"]),
        bf16(wkv), f32(bkv),
        bf16(wo_hm), f32(params["bo"]),
        f32(params["g1"]), f32(params["be1"]),
        bf16(params["w1"]), f32(params["b1"]),
        bf16(params["w2"]), f32(params["b2"]),
        f32(params["g2"]), f32(params["be2"]),
    )

    def build(resident_weights):
        if resident_weights:
            # Whole array resident in VMEM: a single copy, no per-grid-step
            # double buffering of the grid-invariant weights/biases.
            def wspec(shape):
                del shape
                return pl.BlockSpec(memory_space=pltpu.MemorySpace.VMEM)
        else:
            def wspec(shape):
                nd = len(shape)
                return pl.BlockSpec(shape, lambda b, qi, _nd=nd: (0,) * _nd)

        in_specs = [
            pl.BlockSpec((1, tq, D), lambda b, qi: (b, qi, 0)),   # x: query tile
            # x again, full sequence for K/V; constant in qi -> DMAed once per b.
            pl.BlockSpec((1, L, D), lambda b, qi: (b, 0, 0)),
            wspec((D, D)), wspec((1, D)),            # Wq (bf16), bq
            wspec((D, 2 * D)), wspec((1, 2 * D)),    # fused Wk|Wv (bf16), bk|bv
            wspec((H, dk, D)), wspec((1, D)),        # Wo head-major (bf16), bo
            wspec((1, D)), wspec((1, D)),            # norm1 gamma, beta
            wspec((D, dff)), wspec((1, dff)),        # conv1 W (bf16), b
            wspec((dff, D)), wspec((1, D)),          # conv2 W (bf16), b
            wspec((1, D)), wspec((1, D)),            # norm2 gamma, beta
        ]
        out_specs = [
            pl.BlockSpec((1, tq, D), lambda b, qi: (b, qi, 0)),
            pl.BlockSpec((1, H, tq, L), lambda b, qi: (b, 0, qi, 0)),
        ]
        out_shape = [
            jax.ShapeDtypeStruct((B, L, D), jnp.float32),
            jax.ShapeDtypeStruct((B, H, L, L), jnp.bfloat16),     # bf16 attention probs
        ]
        return pl.pallas_call(
            make_encoder_kernel(n_heads),
            out_shape=out_shape,
            grid_spec=pltpu.PrefetchScalarGridSpec(
                num_scalar_prefetch=0,
                grid=(B, nq),
                in_specs=in_specs,
                out_specs=out_specs,
                scratch_shapes=[
                    pltpu.VMEM((H, L, dk), jnp.bfloat16),   # K, head-major, per-batch
                    pltpu.VMEM((H, L, dk), jnp.bfloat16),   # V, head-major, per-batch
                ],
            ),
            compiler_params=pltpu.CompilerParams(
                # Batch across TensorCores; q-tile axis must stay sequential so the
                # K/V scratch written at qi == 0 is valid for the later tiles of b.
                dimension_semantics=("parallel", "arbitrary"),
                vmem_limit_bytes=vmem_limit_bytes,
            ),
        )

    try:
        return build(resident_weights=True)(*args)
    except Exception:
        # Fallback for Pallas versions without whole-array VMEM operands:
        # pipelined (double-buffered) full-shape weight blocks.
        return build(resident_weights=False)(*args)


def reference_forward(x, params, n_heads):
    """Pure-JAX f32 reference matching the PyTorch EncoderLayer in eval mode."""
    hi = lax.Precision.HIGHEST
    B, L, D = x.shape
    H = n_heads
    dk = D // H
    scale = 1.0 / math.sqrt(dk)

    q = (jnp.dot(x, params["wq"], precision=hi) + params["bq"]).reshape(B, L, H, dk)
    k = (jnp.dot(x, params["wk"], precision=hi) + params["bk"]).reshape(B, L, H, dk)
    v = (jnp.dot(x, params["wv"], precision=hi) + params["bv"]).reshape(B, L, H, dk)
    s = jnp.einsum('blhd,bmhd->bhlm', q, k, precision=hi) * scale
    p = jax.nn.softmax(s, axis=-1)
    ctx = jnp.einsum('bhlm,bmhd->blhd', p, v, precision=hi).reshape(B, L, D)
    new_x = jnp.dot(ctx, params["wo"], precision=hi) + params["bo"]
    x1 = x + new_x
    y = _layernorm(x1, params["g1"], params["be1"])
    h1 = jax.nn.relu(jnp.dot(y, params["w1"], precision=hi) + params["b1"])
    y2 = jnp.dot(h1, params["w2"], precision=hi) + params["b2"]
    out = _layernorm(x1 + y2, params["g2"], params["be2"])
    return out, p


if __name__ == "__main__":
    B, L, D, H = 2, 8, 32, 4
    DFF = 4 * D   # d_ff default = 4 * d_model

    key = jax.random.PRNGKey(0)
    keys = jax.random.split(key, 13)

    def w(k, shape):
        return (0.02 * jax.random.normal(k, shape)).astype(jnp.float32)

    params = dict(
        wq=w(keys[0], (D, D)),   bq=w(keys[1], (1, D)),
        wk=w(keys[2], (D, D)),   bk=w(keys[3], (1, D)),
        wv=w(keys[4], (D, D)),   bv=w(keys[5], (1, D)),
        wo=w(keys[6], (D, D)),   bo=w(keys[7], (1, D)),
        g1=jnp.ones((1, D), jnp.float32), be1=jnp.zeros((1, D), jnp.float32),
        w1=w(keys[8], (D, DFF)), b1=w(keys[9], (1, DFF)),
        w2=w(keys[10], (DFF, D)), b2=w(keys[11], (1, D)),
        g2=jnp.ones((1, D), jnp.float32), be2=jnp.zeros((1, D), jnp.float32),
    )

    x = jax.random.normal(keys[12], (B, L, D), dtype=jnp.float32)

    y, attn = encoder_layer_forward(x, params, n_heads=H)
    y, attn = jax.block_until_ready((y, attn))

    assert y.shape == (B, L, D), y.shape
    assert attn.shape == (B, H, L, L), attn.shape
    assert attn.dtype == jnp.bfloat16, attn.dtype
    assert bool(jnp.all(jnp.isfinite(y)))

    attn_f32 = attn.astype(jnp.float32)
    assert bool(jnp.all(jnp.isfinite(attn_f32)))
    # exact softmax rows sum to 1 (bf16 storage -> loose tolerance)
    assert bool(jnp.allclose(jnp.sum(attn_f32, axis=-1), 1.0, atol=1e-2))

    # correctness vs. pure-JAX f32 reference (bf16 MXU operands -> ~1e-3 level errors)
    y_ref, p_ref = reference_forward(x, params, H)
    assert bool(jnp.allclose(y, y_ref, atol=1e-2)), float(jnp.max(jnp.abs(y - y_ref)))
    assert bool(jnp.allclose(attn_f32, p_ref, atol=1e-2))

    print("KERNEL_OK")
</pallas_src>

<mosaic_0001>
module attributes {stable_mosaic.version = 11 : i64} {
  func.func @kernel(%arg0: i32, %arg1: i32, %arg2: memref<1x8x32xf32, #tpu.memory_space<vmem>>, %arg3: memref<1x8x32xf32, #tpu.memory_space<vmem>>, %arg4: memref<32x32xbf16, #tpu.memory_space<vmem>>, %arg5: memref<1x32xf32, #tpu.memory_space<vmem>>, %arg6: memref<32x64xbf16, #tpu.memory_space<vmem>>, %arg7: memref<1x64xf32, #tpu.memory_space<vmem>>, %arg8: memref<4x8x32xbf16, #tpu.memory_space<vmem>>, %arg9: memref<1x32xf32, #tpu.memory_space<vmem>>, %arg10: memref<1x32xf32, #tpu.memory_space<vmem>>, %arg11: memref<1x32xf32, #tpu.memory_space<vmem>>, %arg12: memref<32x128xbf16, #tpu.memory_space<vmem>>, %arg13: memref<1x128xf32, #tpu.memory_space<vmem>>, %arg14: memref<128x32xbf16, #tpu.memory_space<vmem>>, %arg15: memref<1x32xf32, #tpu.memory_space<vmem>>, %arg16: memref<1x32xf32, #tpu.memory_space<vmem>>, %arg17: memref<1x32xf32, #tpu.memory_space<vmem>>, %arg18: memref<1x8x32xf32, #tpu.memory_space<vmem>>, %arg19: memref<1x4x8x8xbf16, #tpu.memory_space<vmem>>, %arg20: memref<4x8x8xbf16, #tpu.memory_space<vmem>>, %arg21: memref<4x8x8xbf16, #tpu.memory_space<vmem>>) attributes {dimension_semantics = [#tpu.dimension_semantics<parallel>, #tpu.dimension_semantics<arbitrary>], iteration_bounds = array<i64: 2, 1>, scalar_prefetch = 0 : i64, scratch_operands = 2 : i64, tpu.core_type = #tpu.core_type<tc>, window_params = [{transform_indices = @transform_0, window_bounds = array<i64: 1, 8, 32>}, {transform_indices = @transform_1, window_bounds = array<i64: 1, 8, 32>}, {pipeline_mode = #tpu.pipeline_mode<synchronous>, transform_indices = @transform_2, window_bounds = array<i64: 32, 32>}, {pipeline_mode = #tpu.pipeline_mode<synchronous>, transform_indices = @transform_3, window_bounds = array<i64: 1, 32>}, {pipeline_mode = #tpu.pipeline_mode<synchronous>, transform_indices = @transform_4, window_bounds = array<i64: 32, 64>}, {pipeline_mode = #tpu.pipeline_mode<synchronous>, transform_indices = @transform_5, window_bounds = array<i64: 1, 64>}, {pipeline_mode = #tpu.pipeline_mode<synchronous>, transform_indices = @transform_6, window_bounds = array<i64: 4, 8, 32>}, {pipeline_mode = #tpu.pipeline_mode<synchronous>, transform_indices = @transform_7, window_bounds = array<i64: 1, 32>}, {pipeline_mode = #tpu.pipeline_mode<synchronous>, transform_indices = @transform_8, window_bounds = array<i64: 1, 32>}, {pipeline_mode = #tpu.pipeline_mode<synchronous>, transform_indices = @transform_9, window_bounds = array<i64: 1, 32>}, {pipeline_mode = #tpu.pipeline_mode<synchronous>, transform_indices = @transform_10, window_bounds = array<i64: 32, 128>}, {pipeline_mode = #tpu.pipeline_mode<synchronous>, transform_indices = @transform_11, window_bounds = array<i64: 1, 128>}, {pipeline_mode = #tpu.pipeline_mode<synchronous>, transform_indices = @transform_12, window_bounds = array<i64: 128, 32>}, {pipeline_mode = #tpu.pipeline_mode<synchronous>, transform_indices = @transform_13, window_bounds = array<i64: 1, 32>}, {pipeline_mode = #tpu.pipeline_mode<synchronous>, transform_indices = @transform_14, window_bounds = array<i64: 1, 32>}, {pipeline_mode = #tpu.pipeline_mode<synchronous>, transform_indices = @transform_15, window_bounds = array<i64: 1, 32>}, {transform_indices = @transform_16, window_bounds = array<i64: 1, 8, 32>}, {transform_indices = @transform_17, window_bounds = array<i64: 1, 4, 8, 8>}]} {
    %c0_i32 = arith.constant 0 : i32
    %0 = arith.cmpi eq, %arg1, %c0_i32 : i32
    %1 = arith.extui %0 : i1 to i32
    %c0_i32_0 = arith.constant 0 : i32
    %2 = arith.cmpi ne, %1, %c0_i32_0 : i32
    scf.if %2 {
      %c0_62 = arith.constant 0 : index
      %c0_63 = arith.constant 0 : index
      %c0_64 = arith.constant 0 : index
      %116 = vector.load %arg3[%c0_62, %c0_63, %c0_64] : memref<1x8x32xf32, #tpu.memory_space<vmem>>, vector<1x8x32xf32>
      %117 = vector.shape_cast %116 : vector<1x8x32xf32> to vector<8x32xf32>
      %118 = arith.truncf %117 : vector<8x32xf32> to vector<8x32xbf16>
      %c0_65 = arith.constant 0 : index
      %c0_66 = arith.constant 0 : index
      %119 = vector.load %arg6[%c0_65, %c0_66] : memref<32x64xbf16, #tpu.memory_space<vmem>>, vector<32x64xbf16>
      %cst_67 = arith.constant dense<0.000000e+00> : vector<8x64xf32>
      %120 = tpu.matmul %118, %119, %cst_67 {dimension_numbers = #tpu.dot_dimension_numbers<[1], [0], [0], [1], [0, 0, 1, 1], [], []>} : vector<8x32xbf16>, vector<32x64xbf16>, vector<8x64xf32> -> vector<8x64xf32>
      %c0_68 = arith.constant 0 : index
      %c0_69 = arith.constant 0 : index
      %121 = vector.load %arg7[%c0_68, %c0_69] : memref<1x64xf32, #tpu.memory_space<vmem>>, vector<1x64xf32>
      %122 = vector.broadcast %121 : vector<1x64xf32> to vector<8x64xf32>
      %123 = arith.addf %120, %122 : vector<8x64xf32>
      %124 = arith.truncf %123 : vector<8x64xf32> to vector<8x64xbf16>
      %125 = vector.extract_strided_slice %124 {offsets = [0, 0], sizes = [8, 8], strides = [1, 1]} : vector<8x64xbf16> to vector<8x8xbf16>
      %c0_70 = arith.constant 0 : index
      %c0_71 = arith.constant 0 : index
      %c0_72 = arith.constant 0 : index
      %126 = vector.load %arg20[%c0_70, %c0_71, %c0_72] : memref<4x8x8xbf16, #tpu.memory_space<vmem>>, vector<1x8x8xbf16>
      %127 = vector.shape_cast %126 : vector<1x8x8xbf16> to vector<8x8xbf16>
      %128 = vector.shape_cast %125 : vector<8x8xbf16> to vector<1x8x8xbf16>
      tpu.vector_store %arg20[%c0_70, %c0_71, %c0_72], %128 {strides = array<i32>} : memref<4x8x8xbf16, #tpu.memory_space<vmem>>, vector<1x8x8xbf16>,
      %129 = vector.extract_strided_slice %124 {offsets = [0, 32], sizes = [8, 8], strides = [1, 1]} : vector<8x64xbf16> to vector<8x8xbf16>
      %c0_73 = arith.constant 0 : index
      %c0_74 = arith.constant 0 : index
      %c0_75 = arith.constant 0 : index
      %130 = vector.load %arg21[%c0_73, %c0_74, %c0_75] : memref<4x8x8xbf16, #tpu.memory_space<vmem>>, vector<1x8x8xbf16>
      %131 = vector.shape_cast %130 : vector<1x8x8xbf16> to vector<8x8xbf16>
      %132 = vector.shape_cast %129 : vector<8x8xbf16> to vector<1x8x8xbf16>
      tpu.vector_store %arg21[%c0_73, %c0_74, %c0_75], %132 {strides = array<i32>} : memref<4x8x8xbf16, #tpu.memory_space<vmem>>, vector<1x8x8xbf16>,
      %133 = vector.extract_strided_slice %124 {offsets = [0, 8], sizes = [8, 8], strides = [1, 1]} : vector<8x64xbf16> to vector<8x8xbf16>
      %c1 = arith.constant 1 : index
      %c0_76 = arith.constant 0 : index
      %c0_77 = arith.constant 0 : index
      %134 = vector.load %arg20[%c1, %c0_76, %c0_77] : memref<4x8x8xbf16, #tpu.memory_space<vmem>>, vector<1x8x8xbf16>
      %135 = vector.shape_cast %134 : vector<1x8x8xbf16> to vector<8x8xbf16>
      %136 = vector.shape_cast %133 : vector<8x8xbf16> to vector<1x8x8xbf16>
      tpu.vector_store %arg20[%c1, %c0_76, %c0_77], %136 {strides = array<i32>} : memref<4x8x8xbf16, #tpu.memory_space<vmem>>, vector<1x8x8xbf16>,
      %137 = vector.extract_strided_slice %124 {offsets = [0, 40], sizes = [8, 8], strides = [1, 1]} : vector<8x64xbf16> to vector<8x8xbf16>
      %c1_78 = arith.constant 1 : index
      %c0_79 = arith.constant 0 : index
      %c0_80 = arith.constant 0 : index
      %138 = vector.load %arg21[%c1_78, %c0_79, %c0_80] : memref<4x8x8xbf16, #tpu.memory_space<vmem>>, vector<1x8x8xbf16>
      %139 = vector.shape_cast %138 : vector<1x8x8xbf16> to vector<8x8xbf16>
      %140 = vector.shape_cast %137 : vector<8x8xbf16> to vector<1x8x8xbf16>
      tpu.vector_store %arg21[%c1_78, %c0_79, %c0_80], %140 {strides = array<i32>} : memref<4x8x8xbf16, #tpu.memory_space<vmem>>, vector<1x8x8xbf16>,
      %141 = vector.extract_strided_slice %124 {offsets = [0, 16], sizes = [8, 8], strides = [1, 1]} : vector<8x64xbf16> to vector<8x8xbf16>
      %c2 = arith.constant 2 : index
      %c0_81 = arith.constant 0 : index
      %c0_82 = arith.constant 0 : index
      %142 = vector.load %arg20[%c2, %c0_81, %c0_82] : memref<4x8x8xbf16, #tpu.memory_space<vmem>>, vector<1x8x8xbf16>
      %143 = vector.shape_cast %142 : vector<1x8x8xbf16> to vector<8x8xbf16>
      %144 = vector.shape_cast %141 : vector<8x8xbf16> to vector<1x8x8xbf16>
      tpu.vector_store %arg20[%c2, %c0_81, %c0_82], %144 {strides = array<i32>} : memref<4x8x8xbf16, #tpu.memory_space<vmem>>, vector<1x8x8xbf16>,
      %145 = vector.extract_strided_slice %124 {offsets = [0, 48], sizes = [8, 8], strides = [1, 1]} : vector<8x64xbf16> to vector<8x8xbf16>
      %c2_83 = arith.constant 2 : index
      %c0_84 = arith.constant 0 : index
      %c0_85 = arith.constant 0 : index
      %146 = vector.load %arg21[%c2_83, %c0_84, %c0_85] : memref<4x8x8xbf16, #tpu.memory_space<vmem>>, vector<1x8x8xbf16>
      %147 = vector.shape_cast %146 : vector<1x8x8xbf16> to vector<8x8xbf16>
      %148 = vector.shape_cast %145 : vector<8x8xbf16> to vector<1x8x8xbf16>
      tpu.vector_store %arg21[%c2_83, %c0_84, %c0_85], %148 {strides = array<i32>} : memref<4x8x8xbf16, #tpu.memory_space<vmem>>, vector<1x8x8xbf16>,
      %149 = vector.extract_strided_slice %124 {offsets = [0, 24], sizes = [8, 8], strides = [1, 1]} : vector<8x64xbf16> to vector<8x8xbf16>
      %c3 = arith.constant 3 : index
      %c0_86 = arith.constant 0 : index
      %c0_87 = arith.constant 0 : index
      %150 = vector.load %arg20[%c3, %c0_86, %c0_87] : memref<4x8x8xbf16, #tpu.memory_space<vmem>>, vector<1x8x8xbf16>
      %151 = vector.shape_cast %150 : vector<1x8x8xbf16> to vector<8x8xbf16>
      %152 = vector.shape_cast %149 : vector<8x8xbf16> to vector<1x8x8xbf16>
      tpu.vector_store %arg20[%c3, %c0_86, %c0_87], %152 {strides = array<i32>} : memref<4x8x8xbf16, #tpu.memory_space<vmem>>, vector<1x8x8xbf16>,
      %153 = vector.extract_strided_slice %124 {offsets = [0, 56], sizes = [8, 8], strides = [1, 1]} : vector<8x64xbf16> to vector<8x8xbf16>
      %c3_88 = arith.constant 3 : index
      %c0_89 = arith.constant 0 : index
      %c0_90 = arith.constant 0 : index
      %154 = vector.load %arg21[%c3_88, %c0_89, %c0_90] : memref<4x8x8xbf16, #tpu.memory_space<vmem>>, vector<1x8x8xbf16>
      %155 = vector.shape_cast %154 : vector<1x8x8xbf16> to vector<8x8xbf16>
      %156 = vector.shape_cast %153 : vector<8x8xbf16> to vector<1x8x8xbf16>
      tpu.vector_store %arg21[%c3_88, %c0_89, %c0_90], %156 {strides = array<i32>} : memref<4x8x8xbf16, #tpu.memory_space<vmem>>, vector<1x8x8xbf16>,
    } else {
    }
    %c0 = arith.constant 0 : index
    %c0_1 = arith.constant 0 : index
    %c0_2 = arith.constant 0 : index
    %3 = vector.load %arg2[%c0, %c0_1, %c0_2] : memref<1x8x32xf32, #tpu.memory_space<vmem>>, vector<1x8x32xf32>
    %4 = vector.shape_cast %3 : vector<1x8x32xf32> to vector<8x32xf32>
    %5 = arith.truncf %4 : vector<8x32xf32> to vector<8x32xbf16>
    %c0_3 = arith.constant 0 : index
    %c0_4 = arith.constant 0 : index
    %6 = vector.load %arg4[%c0_3, %c0_4] : memref<32x32xbf16, #tpu.memory_space<vmem>>, vector<32x32xbf16>
    %cst = arith.constant dense<0.000000e+00> : vector<8x32xf32>
    %7 = tpu.matmul %5, %6, %cst {dimension_numbers = #tpu.dot_dimension_numbers<[1], [0], [0], [1], [0, 0, 1, 1], [], []>} : vector<8x32xbf16>, vector<32x32xbf16>, vector<8x32xf32> -> vector<8x32xf32>
    %c0_5 = arith.constant 0 : index
    %c0_6 = arith.constant 0 : index
    %8 = vector.load %arg5[%c0_5, %c0_6] : memref<1x32xf32, #tpu.memory_space<vmem>>, vector<1x32xf32>
    %9 = vector.broadcast %8 : vector<1x32xf32> to vector<8x32xf32>
    %10 = arith.addf %7, %9 : vector<8x32xf32>
    %cst_7 = arith.constant 0.353553385 : f32
    %11 = vector.broadcast %cst_7 : f32 to vector<8x32xf32>
    %12 = arith.mulf %10, %11 : vector<8x32xf32>
    %13 = arith.truncf %12 : vector<8x32xf32> to vector<8x32xbf16>
    %14 = vector.extract_strided_slice %13 {offsets = [0, 0], sizes = [8, 8], strides = [1, 1]} : vector<8x32xbf16> to vector<8x8xbf16>
    %15 = vector.extract_strided_slice %13 {offsets = [0, 8], sizes = [8, 8], strides = [1, 1]} : vector<8x32xbf16> to vector<8x8xbf16>
    %16 = vector.extract_strided_slice %13 {offsets = [0, 16], sizes = [8, 8], strides = [1, 1]} : vector<8x32xbf16> to vector<8x8xbf16>
    %17 = vector.extract_strided_slice %13 {offsets = [0, 24], sizes = [8, 8], strides = [1, 1]} : vector<8x32xbf16> to vector<8x8xbf16>
    %18 = vector.shape_cast %14 : vector<8x8xbf16> to vector<1x8x8xbf16>
    %19 = vector.shape_cast %15 : vector<8x8xbf16> to vector<1x8x8xbf16>
    %20 = vector.shape_cast %16 : vector<8x8xbf16> to vector<1x8x8xbf16>
    %21 = vector.shape_cast %17 : vector<8x8xbf16> to vector<1x8x8xbf16>
    %22 = tpu.concatenate %18, %19, %20, %21 in 0 : vector<1x8x8xbf16>, vector<1x8x8xbf16>, vector<1x8x8xbf16>, vector<1x8x8xbf16> -> vector<4x8x8xbf16>
    %c0_8 = arith.constant 0 : index
    %c0_9 = arith.constant 0 : index
    %c0_10 = arith.constant 0 : index
    %23 = vector.load %arg20[%c0_8, %c0_9, %c0_10] : memref<4x8x8xbf16, #tpu.memory_space<vmem>>, vector<4x8x8xbf16>
    "tpu.trace_start"() <{level = 10 : i32, message = "htd,hmd->htm"}> : () -> ()
    %cst_11 = arith.constant dense<0.000000e+00> : vector<4x8x8xf32>
    %24 = tpu.matmul %22, %23, %cst_11 {dimension_numbers = #tpu.dot_dimension_numbers<[2], [2], [1], [1], [0, 0, 0, 1, 1, 1], [0], [0]>} : vector<4x8x8xbf16>, vector<4x8x8xbf16>, vector<4x8x8xf32> -> vector<4x8x8xf32>
    "tpu.trace_stop"() : () -> ()
    %cst_12 = arith.constant dense<0xFF800000> : vector<4x8xf32>
    %25 = vector.multi_reduction <maximumf>, %24, %cst_12 [2] : vector<4x8x8xf32> to vector<4x8xf32>
    %26 = vector.shape_cast %25 : vector<4x8xf32> to vector<4x8x1xf32>
    %27 = vector.broadcast %26 : vector<4x8x1xf32> to vector<4x8x8xf32>
    %28 = arith.subf %24, %27 : vector<4x8x8xf32>
    %29 = math.exp %28 : vector<4x8x8xf32>
    %cst_13 = arith.constant dense<0.000000e+00> : vector<4x8xf32>
    %30 = vector.multi_reduction <add>, %29, %cst_13 [2] : vector<4x8x8xf32> to vector<4x8xf32>
    %31 = vector.shape_cast %30 : vector<4x8xf32> to vector<4x8x1xf32>
    %cst_14 = arith.constant 1.000000e+00 : f32
    %32 = vector.broadcast %cst_14 : f32 to vector<4x8x1xf32>
    %33 = arith.divf %32, %31 : vector<4x8x1xf32>
    %34 = vector.broadcast %33 : vector<4x8x1xf32> to vector<4x8x8xf32>
    %35 = arith.mulf %29, %34 : vector<4x8x8xf32>
    %36 = arith.truncf %35 : vector<4x8x8xf32> to vector<4x8x8xbf16>
    %c0_15 = arith.constant 0 : index
    %c0_16 = arith.constant 0 : index
    %c0_17 = arith.constant 0 : index
    %c0_18 = arith.constant 0 : index
    %37 = vector.load %arg19[%c0_15, %c0_16, %c0_17, %c0_18] : memref<1x4x8x8xbf16, #tpu.memory_space<vmem>>, vector<1x4x8x8xbf16>
    %38 = vector.shape_cast %37 : vector<1x4x8x8xbf16> to vector<4x8x8xbf16>
    %39 = vector.shape_cast %36 : vector<4x8x8xbf16> to vector<1x4x8x8xbf16>
    tpu.vector_store %arg19[%c0_15, %c0_16, %c0_17, %c0_18], %39 {strides = array<i32>} : memref<1x4x8x8xbf16, #tpu.memory_space<vmem>>, vector<1x4x8x8xbf16>,
    %c0_19 = arith.constant 0 : index
    %c0_20 = arith.constant 0 : index
    %c0_21 = arith.constant 0 : index
    %40 = vector.load %arg21[%c0_19, %c0_20, %c0_21] : memref<4x8x8xbf16, #tpu.memory_space<vmem>>, vector<4x8x8xbf16>
    "tpu.trace_start"() <{level = 10 : i32, message = "htm,hmd->htd"}> : () -> ()
    %cst_22 = arith.constant dense<0.000000e+00> : vector<4x8x8xf32>
    %41 = tpu.matmul %36, %40, %cst_22 {dimension_numbers = #tpu.dot_dimension_numbers<[2], [1], [1], [2], [0, 0, 0, 1, 1, 2], [0], [0]>} : vector<4x8x8xbf16>, vector<4x8x8xbf16>, vector<4x8x8xf32> -> vector<4x8x8xf32>
    "tpu.trace_stop"() : () -> ()
    %42 = arith.truncf %41 : vector<4x8x8xf32> to vector<4x8x8xbf16>
    %c0_23 = arith.constant 0 : index
    %c0_24 = arith.constant 0 : index
    %c0_25 = arith.constant 0 : index
    %43 = vector.load %arg8[%c0_23, %c0_24, %c0_25] : memref<4x8x32xbf16, #tpu.memory_space<vmem>>, vector<4x8x32xbf16>
    "tpu.trace_start"() <{level = 10 : i32, message = "htd,hde->hte"}> : () -> ()
    %cst_26 = arith.constant dense<0.000000e+00> : vector<4x8x32xf32>
    %44 = tpu.matmul %42, %43, %cst_26 {dimension_numbers = #tpu.dot_dimension_numbers<[2], [1], [1], [2], [0, 0, 0, 1, 1, 2], [0], [0]>} : vector<4x8x8xbf16>, vector<4x8x32xbf16>, vector<4x8x32xf32> -> vector<4x8x32xf32>
    "tpu.trace_stop"() : () -> ()
    %cst_27 = arith.constant dense<0.000000e+00> : vector<8x32xf32>
    %45 = vector.multi_reduction <add>, %44, %cst_27 [0] : vector<4x8x32xf32> to vector<8x32xf32>
    %c0_28 = arith.constant 0 : index
    %c0_29 = arith.constant 0 : index
    %46 = vector.load %arg9[%c0_28, %c0_29] : memref<1x32xf32, #tpu.memory_space<vmem>>, vector<1x32xf32>
    %47 = vector.broadcast %46 : vector<1x32xf32> to vector<8x32xf32>
    %48 = arith.addf %45, %47 : vector<8x32xf32>
    %49 = arith.addf %4, %48 : vector<8x32xf32>
    %c0_30 = arith.constant 0 : index
    %c0_31 = arith.constant 0 : index
    %50 = vector.load %arg10[%c0_30, %c0_31] : memref<1x32xf32, #tpu.memory_space<vmem>>, vector<1x32xf32>
    %c0_32 = arith.constant 0 : index
    %c0_33 = arith.constant 0 : index
    %51 = vector.load %arg11[%c0_32, %c0_33] : memref<1x32xf32, #tpu.memory_space<vmem>>, vector<1x32xf32>
    %cst_34 = arith.constant dense<0.000000e+00> : vector<8xf32>
    %52 = vector.multi_reduction <add>, %49, %cst_34 [1] : vector<8x32xf32> to vector<8xf32>
    %53 = vector.shape_cast %52 : vector<8xf32> to vector<8x1xf32>
    %cst_35 = arith.constant 3.200000e+01 : f32
    %54 = vector.broadcast %cst_35 : f32 to vector<8x1xf32>
    %55 = arith.divf %53, %54 : vector<8x1xf32>
    %56 = vector.broadcast %55 : vector<8x1xf32> to vector<8x32xf32>
    %57 = arith.subf %49, %56 : vector<8x32xf32>
    %58 = arith.mulf %57, %57 : vector<8x32xf32>
    %cst_36 = arith.constant dense<0.000000e+00> : vector<8xf32>
    %59 = vector.multi_reduction <add>, %58, %cst_36 [1] : vector<8x32xf32> to vector<8xf32>
    %60 = vector.shape_cast %59 : vector<8xf32> to vector<8x1xf32>
    %cst_37 = arith.constant 3.200000e+01 : f32
    %61 = vector.broadcast %cst_37 : f32 to vector<8x1xf32>
    %62 = arith.divf %60, %61 : vector<8x1xf32>
    %63 = vector.broadcast %55 : vector<8x1xf32> to vector<8x32xf32>
    %64 = arith.subf %49, %63 : vector<8x32xf32>
    %cst_38 = arith.constant 9.99999974E-6 : f32
    %65 = vector.broadcast %cst_38 : f32 to vector<8x1xf32>
    %66 = arith.addf %62, %65 : vector<8x1xf32>
    %67 = math.rsqrt %66 : vector<8x1xf32>
    %68 = vector.broadcast %67 : vector<8x1xf32> to vector<8x32xf32>
    %69 = arith.mulf %64, %68 : vector<8x32xf32>
    %70 = vector.broadcast %50 : vector<1x32xf32> to vector<8x32xf32>
    %71 = arith.mulf %69, %70 : vector<8x32xf32>
    %72 = vector.broadcast %51 : vector<1x32xf32> to vector<8x32xf32>
    %73 = arith.addf %71, %72 : vector<8x32xf32>
    %74 = arith.truncf %73 : vector<8x32xf32> to vector<8x32xbf16>
    %c0_39 = arith.constant 0 : index
    %c0_40 = arith.constant 0 : index
    %75 = vector.load %arg12[%c0_39, %c0_40] : memref<32x128xbf16, #tpu.memory_space<vmem>>, vector<32x128xbf16>
    %cst_41 = arith.constant dense<0.000000e+00> : vector<8x128xf32>
    %76 = tpu.matmul %74, %75, %cst_41 {dimension_numbers = #tpu.dot_dimension_numbers<[1], [0], [0], [1], [0, 0, 1, 1], [], []>} : vector<8x32xbf16>, vector<32x128xbf16>, vector<8x128xf32> -> vector<8x128xf32>
    %c0_42 = arith.constant 0 : index
    %c0_43 = arith.constant 0 : index
    %77 = vector.load %arg13[%c0_42, %c0_43] : memref<1x128xf32, #tpu.memory_space<vmem>>, vector<1x128xf32>
    %78 = vector.broadcast %77 : vector<1x128xf32> to vector<8x128xf32>
    %79 = arith.addf %76, %78 : vector<8x128xf32>
    %cst_44 = arith.constant 0.000000e+00 : f32
    %80 = vector.broadcast %cst_44 : f32 to vector<8x128xf32>
    %81 = arith.maximumf %79, %80 : vector<8x128xf32>
    %82 = arith.truncf %81 : vector<8x128xf32> to vector<8x128xbf16>
    %c0_45 = arith.constant 0 : index
    %c0_46 = arith.constant 0 : index
    %83 = vector.load %arg14[%c0_45, %c0_46] : memref<128x32xbf16, #tpu.memory_space<vmem>>, vector<128x32xbf16>
    %cst_47 = arith.constant dense<0.000000e+00> : vector<8x32xf32>
    %84 = tpu.matmul %82, %83, %cst_47 {dimension_numbers = #tpu.dot_dimension_numbers<[1], [0], [0], [1], [0, 0, 1, 1], [], []>} : vector<8x128xbf16>, vector<128x32xbf16>, vector<8x32xf32> -> vector<8x32xf32>
    %c0_48 = arith.constant 0 : index
    %c0_49 = arith.constant 0 : index
    %85 = vector.load %arg15[%c0_48, %c0_49] : memref<1x32xf32, #tpu.memory_space<vmem>>, vector<1x32xf32>
    %86 = vector.broadcast %85 : vector<1x32xf32> to vector<8x32xf32>
    %87 = arith.addf %84, %86 : vector<8x32xf32>
    %88 = arith.addf %49, %87 : vector<8x32xf32>
    %c0_50 = arith.constant 0 : index
    %c0_51 = arith.constant 0 : index
    %89 = vector.load %arg16[%c0_50, %c0_51] : memref<1x32xf32, #tpu.memory_space<vmem>>, vector<1x32xf32>
    %c0_52 = arith.constant 0 : index
    %c0_53 = arith.constant 0 : index
    %90 = vector.load %arg17[%c0_52, %c0_53] : memref<1x32xf32, #tpu.memory_space<vmem>>, vector<1x32xf32>
    %cst_54 = arith.constant dense<0.000000e+00> : vector<8xf32>
    %91 = vector.multi_reduction <add>, %88, %cst_54 [1] : vector<8x32xf32> to vector<8xf32>
    %92 = vector.shape_cast %91 : vector<8xf32> to vector<8x1xf32>
    %cst_55 = arith.constant 3.200000e+01 : f32
    %93 = vector.broadcast %cst_55 : f32 to vector<8x1xf32>
    %94 = arith.divf %92, %93 : vector<8x1xf32>
    %95 = vector.broadcast %94 : vector<8x1xf32> to vector<8x32xf32>
    %96 = arith.subf %88, %95 : vector<8x32xf32>
    %97 = arith.mulf %96, %96 : vector<8x32xf32>
    %cst_56 = arith.constant dense<0.000000e+00> : vector<8xf32>
    %98 = vector.multi_reduction <add>, %97, %cst_56 [1] : vector<8x32xf32> to vector<8xf32>
    %99 = vector.shape_cast %98 : vector<8xf32> to vector<8x1xf32>
    %cst_57 = arith.constant 3.200000e+01 : f32
    %100 = vector.broadcast %cst_57 : f32 to vector<8x1xf32>
    %101 = arith.divf %99, %100 : vector<8x1xf32>
    %102 = vector.broadcast %94 : vector<8x1xf32> to vector<8x32xf32>
    %103 = arith.subf %88, %102 : vector<8x32xf32>
    %cst_58 = arith.constant 9.99999974E-6 : f32
    %104 = vector.broadcast %cst_58 : f32 to vector<8x1xf32>
    %105 = arith.addf %101, %104 : vector<8x1xf32>
    %106 = math.rsqrt %105 : vector<8x1xf32>
    %107 = vector.broadcast %106 : vector<8x1xf32> to vector<8x32xf32>
    %108 = arith.mulf %103, %107 : vector<8x32xf32>
    %109 = vector.broadcast %89 : vector<1x32xf32> to vector<8x32xf32>
    %110 = arith.mulf %108, %109 : vector<8x32xf32>
    %111 = vector.broadcast %90 : vector<1x32xf32> to vector<8x32xf32>
    %112 = arith.addf %110, %111 : vector<8x32xf32>
    %c0_59 = arith.constant 0 : index
    %c0_60 = arith.constant 0 : index
    %c0_61 = arith.constant 0 : index
    %113 = vector.load %arg18[%c0_59, %c0_60, %c0_61] : memref<1x8x32xf32, #tpu.memory_space<vmem>>, vector<1x8x32xf32>
    %114 = vector.shape_cast %113 : vector<1x8x32xf32> to vector<8x32xf32>
    %115 = vector.shape_cast %112 : vector<8x32xf32> to vector<1x8x32xf32>
    tpu.vector_store %arg18[%c0_59, %c0_60, %c0_61], %115 {strides = array<i32>} : memref<1x8x32xf32, #tpu.memory_space<vmem>>, vector<1x8x32xf32>,
    return
  }
  func.func @transform_0(%arg0: i32, %arg1: i32) -> (i32, i32, i32) {
    %c0_i32 = arith.constant 0 : i32
    %c0_i32_0 = arith.constant 0 : i32
    return %arg0, %arg1, %c0_i32 : i32, i32, i32
  }
  func.func @transform_1(%arg0: i32, %arg1: i32) -> (i32, i32, i32) {
    %c0_i32 = arith.constant 0 : i32
    %c0_i32_0 = arith.constant 0 : i32
    %c0_i32_1 = arith.constant 0 : i32
    return %arg0, %c0_i32, %c0_i32_0 : i32, i32, i32
  }
  func.func @transform_2(%arg0: i32, %arg1: i32) -> (i32, i32) {
    %c0_i32 = arith.constant 0 : i32
    %c0_i32_0 = arith.constant 0 : i32
    %c0_i32_1 = arith.constant 0 : i32
    return %c0_i32, %c0_i32_0 : i32, i32
  }
  func.func @transform_3(%arg0: i32, %arg1: i32) -> (i32, i32) {
    %c0_i32 = arith.constant 0 : i32
    %c0_i32_0 = arith.constant 0 : i32
    %c0_i32_1 = arith.constant 0 : i32
    return %c0_i32, %c0_i32_0 : i32, i32
  }
  func.func @transform_4(%arg0: i32, %arg1: i32) -> (i32, i32) {
    %c0_i32 = arith.constant 0 : i32
    %c0_i32_0 = arith.constant 0 : i32
    %c0_i32_1 = arith.constant 0 : i32
    return %c0_i32, %c0_i32_0 : i32, i32
  }
  func.func @transform_5(%arg0: i32, %arg1: i32) -> (i32, i32) {
    %c0_i32 = arith.constant 0 : i32
    %c0_i32_0 = arith.constant 0 : i32
    %c0_i32_1 = arith.constant 0 : i32
    return %c0_i32, %c0_i32_0 : i32, i32
  }
  func.func @transform_6(%arg0: i32, %arg1: i32) -> (i32, i32, i32) {
    %c0_i32 = arith.constant 0 : i32
    %c0_i32_0 = arith.constant 0 : i32
    %c0_i32_1 = arith.constant 0 : i32
    %c0_i32_2 = arith.constant 0 : i32
    return %c0_i32, %c0_i32_0, %c0_i32_1 : i32, i32, i32
  }
  func.func @transform_7(%arg0: i32, %arg1: i32) -> (i32, i32) {
    %c0_i32 = arith.constant 0 : i32
    %c0_i32_0 = arith.constant 0 : i32
    %c0_i32_1 = arith.constant 0 : i32
    return %c0_i32, %c0_i32_0 : i32, i32
  }
  func.func @transform_8(%arg0: i32, %arg1: i32) -> (i32, i32) {
    %c0_i32 = arith.constant 0 : i32
    %c0_i32_0 = arith.constant 0 : i32
    %c0_i32_1 = arith.constant 0 : i32
    return %c0_i32, %c0_i32_0 : i32, i32
  }
  func.func @transform_9(%arg0: i32, %arg1: i32) -> (i32, i32) {
    %c0_i32 = arith.constant 0 : i32
    %c0_i32_0 = arith.constant 0 : i32
    %c0_i32_1 = arith.constant 0 : i32
    return %c0_i32, %c0_i32_0 : i32, i32
  }
  func.func @transform_10(%arg0: i32, %arg1: i32) -> (i32, i32) {
    %c0_i32 = arith.constant 0 : i32
    %c0_i32_0 = arith.constant 0 : i32
    %c0_i32_1 = arith.constant 0 : i32
    return %c0_i32, %c0_i32_0 : i32, i32
  }
  func.func @transform_11(%arg0: i32, %arg1: i32) -> (i32, i32) {
    %c0_i32 = arith.constant 0 : i32
    %c0_i32_0 = arith.constant 0 : i32
    %c0_i32_1 = arith.constant 0 : i32
    return %c0_i32, %c0_i32_0 : i32, i32
  }
  func.func @transform_12(%arg0: i32, %arg1: i32) -> (i32, i32) {
    %c0_i32 = arith.constant 0 : i32
    %c0_i32_0 = arith.constant 0 : i32
    %c0_i32_1 = arith.constant 0 : i32
    return %c0_i32, %c0_i32_0 : i32, i32
  }
  func.func @transform_13(%arg0: i32, %arg1: i32) -> (i32, i32) {
    %c0_i32 = arith.constant 0 : i32
    %c0_i32_0 = arith.constant 0 : i32
    %c0_i32_1 = arith.constant 0 : i32
    return %c0_i32, %c0_i32_0 : i32, i32
  }
  func.func @transform_14(%arg0: i32, %arg1: i32) -> (i32, i32) {
    %c0_i32 = arith.constant 0 : i32
    %c0_i32_0 = arith.constant 0 : i32
    %c0_i32_1 = arith.constant 0 : i32
    return %c0_i32, %c0_i32_0 : i32, i32
  }
  func.func @transform_15(%arg0: i32, %arg1: i32) -> (i32, i32) {
    %c0_i32 = arith.constant 0 : i32
    %c0_i32_0 = arith.constant 0 : i32
    %c0_i32_1 = arith.constant 0 : i32
    return %c0_i32, %c0_i32_0 : i32, i32
  }
  func.func @transform_16(%arg0: i32, %arg1: i32) -> (i32, i32, i32) {
    %c0_i32 = arith.constant 0 : i32
    %c0_i32_0 = arith.constant 0 : i32
    return %arg0, %arg1, %c0_i32 : i32, i32, i32
  }
  func.func @transform_17(%arg0: i32, %arg1: i32) -> (i32, i32, i32, i32) {
    %c0_i32 = arith.constant 0 : i32
    %c0_i32_0 = arith.constant 0 : i32
    %c0_i32_1 = arith.constant 0 : i32
    return %arg0, %c0_i32, %arg1, %c0_i32_0 : i32, i32, i32, i32
  }
}

module attributes {stable_mosaic.version = 11 : i64} {
  func.func @kernel(%arg0: i32, %arg1: i32, %arg2: memref<1x8x32xf32, #tpu.memory_space<vmem>>, %arg3: memref<1x8x32xf32, #tpu.memory_space<vmem>>, %arg4: memref<32x32xbf16, #tpu.memory_space<vmem>>, %arg5: memref<1x32xf32, #tpu.memory_space<vmem>>, %arg6: memref<32x64xbf16, #tpu.memory_space<vmem>>, %arg7: memref<1x64xf32, #tpu.memory_space<vmem>>, %arg8: memref<4x8x32xbf16, #tpu.memory_space<vmem>>, %arg9: memref<1x32xf32, #tpu.memory_space<vmem>>, %arg10: memref<1x32xf32, #tpu.memory_space<vmem>>, %arg11: memref<1x32xf32, #tpu.memory_space<vmem>>, %arg12: memref<32x128xbf16, #tpu.memory_space<vmem>>, %arg13: memref<1x128xf32, #tpu.memory_space<vmem>>, %arg14: memref<128x32xbf16, #tpu.memory_space<vmem>>, %arg15: memref<1x32xf32, #tpu.memory_space<vmem>>, %arg16: memref<1x32xf32, #tpu.memory_space<vmem>>, %arg17: memref<1x32xf32, #tpu.memory_space<vmem>>, %arg18: memref<1x8x32xf32, #tpu.memory_space<vmem>>, %arg19: memref<1x4x8x8xbf16, #tpu.memory_space<vmem>>, %arg20: memref<4x8x8xbf16, #tpu.memory_space<vmem>>, %arg21: memref<4x8x8xbf16, #tpu.memory_space<vmem>>) attributes {dimension_semantics = [#tpu.dimension_semantics<parallel>, #tpu.dimension_semantics<arbitrary>], iteration_bounds = array<i64: 2, 1>, scalar_prefetch = 0 : i64, scratch_operands = 2 : i64, tpu.core_type = #tpu.core_type<tc>, window_params = [{transform_indices = @transform_0, window_bounds = array<i64: 1, 8, 32>}, {transform_indices = @transform_1, window_bounds = array<i64: 1, 8, 32>}, {pipeline_mode = #tpu.pipeline_mode<synchronous>, transform_indices = @transform_2, window_bounds = array<i64: 32, 32>}, {pipeline_mode = #tpu.pipeline_mode<synchronous>, transform_indices = @transform_3, window_bounds = array<i64: 1, 32>}, {pipeline_mode = #tpu.pipeline_mode<synchronous>, transform_indices = @transform_4, window_bounds = array<i64: 32, 64>}, {pipeline_mode = #tpu.pipeline_mode<synchronous>, transform_indices = @transform_5, window_bounds = array<i64: 1, 64>}, {pipeline_mode = #tpu.pipeline_mode<synchronous>, transform_indices = @transform_6, window_bounds = array<i64: 4, 8, 32>}, {pipeline_mode = #tpu.pipeline_mode<synchronous>, transform_indices = @transform_7, window_bounds = array<i64: 1, 32>}, {pipeline_mode = #tpu.pipeline_mode<synchronous>, transform_indices = @transform_8, window_bounds = array<i64: 1, 32>}, {pipeline_mode = #tpu.pipeline_mode<synchronous>, transform_indices = @transform_9, window_bounds = array<i64: 1, 32>}, {pipeline_mode = #tpu.pipeline_mode<synchronous>, transform_indices = @transform_10, window_bounds = array<i64: 32, 128>}, {pipeline_mode = #tpu.pipeline_mode<synchronous>, transform_indices = @transform_11, window_bounds = array<i64: 1, 128>}, {pipeline_mode = #tpu.pipeline_mode<synchronous>, transform_indices = @transform_12, window_bounds = array<i64: 128, 32>}, {pipeline_mode = #tpu.pipeline_mode<synchronous>, transform_indices = @transform_13, window_bounds = array<i64: 1, 32>}, {pipeline_mode = #tpu.pipeline_mode<synchronous>, transform_indices = @transform_14, window_bounds = array<i64: 1, 32>}, {pipeline_mode = #tpu.pipeline_mode<synchronous>, transform_indices = @transform_15, window_bounds = array<i64: 1, 32>}, {transform_indices = @transform_16, window_bounds = array<i64: 1, 8, 32>}, {transform_indices = @transform_17, window_bounds = array<i64: 1, 4, 8, 8>}]} {
    %c0_i32 = arith.constant 0 : i32
    %0 = arith.cmpi eq, %arg1, %c0_i32 : i32
    %1 = arith.extui %0 : i1 to i32
    %c0_i32_0 = arith.constant 0 : i32
    %2 = arith.cmpi ne, %1, %c0_i32_0 : i32
    scf.if %2 {
      %c0_62 = arith.constant 0 : index
      %c0_63 = arith.constant 0 : index
      %c0_64 = arith.constant 0 : index
      %116 = vector.load %arg3[%c0_62, %c0_63, %c0_64] : memref<1x8x32xf32, #tpu.memory_space<vmem>>, vector<1x8x32xf32>
      %117 = vector.shape_cast %116 : vector<1x8x32xf32> to vector<8x32xf32>
      %118 = arith.truncf %117 : vector<8x32xf32> to vector<8x32xbf16>
      %c0_65 = arith.constant 0 : index
      %c0_66 = arith.constant 0 : index
      %119 = vector.load %arg6[%c0_65, %c0_66] : memref<32x64xbf16, #tpu.memory_space<vmem>>, vector<32x64xbf16>
      %cst_67 = arith.constant dense<0.000000e+00> : vector<8x64xf32>
      %120 = tpu.matmul %118, %119, %cst_67 {dimension_numbers = #tpu.dot_dimension_numbers<[1], [0], [0], [1], [0, 0, 1, 1], [], []>} : vector<8x32xbf16>, vector<32x64xbf16>, vector<8x64xf32> -> vector<8x64xf32>
      %c0_68 = arith.constant 0 : index
      %c0_69 = arith.constant 0 : index
      %121 = vector.load %arg7[%c0_68, %c0_69] : memref<1x64xf32, #tpu.memory_space<vmem>>, vector<1x64xf32>
      %122 = vector.broadcast %121 : vector<1x64xf32> to vector<8x64xf32>
      %123 = arith.addf %120, %122 : vector<8x64xf32>
      %124 = arith.truncf %123 : vector<8x64xf32> to vector<8x64xbf16>
      %125 = vector.extract_strided_slice %124 {offsets = [0, 0], sizes = [8, 8], strides = [1, 1]} : vector<8x64xbf16> to vector<8x8xbf16>
      %c0_70 = arith.constant 0 : index
      %c0_71 = arith.constant 0 : index
      %c0_72 = arith.constant 0 : index
      %126 = vector.load %arg20[%c0_70, %c0_71, %c0_72] : memref<4x8x8xbf16, #tpu.memory_space<vmem>>, vector<1x8x8xbf16>
      %127 = vector.shape_cast %126 : vector<1x8x8xbf16> to vector<8x8xbf16>
      %128 = vector.shape_cast %125 : vector<8x8xbf16> to vector<1x8x8xbf16>
      tpu.vector_store %arg20[%c0_70, %c0_71, %c0_72], %128 {strides = array<i32>} : memref<4x8x8xbf16, #tpu.memory_space<vmem>>, vector<1x8x8xbf16>,
      %129 = vector.extract_strided_slice %124 {offsets = [0, 32], sizes = [8, 8], strides = [1, 1]} : vector<8x64xbf16> to vector<8x8xbf16>
      %c0_73 = arith.constant 0 : index
      %c0_74 = arith.constant 0 : index
      %c0_75 = arith.constant 0 : index
      %130 = vector.load %arg21[%c0_73, %c0_74, %c0_75] : memref<4x8x8xbf16, #tpu.memory_space<vmem>>, vector<1x8x8xbf16>
      %131 = vector.shape_cast %130 : vector<1x8x8xbf16> to vector<8x8xbf16>
      %132 = vector.shape_cast %129 : vector<8x8xbf16> to vector<1x8x8xbf16>
      tpu.vector_store %arg21[%c0_73, %c0_74, %c0_75], %132 {strides = array<i32>} : memref<4x8x8xbf16, #tpu.memory_space<vmem>>, vector<1x8x8xbf16>,
      %133 = vector.extract_strided_slice %124 {offsets = [0, 8], sizes = [8, 8], strides = [1, 1]} : vector<8x64xbf16> to vector<8x8xbf16>
      %c1 = arith.constant 1 : index
      %c0_76 = arith.constant 0 : index
      %c0_77 = arith.constant 0 : index
      %134 = vector.load %arg20[%c1, %c0_76, %c0_77] : memref<4x8x8xbf16, #tpu.memory_space<vmem>>, vector<1x8x8xbf16>
      %135 = vector.shape_cast %134 : vector<1x8x8xbf16> to vector<8x8xbf16>
      %136 = vector.shape_cast %133 : vector<8x8xbf16> to vector<1x8x8xbf16>
      tpu.vector_store %arg20[%c1, %c0_76, %c0_77], %136 {strides = array<i32>} : memref<4x8x8xbf16, #tpu.memory_space<vmem>>, vector<1x8x8xbf16>,
      %137 = vector.extract_strided_slice %124 {offsets = [0, 40], sizes = [8, 8], strides = [1, 1]} : vector<8x64xbf16> to vector<8x8xbf16>
      %c1_78 = arith.constant 1 : index
      %c0_79 = arith.constant 0 : index
      %c0_80 = arith.constant 0 : index
      %138 = vector.load %arg21[%c1_78, %c0_79, %c0_80] : memref<4x8x8xbf16, #tpu.memory_space<vmem>>, vector<1x8x8xbf16>
      %139 = vector.shape_cast %138 : vector<1x8x8xbf16> to vector<8x8xbf16>
      %140 = vector.shape_cast %137 : vector<8x8xbf16> to vector<1x8x8xbf16>
      tpu.vector_store %arg21[%c1_78, %c0_79, %c0_80], %140 {strides = array<i32>} : memref<4x8x8xbf16, #tpu.memory_space<vmem>>, vector<1x8x8xbf16>,
      %141 = vector.extract_strided_slice %124 {offsets = [0, 16], sizes = [8, 8], strides = [1, 1]} : vector<8x64xbf16> to vector<8x8xbf16>
      %c2 = arith.constant 2 : index
      %c0_81 = arith.constant 0 : index
      %c0_82 = arith.constant 0 : index
      %142 = vector.load %arg20[%c2, %c0_81, %c0_82] : memref<4x8x8xbf16, #tpu.memory_space<vmem>>, vector<1x8x8xbf16>
      %143 = vector.shape_cast %142 : vector<1x8x8xbf16> to vector<8x8xbf16>
      %144 = vector.shape_cast %141 : vector<8x8xbf16> to vector<1x8x8xbf16>
      tpu.vector_store %arg20[%c2, %c0_81, %c0_82], %144 {strides = array<i32>} : memref<4x8x8xbf16, #tpu.memory_space<vmem>>, vector<1x8x8xbf16>,
      %145 = vector.extract_strided_slice %124 {offsets = [0, 48], sizes = [8, 8], strides = [1, 1]} : vector<8x64xbf16> to vector<8x8xbf16>
      %c2_83 = arith.constant 2 : index
      %c0_84 = arith.constant 0 : index
      %c0_85 = arith.constant 0 : index
      %146 = vector.load %arg21[%c2_83, %c0_84, %c0_85] : memref<4x8x8xbf16, #tpu.memory_space<vmem>>, vector<1x8x8xbf16>
      %147 = vector.shape_cast %146 : vector<1x8x8xbf16> to vector<8x8xbf16>
      %148 = vector.shape_cast %145 : vector<8x8xbf16> to vector<1x8x8xbf16>
      tpu.vector_store %arg21[%c2_83, %c0_84, %c0_85], %148 {strides = array<i32>} : memref<4x8x8xbf16, #tpu.memory_space<vmem>>, vector<1x8x8xbf16>,
      %149 = vector.extract_strided_slice %124 {offsets = [0, 24], sizes = [8, 8], strides = [1, 1]} : vector<8x64xbf16> to vector<8x8xbf16>
      %c3 = arith.constant 3 : index
      %c0_86 = arith.constant 0 : index
      %c0_87 = arith.constant 0 : index
      %150 = vector.load %arg20[%c3, %c0_86, %c0_87] : memref<4x8x8xbf16, #tpu.memory_space<vmem>>, vector<1x8x8xbf16>
      %151 = vector.shape_cast %150 : vector<1x8x8xbf16> to vector<8x8xbf16>
      %152 = vector.shape_cast %149 : vector<8x8xbf16> to vector<1x8x8xbf16>
      tpu.vector_store %arg20[%c3, %c0_86, %c0_87], %152 {strides = array<i32>} : memref<4x8x8xbf16, #tpu.memory_space<vmem>>, vector<1x8x8xbf16>,
      %153 = vector.extract_strided_slice %124 {offsets = [0, 56], sizes = [8, 8], strides = [1, 1]} : vector<8x64xbf16> to vector<8x8xbf16>
      %c3_88 = arith.constant 3 : index
      %c0_89 = arith.constant 0 : index
      %c0_90 = arith.constant 0 : index
      %154 = vector.load %arg21[%c3_88, %c0_89, %c0_90] : memref<4x8x8xbf16, #tpu.memory_space<vmem>>, vector<1x8x8xbf16>
      %155 = vector.shape_cast %154 : vector<1x8x8xbf16> to vector<8x8xbf16>
      %156 = vector.shape_cast %153 : vector<8x8xbf16> to vector<1x8x8xbf16>
      tpu.vector_store %arg21[%c3_88, %c0_89, %c0_90], %156 {strides = array<i32>} : memref<4x8x8xbf16, #tpu.memory_space<vmem>>, vector<1x8x8xbf16>,
    } else {
    }
    %c0 = arith.constant 0 : index
    %c0_1 = arith.constant 0 : index
    %c0_2 = arith.constant 0 : index
    %3 = vector.load %arg2[%c0, %c0_1, %c0_2] : memref<1x8x32xf32, #tpu.memory_space<vmem>>, vector<1x8x32xf32>
    %4 = vector.shape_cast %3 : vector<1x8x32xf32> to vector<8x32xf32>
    %5 = arith.truncf %4 : vector<8x32xf32> to vector<8x32xbf16>
    %c0_3 = arith.constant 0 : index
    %c0_4 = arith.constant 0 : index
    %6 = vector.load %arg4[%c0_3, %c0_4] : memref<32x32xbf16, #tpu.memory_space<vmem>>, vector<32x32xbf16>
    %cst = arith.constant dense<0.000000e+00> : vector<8x32xf32>
    %7 = tpu.matmul %5, %6, %cst {dimension_numbers = #tpu.dot_dimension_numbers<[1], [0], [0], [1], [0, 0, 1, 1], [], []>} : vector<8x32xbf16>, vector<32x32xbf16>, vector<8x32xf32> -> vector<8x32xf32>
    %c0_5 = arith.constant 0 : index
    %c0_6 = arith.constant 0 : index
    %8 = vector.load %arg5[%c0_5, %c0_6] : memref<1x32xf32, #tpu.memory_space<vmem>>, vector<1x32xf32>
    %9 = vector.broadcast %8 : vector<1x32xf32> to vector<8x32xf32>
    %10 = arith.addf %7, %9 : vector<8x32xf32>
    %cst_7 = arith.constant 0.353553385 : f32
    %11 = vector.broadcast %cst_7 : f32 to vector<8x32xf32>
    %12 = arith.mulf %10, %11 : vector<8x32xf32>
    %13 = arith.truncf %12 : vector<8x32xf32> to vector<8x32xbf16>
    %14 = vector.extract_strided_slice %13 {offsets = [0, 0], sizes = [8, 8], strides = [1, 1]} : vector<8x32xbf16> to vector<8x8xbf16>
    %15 = vector.extract_strided_slice %13 {offsets = [0, 8], sizes = [8, 8], strides = [1, 1]} : vector<8x32xbf16> to vector<8x8xbf16>
    %16 = vector.extract_strided_slice %13 {offsets = [0, 16], sizes = [8, 8], strides = [1, 1]} : vector<8x32xbf16> to vector<8x8xbf16>
    %17 = vector.extract_strided_slice %13 {offsets = [0, 24], sizes = [8, 8], strides = [1, 1]} : vector<8x32xbf16> to vector<8x8xbf16>
    %18 = vector.shape_cast %14 : vector<8x8xbf16> to vector<1x8x8xbf16>
    %19 = vector.shape_cast %15 : vector<8x8xbf16> to vector<1x8x8xbf16>
    %20 = vector.shape_cast %16 : vector<8x8xbf16> to vector<1x8x8xbf16>
    %21 = vector.shape_cast %17 : vector<8x8xbf16> to vector<1x8x8xbf16>
    %22 = tpu.concatenate %18, %19, %20, %21 in 0 : vector<1x8x8xbf16>, vector<1x8x8xbf16>, vector<1x8x8xbf16>, vector<1x8x8xbf16> -> vector<4x8x8xbf16>
    %c0_8 = arith.constant 0 : index
    %c0_9 = arith.constant 0 : index
    %c0_10 = arith.constant 0 : index
    %23 = vector.load %arg20[%c0_8, %c0_9, %c0_10] : memref<4x8x8xbf16, #tpu.memory_space<vmem>>, vector<4x8x8xbf16>
    "tpu.trace_start"() <{level = 10 : i32, message = "htd,hmd->htm"}> : () -> ()
    %cst_11 = arith.constant dense<0.000000e+00> : vector<4x8x8xf32>
    %24 = tpu.matmul %22, %23, %cst_11 {dimension_numbers = #tpu.dot_dimension_numbers<[2], [2], [1], [1], [0, 0, 0, 1, 1, 1], [0], [0]>} : vector<4x8x8xbf16>, vector<4x8x8xbf16>, vector<4x8x8xf32> -> vector<4x8x8xf32>
    "tpu.trace_stop"() : () -> ()
    %cst_12 = arith.constant dense<0xFF800000> : vector<4x8xf32>
    %25 = vector.multi_reduction <maximumf>, %24, %cst_12 [2] : vector<4x8x8xf32> to vector<4x8xf32>
    %26 = vector.shape_cast %25 : vector<4x8xf32> to vector<4x8x1xf32>
    %27 = vector.broadcast %26 : vector<4x8x1xf32> to vector<4x8x8xf32>
    %28 = arith.subf %24, %27 : vector<4x8x8xf32>
    %29 = math.exp %28 : vector<4x8x8xf32>
    %cst_13 = arith.constant dense<0.000000e+00> : vector<4x8xf32>
    %30 = vector.multi_reduction <add>, %29, %cst_13 [2] : vector<4x8x8xf32> to vector<4x8xf32>
    %31 = vector.shape_cast %30 : vector<4x8xf32> to vector<4x8x1xf32>
    %cst_14 = arith.constant 1.000000e+00 : f32
    %32 = vector.broadcast %cst_14 : f32 to vector<4x8x1xf32>
    %33 = arith.divf %32, %31 : vector<4x8x1xf32>
    %34 = vector.broadcast %33 : vector<4x8x1xf32> to vector<4x8x8xf32>
    %35 = arith.mulf %29, %34 : vector<4x8x8xf32>
    %36 = arith.truncf %35 : vector<4x8x8xf32> to vector<4x8x8xbf16>
    %c0_15 = arith.constant 0 : index
    %c0_16 = arith.constant 0 : index
    %c0_17 = arith.constant 0 : index
    %c0_18 = arith.constant 0 : index
    %37 = vector.load %arg19[%c0_15, %c0_16, %c0_17, %c0_18] : memref<1x4x8x8xbf16, #tpu.memory_space<vmem>>, vector<1x4x8x8xbf16>
    %38 = vector.shape_cast %37 : vector<1x4x8x8xbf16> to vector<4x8x8xbf16>
    %39 = vector.shape_cast %36 : vector<4x8x8xbf16> to vector<1x4x8x8xbf16>
    tpu.vector_store %arg19[%c0_15, %c0_16, %c0_17, %c0_18], %39 {strides = array<i32>} : memref<1x4x8x8xbf16, #tpu.memory_space<vmem>>, vector<1x4x8x8xbf16>,
    %c0_19 = arith.constant 0 : index
    %c0_20 = arith.constant 0 : index
    %c0_21 = arith.constant 0 : index
    %40 = vector.load %arg21[%c0_19, %c0_20, %c0_21] : memref<4x8x8xbf16, #tpu.memory_space<vmem>>, vector<4x8x8xbf16>
    "tpu.trace_start"() <{level = 10 : i32, message = "htm,hmd->htd"}> : () -> ()
    %cst_22 = arith.constant dense<0.000000e+00> : vector<4x8x8xf32>
    %41 = tpu.matmul %36, %40, %cst_22 {dimension_numbers = #tpu.dot_dimension_numbers<[2], [1], [1], [2], [0, 0, 0, 1, 1, 2], [0], [0]>} : vector<4x8x8xbf16>, vector<4x8x8xbf16>, vector<4x8x8xf32> -> vector<4x8x8xf32>
    "tpu.trace_stop"() : () -> ()
    %42 = arith.truncf %41 : vector<4x8x8xf32> to vector<4x8x8xbf16>
    %c0_23 = arith.constant 0 : index
    %c0_24 = arith.constant 0 : index
    %c0_25 = arith.constant 0 : index
    %43 = vector.load %arg8[%c0_23, %c0_24, %c0_25] : memref<4x8x32xbf16, #tpu.memory_space<vmem>>, vector<4x8x32xbf16>
    "tpu.trace_start"() <{level = 10 : i32, message = "htd,hde->hte"}> : () -> ()
    %cst_26 = arith.constant dense<0.000000e+00> : vector<4x8x32xf32>
    %44 = tpu.matmul %42, %43, %cst_26 {dimension_numbers = #tpu.dot_dimension_numbers<[2], [1], [1], [2], [0, 0, 0, 1, 1, 2], [0], [0]>} : vector<4x8x8xbf16>, vector<4x8x32xbf16>, vector<4x8x32xf32> -> vector<4x8x32xf32>
    "tpu.trace_stop"() : () -> ()
    %cst_27 = arith.constant dense<0.000000e+00> : vector<8x32xf32>
    %45 = vector.multi_reduction <add>, %44, %cst_27 [0] : vector<4x8x32xf32> to vector<8x32xf32>
    %c0_28 = arith.constant 0 : index
    %c0_29 = arith.constant 0 : index
    %46 = vector.load %arg9[%c0_28, %c0_29] : memref<1x32xf32, #tpu.memory_space<vmem>>, vector<1x32xf32>
    %47 = vector.broadcast %46 : vector<1x32xf32> to vector<8x32xf32>
    %48 = arith.addf %45, %47 : vector<8x32xf32>
    %49 = arith.addf %4, %48 : vector<8x32xf32>
    %c0_30 = arith.constant 0 : index
    %c0_31 = arith.constant 0 : index
    %50 = vector.load %arg10[%c0_30, %c0_31] : memref<1x32xf32, #tpu.memory_space<vmem>>, vector<1x32xf32>
    %c0_32 = arith.constant 0 : index
    %c0_33 = arith.constant 0 : index
    %51 = vector.load %arg11[%c0_32, %c0_33] : memref<1x32xf32, #tpu.memory_space<vmem>>, vector<1x32xf32>
    %cst_34 = arith.constant dense<0.000000e+00> : vector<8xf32>
    %52 = vector.multi_reduction <add>, %49, %cst_34 [1] : vector<8x32xf32> to vector<8xf32>
    %53 = vector.shape_cast %52 : vector<8xf32> to vector<8x1xf32>
    %cst_35 = arith.constant 3.200000e+01 : f32
    %54 = vector.broadcast %cst_35 : f32 to vector<8x1xf32>
    %55 = arith.divf %53, %54 : vector<8x1xf32>
    %56 = vector.broadcast %55 : vector<8x1xf32> to vector<8x32xf32>
    %57 = arith.subf %49, %56 : vector<8x32xf32>
    %58 = arith.mulf %57, %57 : vector<8x32xf32>
    %cst_36 = arith.constant dense<0.000000e+00> : vector<8xf32>
    %59 = vector.multi_reduction <add>, %58, %cst_36 [1] : vector<8x32xf32> to vector<8xf32>
    %60 = vector.shape_cast %59 : vector<8xf32> to vector<8x1xf32>
    %cst_37 = arith.constant 3.200000e+01 : f32
    %61 = vector.broadcast %cst_37 : f32 to vector<8x1xf32>
    %62 = arith.divf %60, %61 : vector<8x1xf32>
    %63 = vector.broadcast %55 : vector<8x1xf32> to vector<8x32xf32>
    %64 = arith.subf %49, %63 : vector<8x32xf32>
    %cst_38 = arith.constant 9.99999974E-6 : f32
    %65 = vector.broadcast %cst_38 : f32 to vector<8x1xf32>
    %66 = arith.addf %62, %65 : vector<8x1xf32>
    %67 = math.rsqrt %66 : vector<8x1xf32>
    %68 = vector.broadcast %67 : vector<8x1xf32> to vector<8x32xf32>
    %69 = arith.mulf %64, %68 : vector<8x32xf32>
    %70 = vector.broadcast %50 : vector<1x32xf32> to vector<8x32xf32>
    %71 = arith.mulf %69, %70 : vector<8x32xf32>
    %72 = vector.broadcast %51 : vector<1x32xf32> to vector<8x32xf32>
    %73 = arith.addf %71, %72 : vector<8x32xf32>
    %74 = arith.truncf %73 : vector<8x32xf32> to vector<8x32xbf16>
    %c0_39 = arith.constant 0 : index
    %c0_40 = arith.constant 0 : index
    %75 = vector.load %arg12[%c0_39, %c0_40] : memref<32x128xbf16, #tpu.memory_space<vmem>>, vector<32x128xbf16>
    %cst_41 = arith.constant dense<0.000000e+00> : vector<8x128xf32>
    %76 = tpu.matmul %74, %75, %cst_41 {dimension_numbers = #tpu.dot_dimension_numbers<[1], [0], [0], [1], [0, 0, 1, 1], [], []>} : vector<8x32xbf16>, vector<32x128xbf16>, vector<8x128xf32> -> vector<8x128xf32>
    %c0_42 = arith.constant 0 : index
    %c0_43 = arith.constant 0 : index
    %77 = vector.load %arg13[%c0_42, %c0_43] : memref<1x128xf32, #tpu.memory_space<vmem>>, vector<1x128xf32>
    %78 = vector.broadcast %77 : vector<1x128xf32> to vector<8x128xf32>
    %79 = arith.addf %76, %78 : vector<8x128xf32>
    %cst_44 = arith.constant 0.000000e+00 : f32
    %80 = vector.broadcast %cst_44 : f32 to vector<8x128xf32>
    %81 = arith.maximumf %79, %80 : vector<8x128xf32>
    %82 = arith.truncf %81 : vector<8x128xf32> to vector<8x128xbf16>
    %c0_45 = arith.constant 0 : index
    %c0_46 = arith.constant 0 : index
    %83 = vector.load %arg14[%c0_45, %c0_46] : memref<128x32xbf16, #tpu.memory_space<vmem>>, vector<128x32xbf16>
    %cst_47 = arith.constant dense<0.000000e+00> : vector<8x32xf32>
    %84 = tpu.matmul %82, %83, %cst_47 {dimension_numbers = #tpu.dot_dimension_numbers<[1], [0], [0], [1], [0, 0, 1, 1], [], []>} : vector<8x128xbf16>, vector<128x32xbf16>, vector<8x32xf32> -> vector<8x32xf32>
    %c0_48 = arith.constant 0 : index
    %c0_49 = arith.constant 0 : index
    %85 = vector.load %arg15[%c0_48, %c0_49] : memref<1x32xf32, #tpu.memory_space<vmem>>, vector<1x32xf32>
    %86 = vector.broadcast %85 : vector<1x32xf32> to vector<8x32xf32>
    %87 = arith.addf %84, %86 : vector<8x32xf32>
    %88 = arith.addf %49, %87 : vector<8x32xf32>
    %c0_50 = arith.constant 0 : index
    %c0_51 = arith.constant 0 : index
    %89 = vector.load %arg16[%c0_50, %c0_51] : memref<1x32xf32, #tpu.memory_space<vmem>>, vector<1x32xf32>
    %c0_52 = arith.constant 0 : index
    %c0_53 = arith.constant 0 : index
    %90 = vector.load %arg17[%c0_52, %c0_53] : memref<1x32xf32, #tpu.memory_space<vmem>>, vector<1x32xf32>
    %cst_54 = arith.constant dense<0.000000e+00> : vector<8xf32>
    %91 = vector.multi_reduction <add>, %88, %cst_54 [1] : vector<8x32xf32> to vector<8xf32>
    %92 = vector.shape_cast %91 : vector<8xf32> to vector<8x1xf32>
    %cst_55 = arith.constant 3.200000e+01 : f32
    %93 = vector.broadcast %cst_55 : f32 to vector<8x1xf32>
    %94 = arith.divf %92, %93 : vector<8x1xf32>
    %95 = vector.broadcast %94 : vector<8x1xf32> to vector<8x32xf32>
    %96 = arith.subf %88, %95 : vector<8x32xf32>
    %97 = arith.mulf %96, %96 : vector<8x32xf32>
    %cst_56 = arith.constant dense<0.000000e+00> : vector<8xf32>
    %98 = vector.multi_reduction <add>, %97, %cst_56 [1] : vector<8x32xf32> to vector<8xf32>
    %99 = vector.shape_cast %98 : vector<8xf32> to vector<8x1xf32>
    %cst_57 = arith.constant 3.200000e+01 : f32
    %100 = vector.broadcast %cst_57 : f32 to vector<8x1xf32>
    %101 = arith.divf %99, %100 : vector<8x1xf32>
    %102 = vector.broadcast %94 : vector<8x1xf32> to vector<8x32xf32>
    %103 = arith.subf %88, %102 : vector<8x32xf32>
    %cst_58 = arith.constant 9.99999974E-6 : f32
    %104 = vector.broadcast %cst_58 : f32 to vector<8x1xf32>
    %105 = arith.addf %101, %104 : vector<8x1xf32>
    %106 = math.rsqrt %105 : vector<8x1xf32>
    %107 = vector.broadcast %106 : vector<8x1xf32> to vector<8x32xf32>
    %108 = arith.mulf %103, %107 : vector<8x32xf32>
    %109 = vector.broadcast %89 : vector<1x32xf32> to vector<8x32xf32>
    %110 = arith.mulf %108, %109 : vector<8x32xf32>
    %111 = vector.broadcast %90 : vector<1x32xf32> to vector<8x32xf32>
    %112 = arith.addf %110, %111 : vector<8x32xf32>
    %c0_59 = arith.constant 0 : index
    %c0_60 = arith.constant 0 : index
    %c0_61 = arith.constant 0 : index
    %113 = vector.load %arg18[%c0_59, %c0_60, %c0_61] : memref<1x8x32xf32, #tpu.memory_space<vmem>>, vector<1x8x32xf32>
    %114 = vector.shape_cast %113 : vector<1x8x32xf32> to vector<8x32xf32>
    %115 = vector.shape_cast %112 : vector<8x32xf32> to vector<1x8x32xf32>
    tpu.vector_store %arg18[%c0_59, %c0_60, %c0_61], %115 {strides = array<i32>} : memref<1x8x32xf32, #tpu.memory_space<vmem>>, vector<1x8x32xf32>,
    return
  }
  func.func @transform_0(%arg0: i32, %arg1: i32) -> (i32, i32, i32) {
    %c0_i32 = arith.constant 0 : i32
    %c0_i32_0 = arith.constant 0 : i32
    return %arg0, %arg1, %c0_i32 : i32, i32, i32
  }
  func.func @transform_1(%arg0: i32, %arg1: i32) -> (i32, i32, i32) {
    %c0_i32 = arith.constant 0 : i32
    %c0_i32_0 = arith.constant 0 : i32
    %c0_i32_1 = arith.constant 0 : i32
    return %arg0, %c0_i32, %c0_i32_0 : i32, i32, i32
  }
  func.func @transform_2(%arg0: i32, %arg1: i32) -> (i32, i32) {
    %c0_i32 = arith.constant 0 : i32
    %c0_i32_0 = arith.constant 0 : i32
    %c0_i32_1 = arith.constant 0 : i32
    return %c0_i32, %c0_i32_0 : i32, i32
  }
  func.func @transform_3(%arg0: i32, %arg1: i32) -> (i32, i32) {
    %c0_i32 = arith.constant 0 : i32
    %c0_i32_0 = arith.constant 0 : i32
    %c0_i32_1 = arith.constant 0 : i32
    return %c0_i32, %c0_i32_0 : i32, i32
  }
  func.func @transform_4(%arg0: i32, %arg1: i32) -> (i32, i32) {
    %c0_i32 = arith.constant 0 : i32
    %c0_i32_0 = arith.constant 0 : i32
    %c0_i32_1 = arith.constant 0 : i32
    return %c0_i32, %c0_i32_0 : i32, i32
  }
  func.func @transform_5(%arg0: i32, %arg1: i32) -> (i32, i32) {
    %c0_i32 = arith.constant 0 : i32
    %c0_i32_0 = arith.constant 0 : i32
    %c0_i32_1 = arith.constant 0 : i32
    return %c0_i32, %c0_i32_0 : i32, i32
  }
  func.func @transform_6(%arg0: i32, %arg1: i32) -> (i32, i32, i32) {
    %c0_i32 = arith.constant 0 : i32
    %c0_i32_0 = arith.constant 0 : i32
    %c0_i32_1 = arith.constant 0 : i32
    %c0_i32_2 = arith.constant 0 : i32
    return %c0_i32, %c0_i32_0, %c0_i32_1 : i32, i32, i32
  }
  func.func @transform_7(%arg0: i32, %arg1: i32) -> (i32, i32) {
    %c0_i32 = arith.constant 0 : i32
    %c0_i32_0 = arith.constant 0 : i32
    %c0_i32_1 = arith.constant 0 : i32
    return %c0_i32, %c0_i32_0 : i32, i32
  }
  func.func @transform_8(%arg0: i32, %arg1: i32) -> (i32, i32) {
    %c0_i32 = arith.constant 0 : i32
    %c0_i32_0 = arith.constant 0 : i32
    %c0_i32_1 = arith.constant 0 : i32
    return %c0_i32, %c0_i32_0 : i32, i32
  }
  func.func @transform_9(%arg0: i32, %arg1: i32) -> (i32, i32) {
    %c0_i32 = arith.constant 0 : i32
    %c0_i32_0 = arith.constant 0 : i32
    %c0_i32_1 = arith.constant 0 : i32
    return %c0_i32, %c0_i32_0 : i32, i32
  }
  func.func @transform_10(%arg0: i32, %arg1: i32) -> (i32, i32) {
    %c0_i32 = arith.constant 0 : i32
    %c0_i32_0 = arith.constant 0 : i32
    %c0_i32_1 = arith.constant 0 : i32
    return %c0_i32, %c0_i32_0 : i32, i32
  }
  func.func @transform_11(%arg0: i32, %arg1: i32) -> (i32, i32) {
    %c0_i32 = arith.constant 0 : i32
    %c0_i32_0 = arith.constant 0 : i32
    %c0_i32_1 = arith.constant 0 : i32
    return %c0_i32, %c0_i32_0 : i32, i32
  }
  func.func @transform_12(%arg0: i32, %arg1: i32) -> (i32, i32) {
    %c0_i32 = arith.constant 0 : i32
    %c0_i32_0 = arith.constant 0 : i32
    %c0_i32_1 = arith.constant 0 : i32
    return %c0_i32, %c0_i32_0 : i32, i32
  }
  func.func @transform_13(%arg0: i32, %arg1: i32) -> (i32, i32) {
    %c0_i32 = arith.constant 0 : i32
    %c0_i32_0 = arith.constant 0 : i32
    %c0_i32_1 = arith.constant 0 : i32
    return %c0_i32, %c0_i32_0 : i32, i32
  }
  func.func @transform_14(%arg0: i32, %arg1: i32) -> (i32, i32) {
    %c0_i32 = arith.constant 0 : i32
    %c0_i32_0 = arith.constant 0 : i32
    %c0_i32_1 = arith.constant 0 : i32
    return %c0_i32, %c0_i32_0 : i32, i32
  }
  func.func @transform_15(%arg0: i32, %arg1: i32) -> (i32, i32) {
    %c0_i32 = arith.constant 0 : i32
    %c0_i32_0 = arith.constant 0 : i32
    %c0_i32_1 = arith.constant 0 : i32
    return %c0_i32, %c0_i32_0 : i32, i32
  }
  func.func @transform_16(%arg0: i32, %arg1: i32) -> (i32, i32, i32) {
    %c0_i32 = arith.constant 0 : i32
    %c0_i32_0 = arith.constant 0 : i32
    return %arg0, %arg1, %c0_i32 : i32, i32, i32
  }
  func.func @transform_17(%arg0: i32, %arg1: i32) -> (i32, i32, i32, i32) {
    %c0_i32 = arith.constant 0 : i32
    %c0_i32_0 = arith.constant 0 : i32
    %c0_i32_1 = arith.constant 0 : i32
    return %arg0, %c0_i32, %arg1, %c0_i32_0 : i32, i32, i32, i32
  }
}

</mosaic_0001>

<llo_original>
// kernel: tpu_custom_call.1
$region0: #{tpu_custom_call.1}
  #allocation0 [shape = 'u32[]', space=smem, size = 0x4, offset = 0x4, fixed_abs, tag = 'smem constant byte address 0x4 - core index']
  #allocation1 [shape = 'u32[144,128]{1,0:T(1,128)}', space=vmem, size = 0x12000, scoped, tag = 'internal scratch']
  #allocation2 [shape = 'bf16[4,8,8]{2,1,0:T(8,128)(2,1)}', space=vmem, size = 0x2000, scoped, tag = 'scratch operand']
  #allocation3 [shape = 'bf16[4,8,8]{2,1,0:T(8,128)(2,1)}', space=vmem, size = 0x2000, scoped, tag = 'scratch operand']
  %s0 = inlined_call_operand.vmem [shape: f32[2,8,32], index: 0, kind: input, shape index: {}]
  %s1 = inlined_call_operand.vmem [shape: f32[2,8,32], index: 1, kind: input, shape index: {}]
  %s2 = inlined_call_operand.vmem [shape: bf16[32,32], index: 2, kind: input, shape index: {}]
  %s3 = inlined_call_operand.vmem [shape: f32[1,32], index: 3, kind: input, shape index: {}]
  %s4 = inlined_call_operand.vmem [shape: bf16[32,64], index: 4, kind: input, shape index: {}]
  %s5 = inlined_call_operand.vmem [shape: f32[1,64], index: 5, kind: input, shape index: {}]
  %s6 = inlined_call_operand.vmem [shape: bf16[4,8,32], index: 6, kind: input, shape index: {}]
  %s7 = inlined_call_operand.hbm [shape: f32[1,32], index: 7, kind: input, shape index: {}]
  %s8 = inlined_call_operand.hbm [shape: f32[1,32], index: 8, kind: input, shape index: {}]
  %s9 = inlined_call_operand.hbm [shape: f32[1,32], index: 9, kind: input, shape index: {}]
  %s10 = inlined_call_operand.vmem [shape: bf16[32,128], index: 10, kind: input, shape index: {}]
  %s11 = inlined_call_operand.vmem [shape: f32[1,128], index: 11, kind: input, shape index: {}]
  %s12 = inlined_call_operand.vmem [shape: bf16[128,32], index: 12, kind: input, shape index: {}]
  %s13 = inlined_call_operand.vmem [shape: f32[1,32], index: 13, kind: input, shape index: {}]
  %s14 = inlined_call_operand.vmem [shape: f32[1,32], index: 14, kind: input, shape index: {}]
  %s15 = inlined_call_operand.vmem [shape: f32[1,32], index: 15, kind: input, shape index: {}]
  %s16 = inlined_call_operand.hbm [shape: f32[2,8,32], index: 16, kind: output, shape index: {0}]
  %s17 = inlined_call_operand.hbm [shape: bf16[2,4,8,8], index: 17, kind: output, shape index: {1}]
  %18 = xla_tuple %s16, %s17
  %s19 = sld [smem:[#allocation0]]
  $region121: #{tpu_custom_call.1} parent=0
    _
  %s21 = ssub.s32 1, %s19
  %s22 = scalar_select 0, %s21, %s19
  $region1: #{tpu_custom_call.1} parent=0
    #allocation4 [shape = 'u8[512]{0}', space=vmem, size = 0x400, scoped, tag = 'input window, operand 7, single buffered']
    #allocation5 [shape = 's32[2]{0}', space=sflag, size = 0x8, scoped, tag = 'scoped memory for tpu_custom_call.1']
    #allocation6 [shape = 's32[2]{0}', space=sflag, size = 0x8, scoped, tag = 'scoped memory for tpu_custom_call.1']
    #allocation7 [shape = 'u8[512]{0}', space=vmem, size = 0x400, scoped, tag = 'input window, operand 8, single buffered']
    #allocation8 [shape = 's32[1]{0}', space=sflag, size = 0x4, scoped, tag = 'scoped memory for tpu_custom_call.1']
    #allocation9 [shape = 'u8[512]{0}', space=vmem, size = 0x400, scoped, tag = 'input window, operand 9, single buffered']
    #allocation10 [shape = 'u8[8192]{0}', space=vmem, size = 0x2000, scoped, tag = 'output window, operand 0']
    #allocation11 [shape = 'u8[16384]{0}', space=vmem, size = 0x4000, scoped, tag = 'output window, operand 1']
    #allocation12 [shape = 's32[2]{0}', space=sflag, size = 0x8, scoped, tag = 'scoped memory for tpu_custom_call.1']
    %23 = vsyncpa [#allocation5], 0
    %24 = vsyncpa [#allocation8], 0
    %25 = vsyncpa [#allocation6], 0
    %s26 = scalar_lea.sflag [#allocation6], 1
    %27 = vsyncpa %s26, 0
    %28 = vsyncpa [#allocation12], 0
    %s29 = scalar_lea.sflag [#allocation12], 1
    %30 = vsyncpa %s29, 0
    loop: start=0, step=1, limit=4
    $region2: #{tpu_custom_call.1} parent=1 // loop_pre_header
      _
    $region3: #{tpu_custom_call.1} parent=1 // loop_header
      %s32 = sphi 0, %s36
      %p33 = scmp.ge.s32.totalorder %s32, 4
      %s39 = sphi 0, %s51
      %s40 = sphi 0, %s47
      %s41 = sphi 0, %s39
      %s42 = sphi 0, %s40
      %s43 = sphi 0, %s41
      %s44 = sphi 0, %s42
      %s56 = sphi 0, %s58
      %s59 = sphi 0, %s56
      %s60 = sphi 0, %s59
      %s76 = sphi 0, %s60
      %s82 = sphi 0, %s84
      %s85 = sphi 0, %s82
      %s86 = sphi 0, %s85
      %s102 = sphi 0, %s86
      %s106 = sphi 0, %s106
      %s108 = sphi 0, %s106
      %s109 = sphi 0, %s108
      %s123 = sphi 0, %s109
      %s127 = sphi 0, %s127
      %s129 = sphi 0, %s127
      %s130 = sphi 0, %s129
      %s144 = sphi 0, %s130
      %s148 = sphi 0, %s148
      %s150 = sphi 0, %s148
      %s151 = sphi 0, %s150
      %s165 = sphi 0, %s151
      %s169 = sphi 0, %s169
      %s171 = sphi 0, %s169
      %s172 = sphi 0, %s171
      %s186 = sphi 0, %s172
      %s190 = sphi 0, %s190
      %s192 = sphi 0, %s190
      %s193 = sphi 0, %s192
      %s207 = sphi 0, %s193
      %s211 = sphi 0, %s211
      %s213 = sphi 0, %s211
      %s214 = sphi 0, %s213
      %s228 = sphi 0, %s214
      %s232 = sphi 0, %s232
      %s234 = sphi 0, %s232
      %s235 = sphi 0, %s234
      %s249 = sphi 0, %s235
      %s253 = sphi 0, %s253
      %s255 = sphi 0, %s253
      %s256 = sphi 0, %s255
      %s270 = sphi 0, %s256
      %s274 = sphi 0, %s274
      %s276 = sphi 0, %s274
      %s277 = sphi 0, %s276
      %s291 = sphi 0, %s277
      %s295 = sphi 0, %s295
      %s297 = sphi 0, %s295
      %s298 = sphi 0, %s297
      %s312 = sphi 0, %s298
      %s316 = sphi 0, %s316
      %s318 = sphi 0, %s316
      %s319 = sphi 0, %s318
      %s333 = sphi 0, %s319
      %s337 = sphi 0, %s337
      %s339 = sphi 0, %s337
      %s340 = sphi 0, %s339
      %s354 = sphi 0, %s340
      %s358 = sphi 0, %s358
      %s360 = sphi 0, %s358
      %s361 = sphi 0, %s360
      %s375 = sphi 0, %s361
      %s379 = sphi 0, %s379
      %s381 = sphi 0, %s379
      %s382 = sphi 0, %s381
      %s396 = sphi 0, %s382
      %s404 = sphi 0, %s406
      %s407 = sphi 0, %s404
      %s408 = sphi 0, %s407
      %s424 = sphi 0, %s408
      %s432 = sphi 0, %s434
      %s435 = sphi 0, %s432
      %s436 = sphi 0, %s435
      %s452 = sphi 0, %s436
    $region4: #{tpu_custom_call.1} parent=1 // loop_header_branch
      %35 = sbr.rel (%p33) target = $region8
    $region5: #{tpu_custom_call.1} parent=1 // loop_body
      %s37 = ssub.s32 %s32, 1
      %s38 = ssub.s32 %s32, 2
      %s45 = sadd.s32 1, %s40
      %p46 = scmp.ge.s32.totalorder %s45, 1
      %s47 = scalar_select %p46, 0, %s45
      %s48 = sadd.s32 1, %s39
      %s49 = scalar_select %p46, %s48, %s39
      %p50 = scmp.ge.s32.totalorder %s49, 2
      %s51 = scalar_select %p50, 0, %s49
      %s52 = ssub.s32 %s39, %s51
      %s53 = ssub.s32 %s40, %s47
      %s54 = sor.u32 %s52, %s53
      %p55 = scmp.eq.s32.totalorder %s54, 0
      %s57 = sadd.s32 %s56, 1
      %s58 = scalar_select %p55, %s56, %s57
      %p61 = pneg %p55
      %p62 = scmp.eq.s32.totalorder %s32, 1
      %p63 = por %p61, %p62
      %p64 = scmp.ne.s32.totalorder %s56, %s59
      %p65 = scmp.eq.s32.totalorder %s32, 0
      %p66 = por %p64, %p65
      %p67 = scmp.ne.s32.totalorder %s56, %s59
      %p68 = scmp.eq.s32.totalorder %s37, 1
      %p69 = por %p67, %p68
      %p70 = scmp.ne.s32.totalorder %s59, %s60
      %p71 = scmp.eq.s32.totalorder %s37, 0
      %p72 = por %p70, %p71
      %p73 = scmp.ne.s32.totalorder %s59, %s60
      %p74 = scmp.eq.s32.totalorder %s38, 1
      %p75 = por %p73, %p74
      %p77 = scmp.ne.s32.totalorder %s60, %s76
      %p78 = scmp.eq.s32.totalorder %s38, 0
      %p79 = por %p77, %p78
      %s80 = ssub.s32 %s39, %s51
      %p81 = scmp.eq.s32.totalorder %s80, 0
      %s83 = sadd.s32 %s82, 1
      %s84 = scalar_select %p81, %s82, %s83
      %p87 = pneg %p81
      %p88 = scmp.eq.s32.totalorder %s32, 1
      %p89 = por %p87, %p88
      %p90 = scmp.ne.s32.totalorder %s82, %s85
      %p91 = scmp.eq.s32.totalorder %s32, 0
      %p92 = por %p90, %p91
      %p93 = scmp.ne.s32.totalorder %s82, %s85
      %p94 = scmp.eq.s32.totalorder %s37, 1
      %p95 = por %p93, %p94
      %p96 = scmp.ne.s32.totalorder %s85, %s86
      %p97 = scmp.eq.s32.totalorder %s37, 0
      %p98 = por %p96, %p97
      %p99 = scmp.ne.s32.totalorder %s85, %s86
      %p100 = scmp.eq.s32.totalorder %s38, 1
      %p101 = por %p99, %p100
      %p103 = scmp.ne.s32.totalorder %s86, %s102
      %p104 = scmp.eq.s32.totalorder %s38, 0
      %p105 = por %p103, %p104
      %s107 = sadd.s32 %s106, 1
      %p110 = scmp.eq.s32.totalorder %s32, 1
      %p111 = scmp.ne.s32.totalorder %s106, %s108
      %p112 = scmp.eq.s32.totalorder %s32, 0
      %p113 = por %p111, %p112
      %p114 = scmp.ne.s32.totalorder %s106, %s108
      %p115 = scmp.eq.s32.totalorder %s37, 1
      %p116 = por %p114, %p115
      %p117 = scmp.ne.s32.totalorder %s108, %s109
      %p118 = scmp.eq.s32.totalorder %s37, 0
      %p119 = por %p117, %p118
      %p120 = scmp.ne.s32.totalorder %s108, %s109
      %p121 = scmp.eq.s32.totalorder %s38, 1
      %p122 = por %p120, %p121
      %p124 = scmp.ne.s32.totalorder %s109, %s123
      %p125 = scmp.eq.s32.totalorder %s38, 0
      %p126 = por %p124, %p125
      %s128 = sadd.s32 %s127, 1
      %p131 = scmp.eq.s32.totalorder %s32, 1
      %p132 = scmp.ne.s32.totalorder %s127, %s129
      %p133 = scmp.eq.s32.totalorder %s32, 0
      %p134 = por %p132, %p133
      %p135 = scmp.ne.s32.totalorder %s127, %s129
      %p136 = scmp.eq.s32.totalorder %s37, 1
      %p137 = por %p135, %p136
      %p138 = scmp.ne.s32.totalorder %s129, %s130
      %p139 = scmp.eq.s32.totalorder %s37, 0
      %p140 = por %p138, %p139
      %p141 = scmp.ne.s32.totalorder %s129, %s130
      %p142 = scmp.eq.s32.totalorder %s38, 1
      %p143 = por %p141, %p142
      %p145 = scmp.ne.s32.totalorder %s130, %s144
      %p146 = scmp.eq.s32.totalorder %s38, 0
      %p147 = por %p145, %p146
      %s149 = sadd.s32 %s148, 1
      %p152 = scmp.eq.s32.totalorder %s32, 1
      %p153 = scmp.ne.s32.totalorder %s148, %s150
      %p154 = scmp.eq.s32.totalorder %s32, 0
      %p155 = por %p153, %p154
      %p156 = scmp.ne.s32.totalorder %s148, %s150
      %p157 = scmp.eq.s32.totalorder %s37, 1
      %p158 = por %p156, %p157
      %p159 = scmp.ne.s32.totalorder %s150, %s151
      %p160 = scmp.eq.s32.totalorder %s37, 0
      %p161 = por %p159, %p160
      %p162 = scmp.ne.s32.totalorder %s150, %s151
      %p163 = scmp.eq.s32.totalorder %s38, 1
      %p164 = por %p162, %p163
      %p166 = scmp.ne.s32.totalorder %s151, %s165
      %p167 = scmp.eq.s32.totalorder %s38, 0
      %p168 = por %p166, %p167
      %s170 = sadd.s32 %s169, 1
      %p173 = scmp.eq.s32.totalorder %s32, 1
      %p174 = scmp.ne.s32.totalorder %s169, %s171
      %p175 = scmp.eq.s32.totalorder %s32, 0
      %p176 = por %p174, %p175
      %p177 = scmp.ne.s32.totalorder %s169, %s171
      %p178 = scmp.eq.s32.totalorder %s37, 1
      %p179 = por %p177, %p178
      %p180 = scmp.ne.s32.totalorder %s171, %s172
      %p181 = scmp.eq.s32.totalorder %s37, 0
      %p182 = por %p180, %p181
      %p183 = scmp.ne.s32.totalorder %s171, %s172
      %p184 = scmp.eq.s32.totalorder %s38, 1
      %p185 = por %p183, %p184
      %p187 = scmp.ne.s32.totalorder %s172, %s186
      %p188 = scmp.eq.s32.totalorder %s38, 0
      %p189 = por %p187, %p188
      %s191 = sadd.s32 %s190, 1
      %p194 = scmp.eq.s32.totalorder %s32, 1
      %p195 = scmp.ne.s32.totalorder %s190, %s192
      %p196 = scmp.eq.s32.totalorder %s32, 0
      %p197 = por %p195, %p196
      %p198 = scmp.ne.s32.totalorder %s190, %s192
      %p199 = scmp.eq.s32.totalorder %s37, 1
      %p200 = por %p198, %p199
      %p201 = scmp.ne.s32.totalorder %s192, %s193
      %p202 = scmp.eq.s32.totalorder %s37, 0
      %p203 = por %p201, %p202
      %p204 = scmp.ne.s32.totalorder %s192, %s193
      %p205 = scmp.eq.s32.totalorder %s38, 1
      %p206 = por %p204, %p205
      %p208 = scmp.ne.s32.totalorder %s193, %s207
      %p209 = scmp.eq.s32.totalorder %s38, 0
      %p210 = por %p208, %p209
      %s212 = sadd.s32 %s211, 1
      %p215 = scmp.eq.s32.totalorder %s32, 1
      %p216 = scmp.ne.s32.totalorder %s211, %s213
      %p217 = scmp.eq.s32.totalorder %s32, 0
      %p218 = por %p216, %p217
      %p219 = scmp.ne.s32.totalorder %s211, %s213
      %p220 = scmp.eq.s32.totalorder %s37, 1
      %p221 = por %p219, %p220
      %p222 = scmp.ne.s32.totalorder %s213, %s214
      %p223 = scmp.eq.s32.totalorder %s37, 0
      %p224 = por %p222, %p223
      %p225 = scmp.ne.s32.totalorder %s213, %s214
      %p226 = scmp.eq.s32.totalorder %s38, 1
      %p227 = por %p225, %p226
      %p229 = scmp.ne.s32.totalorder %s214, %s228
      %p230 = scmp.eq.s32.totalorder %s38, 0
      %p231 = por %p229, %p230
      %s233 = sadd.s32 %s232, 1
      %p236 = scmp.eq.s32.totalorder %s32, 1
      %p237 = scmp.ne.s32.totalorder %s232, %s234
      %p238 = scmp.eq.s32.totalorder %s32, 0
      %p239 = por %p237, %p238
      %p240 = scmp.ne.s32.totalorder %s232, %s234
      %p241 = scmp.eq.s32.totalorder %s37, 1
      %p242 = por %p240, %p241
      %p243 = scmp.ne.s32.totalorder %s234, %s235
      %p244 = scmp.eq.s32.totalorder %s37, 0
      %p245 = por %p243, %p244
      %p246 = scmp.ne.s32.totalorder %s234, %s235
      %p247 = scmp.eq.s32.totalorder %s38, 1
      %p248 = por %p246, %p247
      %p250 = scmp.ne.s32.totalorder %s235, %s249
      %p251 = scmp.eq.s32.totalorder %s38, 0
      %p252 = por %p250, %p251
      %s254 = sadd.s32 %s253, 1
      %p257 = scmp.eq.s32.totalorder %s32, 1
      %p258 = scmp.ne.s32.totalorder %s253, %s255
      %p259 = scmp.eq.s32.totalorder %s32, 0
      %p260 = por %p258, %p259
      %p261 = scmp.ne.s32.totalorder %s253, %s255
      %p262 = scmp.eq.s32.totalorder %s37, 1
      %p263 = por %p261, %p262
      %p264 = scmp.ne.s32.totalorder %s255, %s256
      %p265 = scmp.eq.s32.totalorder %s37, 0
      %p266 = por %p264, %p265
      %p267 = scmp.ne.s32.totalorder %s255, %s256
      %p268 = scmp.eq.s32.totalorder %s38, 1
      %p269 = por %p267, %p268
      %p271 = scmp.ne.s32.totalorder %s256, %s270
      %p272 = scmp.eq.s32.totalorder %s38, 0
      %p273 = por %p271, %p272
      %s275 = sadd.s32 %s274, 1
      %p278 = scmp.eq.s32.totalorder %s32, 1
      %p279 = scmp.ne.s32.totalorder %s274, %s276
      %p280 = scmp.eq.s32.totalorder %s32, 0
      %p281 = por %p279, %p280
      %p282 = scmp.ne.s32.totalorder %s274, %s276
      %p283 = scmp.eq.s32.totalorder %s37, 1
      %p284 = por %p282, %p283
      %p285 = scmp.ne.s32.totalorder %s276, %s277
      %p286 = scmp.eq.s32.totalorder %s37, 0
      %p287 = por %p285, %p286
      %p288 = scmp.ne.s32.totalorder %s276, %s277
      %p289 = scmp.eq.s32.totalorder %s38, 1
      %p290 = por %p288, %p289
      %p292 = scmp.ne.s32.totalorder %s277, %s291
      %p293 = scmp.eq.s32.totalorder %s38, 0
      %p294 = por %p292, %p293
      %s296 = sadd.s32 %s295, 1
      %p299 = scmp.eq.s32.totalorder %s32, 1
      %p300 = scmp.ne.s32.totalorder %s295, %s297
      %p301 = scmp.eq.s32.totalorder %s32, 0
      %p302 = por %p300, %p301
      %p303 = scmp.ne.s32.totalorder %s295, %s297
      %p304 = scmp.eq.s32.totalorder %s37, 1
      %p305 = por %p303, %p304
      %p306 = scmp.ne.s32.totalorder %s297, %s298
      %p307 = scmp.eq.s32.totalorder %s37, 0
      %p308 = por %p306, %p307
      %p309 = scmp.ne.s32.totalorder %s297, %s298
      %p310 = scmp.eq.s32.totalorder %s38, 1
      %p311 = por %p309, %p310
      %p313 = scmp.ne.s32.totalorder %s298, %s312
      %p314 = scmp.eq.s32.totalorder %s38, 0
      %p315 = por %p313, %p314
      %s317 = sadd.s32 %s316, 1
      %p320 = scmp.eq.s32.totalorder %s32, 1
      %p321 = scmp.ne.s32.totalorder %s316, %s318
      %p322 = scmp.eq.s32.totalorder %s32, 0
      %p323 = por %p321, %p322
      %p324 = scmp.ne.s32.totalorder %s316, %s318
      %p325 = scmp.eq.s32.totalorder %s37, 1
      %p326 = por %p324, %p325
      %p327 = scmp.ne.s32.totalorder %s318, %s319
      %p328 = scmp.eq.s32.totalorder %s37, 0
      %p329 = por %p327, %p328
      %p330 = scmp.ne.s32.totalorder %s318, %s319
      %p331 = scmp.eq.s32.totalorder %s38, 1
      %p332 = por %p330, %p331
      %p334 = scmp.ne.s32.totalorder %s319, %s333
      %p335 = scmp.eq.s32.totalorder %s38, 0
      %p336 = por %p334, %p335
      %s338 = sadd.s32 %s337, 1
      %p341 = scmp.eq.s32.totalorder %s32, 1
      %p342 = scmp.ne.s32.totalorder %s337, %s339
      %p343 = scmp.eq.s32.totalorder %s32, 0
      %p344 = por %p342, %p343
      %p345 = scmp.ne.s32.totalorder %s337, %s339
      %p346 = scmp.eq.s32.totalorder %s37, 1
      %p347 = por %p345, %p346
      %p348 = scmp.ne.s32.totalorder %s339, %s340
      %p349 = scmp.eq.s32.totalorder %s37, 0
      %p350 = por %p348, %p349
      %p351 = scmp.ne.s32.totalorder %s339, %s340
      %p352 = scmp.eq.s32.totalorder %s38, 1
      %p353 = por %p351, %p352
      %p355 = scmp.ne.s32.totalorder %s340, %s354
      %p356 = scmp.eq.s32.totalorder %s38, 0
      %p357 = por %p355, %p356
      %s359 = sadd.s32 %s358, 1
      %p362 = scmp.eq.s32.totalorder %s32, 1
      %p363 = scmp.ne.s32.totalorder %s358, %s360
      %p364 = scmp.eq.s32.totalorder %s32, 0
      %p365 = por %p363, %p364
      %p366 = scmp.ne.s32.totalorder %s358, %s360
      %p367 = scmp.eq.s32.totalorder %s37, 1
      %p368 = por %p366, %p367
      %p369 = scmp.ne.s32.totalorder %s360, %s361
      %p370 = scmp.eq.s32.totalorder %s37, 0
      %p371 = por %p369, %p370
      %p372 = scmp.ne.s32.totalorder %s360, %s361
      %p373 = scmp.eq.s32.totalorder %s38, 1
      %p374 = por %p372, %p373
      %p376 = scmp.ne.s32.totalorder %s361, %s375
      %p377 = scmp.eq.s32.totalorder %s38, 0
      %p378 = por %p376, %p377
      %s380 = sadd.s32 %s379, 1
      %p383 = scmp.eq.s32.totalorder %s32, 1
      %p384 = scmp.ne.s32.totalorder %s379, %s381
      %p385 = scmp.eq.s32.totalorder %s32, 0
      %p386 = por %p384, %p385
      %p387 = scmp.ne.s32.totalorder %s379, %s381
      %p388 = scmp.eq.s32.totalorder %s37, 1
      %p389 = por %p387, %p388
      %p390 = scmp.ne.s32.totalorder %s381, %s382
      %p391 = scmp.eq.s32.totalorder %s37, 0
      %p392 = por %p390, %p391
      %p393 = scmp.ne.s32.totalorder %s381, %s382
      %p394 = scmp.eq.s32.totalorder %s38, 1
      %p395 = por %p393, %p394
      %p397 = scmp.ne.s32.totalorder %s382, %s396
      %p398 = scmp.eq.s32.totalorder %s38, 0
      %p399 = por %p397, %p398
      %s400 = ssub.s32 %s39, %s51
      %s401 = ssub.s32 %s40, %s47
      %s402 = sor.u32 %s400, %s401
      %p403 = scmp.eq.s32.totalorder %s402, 0
      %s405 = sadd.s32 %s404, 1
      %s406 = scalar_select %p403, %s404, %s405
      %p409 = pneg %p403
      %p410 = scmp.eq.s32.totalorder %s32, 1
      %p411 = por %p409, %p410
      %p412 = scmp.ne.s32.totalorder %s404, %s407
      %p413 = scmp.eq.s32.totalorder %s32, 0
      %p414 = por %p412, %p413
      %p415 = scmp.ne.s32.totalorder %s404, %s407
      %p416 = scmp.eq.s32.totalorder %s37, 1
      %p417 = por %p415, %p416
      %p418 = scmp.ne.s32.totalorder %s407, %s408
      %p419 = scmp.eq.s32.totalorder %s37, 0
      %p420 = por %p418, %p419
      %p421 = scmp.ne.s32.totalorder %s407, %s408
      %p422 = scmp.eq.s32.totalorder %s38, 1
      %p423 = por %p421, %p422
      %p425 = scmp.ne.s32.totalorder %s408, %s424
      %p426 = scmp.eq.s32.totalorder %s38, 0
      %p427 = por %p425, %p426
      %s428 = ssub.s32 %s39, %s51
      %s429 = ssub.s32 %s40, %s47
      %s430 = sor.u32 %s428, %s429
      %p431 = scmp.eq.s32.totalorder %s430, 0
      %s433 = sadd.s32 %s432, 1
      %s434 = scalar_select %p431, %s432, %s433
      %p437 = pneg %p431
      %p438 = scmp.eq.s32.totalorder %s32, 1
      %p439 = por %p437, %p438
      %p440 = scmp.ne.s32.totalorder %s432, %s435
      %p441 = scmp.eq.s32.totalorder %s32, 0
      %p442 = por %p440, %p441
      %p443 = scmp.ne.s32.totalorder %s432, %s435
      %p444 = scmp.eq.s32.totalorder %s37, 1
      %p445 = por %p443, %p444
      %p446 = scmp.ne.s32.totalorder %s435, %s436
      %p447 = scmp.eq.s32.totalorder %s37, 0
      %p448 = por %p446, %p447
      %p449 = scmp.ne.s32.totalorder %s435, %s436
      %p450 = scmp.eq.s32.totalorder %s38, 1
      %p451 = por %p449, %p450
      %p453 = scmp.ne.s32.totalorder %s436, %s452
      %p454 = scmp.eq.s32.totalorder %s38, 0
      %p455 = por %p453, %p454
      %p456 = scmp.le.s32.totalorder 1, %s32
      %p457 = scmp.lt.s32.totalorder %s32, 3
      %p458 = pnand %p456, %p457
      %p459 = pneg %p458
      // Predicated region
      $region9: #{tpu_custom_call.1} parent=5 // pred_check
        _
      $region10: #{tpu_custom_call.1} parent=5 // pred_check_branch
        %461 = sbr.rel (%p458) target = $region12
      $region11: #{tpu_custom_call.1} parent=5 // pred_region
        %s462 = ssub.s32 %s32, 1
        // Predicated region
        $region13: #{tpu_custom_call.1} parent=11 // pred_check
          %p463 = pneg %p119
        $region14: #{tpu_custom_call.1} parent=11 // pred_check_branch
          %465 = sbr.rel (%p463) target = $region16
        $region15: #{tpu_custom_call.1} parent=11 // pred_region
          _
        $region16: #{tpu_custom_call.1} parent=11 // pred_fallthru
          _
        // Predicated region
        $region17: #{tpu_custom_call.1} parent=11 // pred_check
          %p466 = pneg %p140
        $region18: #{tpu_custom_call.1} parent=11 // pred_check_branch
          %468 = sbr.rel (%p466) target = $region20
        $region19: #{tpu_custom_call.1} parent=11 // pred_region
          _
        $region20: #{tpu_custom_call.1} parent=11 // pred_fallthru
          _
        // Predicated region
        $region21: #{tpu_custom_call.1} parent=11 // pred_check
          %p469 = pneg %p161
        $region22: #{tpu_custom_call.1} parent=11 // pred_check_branch
          %471 = sbr.rel (%p469) target = $region24
        $region23: #{tpu_custom_call.1} parent=11 // pred_region
          _
        $region24: #{tpu_custom_call.1} parent=11 // pred_fallthru
          _
        // Predicated region
        $region25: #{tpu_custom_call.1} parent=11 // pred_check
          %p472 = pneg %p182
        $region26: #{tpu_custom_call.1} parent=11 // pred_check_branch
          %474 = sbr.rel (%p472) target = $region28
        $region27: #{tpu_custom_call.1} parent=11 // pred_region
          _
        $region28: #{tpu_custom_call.1} parent=11 // pred_fallthru
          _
        // Predicated region
        $region29: #{tpu_custom_call.1} parent=11 // pred_check
          %p475 = pneg %p203
        $region30: #{tpu_custom_call.1} parent=11 // pred_check_branch
          %477 = sbr.rel (%p475) target = $region32
        $region31: #{tpu_custom_call.1} parent=11 // pred_region
          _
        $region32: #{tpu_custom_call.1} parent=11 // pred_fallthru
          _
        // Predicated region
        $region33: #{tpu_custom_call.1} parent=11 // pred_check
          %p478 = pneg %p224
        $region34: #{tpu_custom_call.1} parent=11 // pred_check_branch
          %480 = sbr.rel (%p478) target = $region36
        $region35: #{tpu_custom_call.1} parent=11 // pred_region
          %s482 = ssub.s32 16, 16
          %483 = vsyncadd [#allocation5], %s482
          %s485 = sshll.u32 [#allocation4], 4
          %s486 = int_to_ptr.vmem [resolvable:$true] %s485
          %488 = dma.hbm_to_vmem [thread:$0]  %s7, 16, %s486, [#allocation5]
        $region36: #{tpu_custom_call.1} parent=11 // pred_fallthru
          _
        // Predicated region
        $region37: #{tpu_custom_call.1} parent=11 // pred_check
          %p489 = pneg %p245
        $region38: #{tpu_custom_call.1} parent=11 // pred_check_branch
          %491 = sbr.rel (%p489) target = $region40
        $region39: #{tpu_custom_call.1} parent=11 // pred_region
          %s493 = ssub.s32 16, 16
          %494 = vsyncadd [#allocation8], %s493
          %s496 = sshll.u32 [#allocation7], 4
          %s497 = int_to_ptr.vmem [resolvable:$true] %s496
          %499 = dma.hbm_to_vmem [thread:$0]  %s8, 16, %s497, [#allocation8]
        $region40: #{tpu_custom_call.1} parent=11 // pred_fallthru
          _
        // Predicated region
        $region41: #{tpu_custom_call.1} parent=11 // pred_check
          %p500 = pneg %p266
        $region42: #{tpu_custom_call.1} parent=11 // pred_check_branch
          %502 = sbr.rel (%p500) target = $region44
        $region43: #{tpu_custom_call.1} parent=11 // pred_region
          %s504 = ssub.s32 16, 16
          %505 = vsyncadd [#allocation8], %s504
          %s507 = sshll.u32 [#allocation9], 4
          %s508 = int_to_ptr.vmem [resolvable:$true] %s507
          %510 = dma.hbm_to_vmem [thread:$0]  %s9, 16, %s508, [#allocation8]
        $region44: #{tpu_custom_call.1} parent=11 // pred_fallthru
          _
        // Predicated region
        $region45: #{tpu_custom_call.1} parent=11 // pred_check
          %p511 = pneg %p287
        $region46: #{tpu_custom_call.1} parent=11 // pred_check_branch
          %513 = sbr.rel (%p511) target = $region48
        $region47: #{tpu_custom_call.1} parent=11 // pred_region
          _
        $region48: #{tpu_custom_call.1} parent=11 // pred_fallthru
          _
        // Predicated region
        $region49: #{tpu_custom_call.1} parent=11 // pred_check
          %p514 = pneg %p308
        $region50: #{tpu_custom_call.1} parent=11 // pred_check_branch
          %516 = sbr.rel (%p514) target = $region52
        $region51: #{tpu_custom_call.1} parent=11 // pred_region
          _
        $region52: #{tpu_custom_call.1} parent=11 // pred_fallthru
          _
        // Predicated region
        $region53: #{tpu_custom_call.1} parent=11 // pred_check
          %p517 = pneg %p329
        $region54: #{tpu_custom_call.1} parent=11 // pred_check_branch
          %519 = sbr.rel (%p517) target = $region56
        $region55: #{tpu_custom_call.1} parent=11 // pred_region
          _
        $region56: #{tpu_custom_call.1} parent=11 // pred_fallthru
          _
        // Predicated region
        $region57: #{tpu_custom_call.1} parent=11 // pred_check
          %p520 = pneg %p350
        $region58: #{tpu_custom_call.1} parent=11 // pred_check_branch
          %522 = sbr.rel (%p520) target = $region60
        $region59: #{tpu_custom_call.1} parent=11 // pred_region
          _
        $region60: #{tpu_custom_call.1} parent=11 // pred_fallthru
          _
        // Predicated region
        $region61: #{tpu_custom_call.1} parent=11 // pred_check
          %p523 = pneg %p371
        $region62: #{tpu_custom_call.1} parent=11 // pred_check_branch
          %525 = sbr.rel (%p523) target = $region64
        $region63: #{tpu_custom_call.1} parent=11 // pred_region
          _
        $region64: #{tpu_custom_call.1} parent=11 // pred_fallthru
          _
        // Predicated region
        $region65: #{tpu_custom_call.1} parent=11 // pred_check
          %p526 = pneg %p392
        $region66: #{tpu_custom_call.1} parent=11 // pred_check_branch
          %528 = sbr.rel (%p526) target = $region68
        $region67: #{tpu_custom_call.1} parent=11 // pred_region
          _
        $region68: #{tpu_custom_call.1} parent=11 // pred_fallthru
          _
      $region12: #{tpu_custom_call.1} parent=5 // pred_fallthru
        _
      %p529 = scmp.lt.s32.totalorder %s32, 2
      // Predicated region
      $region69: #{tpu_custom_call.1} parent=5 // pred_check
        %p530 = pneg %p529
      $region70: #{tpu_custom_call.1} parent=5 // pred_check_branch
        %532 = sbr.rel (%p530) target = $region72
      $region71: #{tpu_custom_call.1} parent=5 // pred_region
        // Predicated region
        $region73: #{tpu_custom_call.1} parent=71 // pred_check
          %p533 = pneg %p66
        $region74: #{tpu_custom_call.1} parent=71 // pred_check_branch
          %535 = sbr.rel (%p533) target = $region76
        $region75: #{tpu_custom_call.1} parent=71 // pred_region
          %p536 = scmp.lt.s32.totalorder %s39, 1
          %s537 = scalar_select %p536, %s39, 1
          %p538 = scmp.lt.s32.totalorder %s40, 0
          %s539 = scalar_select %p538, %s40, 0
          %s540 = sadd.s32 %s539, %s537
          %s541 = smul.addr %s540, 8
          %s542 = scalar_lea.vmem %s0, %s541
        $region76: #{tpu_custom_call.1} parent=71 // pred_fallthru
          _
        // Predicated region
        $region77: #{tpu_custom_call.1} parent=71 // pred_check
          %p543 = pneg %p92
        $region78: #{tpu_custom_call.1} parent=71 // pred_check_branch
          %545 = sbr.rel (%p543) target = $region80
        $region79: #{tpu_custom_call.1} parent=71 // pred_region
          %p546 = scmp.lt.s32.totalorder %s39, 1
          %s547 = scalar_select %p546, %s39, 1
          %s548 = smul.addr %s547, 8
          %s549 = scalar_lea.vmem %s1, %s548
        $region80: #{tpu_custom_call.1} parent=71 // pred_fallthru
          _
      $region72: #{tpu_custom_call.1} parent=5 // pred_fallthru
        _
      %p550 = scmp.le.s32.totalorder 1, %s32
      %p551 = scmp.lt.s32.totalorder %s32, 3
      %p552 = pnand %p550, %p551
      %p553 = pneg %p552
      // Predicated region
      $region81: #{tpu_custom_call.1} parent=5 // pred_check
        _
      $region82: #{tpu_custom_call.1} parent=5 // pred_check_branch
        %555 = sbr.rel (%p552) target = $region84
      $region83: #{tpu_custom_call.1} parent=5 // pred_region
        %s556 = ssub.s32 %s32, 1
        // Predicated region
        $region85: #{tpu_custom_call.1} parent=83 // pred_check
          %p557 = pneg %p224
        $region86: #{tpu_custom_call.1} parent=83 // pred_check_branch
          %559 = sbr.rel (%p557) target = $region88
        $region87: #{tpu_custom_call.1} parent=83 // pred_region
          %560 = dma.done [#allocation5], 16
        $region88: #{tpu_custom_call.1} parent=83 // pred_fallthru
          _
        // Predicated region
        $region89: #{tpu_custom_call.1} parent=83 // pred_check
          %p561 = pneg %p245
        $region90: #{tpu_custom_call.1} parent=83 // pred_check_branch
          %563 = sbr.rel (%p561) target = $region92
        $region91: #{tpu_custom_call.1} parent=83 // pred_region
          %564 = dma.done [#allocation8], 16
        $region92: #{tpu_custom_call.1} parent=83 // pred_fallthru
          _
        // Predicated region
        $region93: #{tpu_custom_call.1} parent=83 // pred_check
          %p565 = pneg %p266
        $region94: #{tpu_custom_call.1} parent=83 // pred_check_branch
          %567 = sbr.rel (%p565) target = $region96
        $region95: #{tpu_custom_call.1} parent=83 // pred_region
          %568 = dma.done [#allocation8], 16
        $region96: #{tpu_custom_call.1} parent=83 // pred_fallthru
          _
        %p569 = scmp.lt.s32.totalorder %s41, 1
        %s570 = scalar_select %p569, %s41, 1
        %p571 = scmp.lt.s32.totalorder %s42, 0
        %s572 = scalar_select %p571, %s42, 0
        %s573 = sadd.s32 %s572, %s570
        %s574 = smul.addr %s573, 8
        %s575 = scalar_lea.vmem %s0, %s574
        %p576 = pneg %p72
        %p577 = pneg %p69
        %p578 = scmp.lt.s32.totalorder %s41, 1
        %s579 = scalar_select %p578, %s41, 1
        %s580 = smul.addr %s579, 8
        %s581 = scalar_lea.vmem %s1, %s580
        %p582 = pneg %p98
        %p583 = pneg %p95
        %p584 = pneg %p119
        %p585 = pneg %p116
        %p586 = pneg %p140
        %p587 = pneg %p137
        %p588 = pneg %p161
        %p589 = pneg %p158
        %p590 = pneg %p182
        %p591 = pneg %p179
        %p592 = pneg %p203
        %p593 = pneg %p200
        %p594 = pneg %p224
        %p595 = pneg %p221
        %p596 = pneg %p245
        %p597 = pneg %p242
        %p598 = pneg %p266
        %p599 = pneg %p263
        %p600 = pneg %p287
        %p601 = pneg %p284
        %p602 = pneg %p308
        %p603 = pneg %p305
        %p604 = pneg %p329
        %p605 = pneg %p326
        %p606 = pneg %p350
        %p607 = pneg %p347
        %p608 = pneg %p371
        %p609 = pneg %p368
        %p610 = pneg %p392
        %p611 = pneg %p389
        %p612 = pneg %p420
        %p613 = pneg %p417
        %s614 = sand.u32 %s407, 1
        %s615 = scalar_lea.sflag [#allocation6], %s614
        %s616 = sand.u32 %s407, 1
        %s617 = smul.addr %s616, 8
        %s618 = scalar_lea.vmem [#allocation10], %s617
        %p619 = pneg %p448
        %p620 = pneg %p445
        %s621 = sand.u32 %s435, 1
        %s622 = scalar_lea.sflag [#allocation12], %s621
        %s623 = sand.u32 %s435, 1
        %s624 = smul.addr %s623, 16
        %s625 = scalar_lea.vmem [#allocation11], %s624
        %p626 = scmp.lt.s32.totalorder %s41, 1
        %s627 = scalar_select %p626, %s41, 1
        %p628 = scmp.lt.s32.totalorder %s42, 0
        %s629 = scalar_select %p628, %s42, 0
        %s630 = sadd.s32 %s629, %s627
        %s631 = smul.addr %s630, 8
        %s632 = scalar_lea.vmem %s0, %s631
        %p633 = scmp.lt.s32.totalorder %s41, 1
        %s634 = scalar_select %p633, %s41, 1
        %s635 = smul.addr %s634, 8
        %s636 = scalar_lea.vmem %s1, %s635
        %p638 = scmp.eq.s32.totalorder %s42, 0
        // Predicated region
        $region97: #{tpu_custom_call.1} parent=83 // pred_check
          %p639 = pneg %p638
        $region98: #{tpu_custom_call.1} parent=83 // pred_check_branch
          %641 = sbr.rel (%p639) target = $region100
        $region99: #{tpu_custom_call.1} parent=83 // pred_region
          %v642 = vld [vmem:[%s636] sm:$0xff]
          %v643 = vpack.c.bf16 %v642, %v642
          %v644 = vld [vmem:[%s4] sm:$0xf]
          %v645 = vld [vmem:[%s4 + $0x4] sm:$0xf]
          %v646 = vld [vmem:[%s4 + $0x8] sm:$0xf]
          %v647 = vld [vmem:[%s4 + $0xc] sm:$0xf]
          %v648 = vld [vmem:[%s5] sm:$0x1]
          %v650 = vlaneseq
          %v651 = vshrl.u32 %v650, 7
          %v652 = vsub.s32 0, %v651
          %v653 = vrot.slane %v648, %v652
          %v659 = vunpack.c.l.b16 %v644
          %v660 = vunpack.c.l.b16 %v645
          %v661 = vunpack.c.l.b16 %v646
          %v662 = vunpack.c.l.b16 %v647
          %v663 = vpack.c.b16 %v660, %v659
          %v664 = vpack.c.b16 %v662, %v661
          %vm667 = vcmask 261120
          %v669 = vsel %vm667, %v643, 0
          %671 = vmatprep.subr.bf16.mxu0 0
          %672 = vmatpush1.bf16.msra.mxu0 %v663
          %673 = vmatprep.subr.bf16.mxu0 0
          %674 = vmatpush1.bf16.msra.mxu0 %v664
          %675 = vmatprep.subr.bf16.mxu0 0
          %676 = vmatpush1.bf16.msra.mxu0 0
          %677 = vmatprep.subr.bf16.mxu0 0
          %678 = vmatpush1.bf16.msra.mxu0 0
          %679 = vmatprep.subr.bf16.mxu0 0
          %680 = vmatpush1.bf16.msra.mxu0 0
          %681 = vmatprep.subr.bf16.mxu0 0
          %682 = vmatpush1.bf16.msra.mxu0 0
          %683 = vmatprep.subr.bf16.mxu0 0
          %684 = vmatpush1.bf16.msra.mxu0 0
          %685 = vmatprep.subr.bf16.mxu0 0
          %686 = vmatpush1.bf16.msra.mxu0 0
          %687 = vmatprep.subr.bf16.mxu0 0
          %688 = vmatpush1.bf16.msra.mxu0 0
          %689 = vmatprep.subr.bf16.mxu0 0
          %690 = vmatpush1.bf16.msra.mxu0 0
          %691 = vmatprep.subr.bf16.mxu0 0
          %692 = vmatpush1.bf16.msra.mxu0 0
          %693 = vmatprep.subr.bf16.mxu0 0
          %694 = vmatpush1.bf16.msra.mxu0 0
          %695 = vmatprep.subr.bf16.mxu0 0
          %696 = vmatpush1.bf16.msra.mxu0 0
          %697 = vmatprep.subr.bf16.mxu0 0
          %698 = vmatpush1.bf16.msra.mxu0 0
          %699 = vmatprep.subr.bf16.mxu0 0
          %700 = vmatpush1.bf16.msra.mxu0 0
          %701 = vmatprep.subr.bf16.mxu0 0
          %702 = vmatpush1.bf16.msra.mxu0 0
          %703 = vmatprep.mubr.bf16.mxu0 0
          %704 = vmatmul.mubr.bf16.gmra.mrb[0].mxu0 %v669
          %v705 = vpop.f32.mrb[0].mxu0
          %v706 = vadd.f32 %v653, %v705
          %v707 = vpop.f32.mrb[0].mxu0
          %v708 = vpop.f32.mrb[0].mxu0
          %v709 = vpop.f32.mrb[0].mxu0
          %710 = vdwg.mxu0
          %v711 = vpack.c.bf16 %v706, %v706
          %vm712 = vcmask 60416
          %713 = vst.msk [vmem:[#allocation2] sm:$0xf] %vm712, %v711
          %v715 = vunpack.c.l.b16 %v711
          %v716 = vpack.c.b16 %v715, %v715
          %717 = vrot.lane.b32.xlu0 %v716, 96
          %v718 = vpop.permute.xlu0 %717
          %720 = vst.msk [vmem:[#allocation3] sm:$0xf] %vm712, %v718
          %721 = vrot.lane.b32.xlu0 %v716, 120
          %v722 = vpop.permute.xlu0 %721
          %s724 = scalar_lea.vmem [#allocation2], 4
          %725 = vst.msk [vmem:[%s724] sm:$0xf] %vm712, %v722
          %726 = vrot.lane.b32.xlu0 %v716, 88
          %v727 = vpop.permute.xlu0 %726
          %s729 = scalar_lea.vmem [#allocation3], 4
          %730 = vst.msk [vmem:[%s729] sm:$0xf] %vm712, %v727
          %731 = vrot.lane.b32.xlu0 %v716, 112
          %v732 = vpop.permute.xlu0 %731
          %s734 = scalar_lea.vmem [#allocation2], 8
          %735 = vst.msk [vmem:[%s734] sm:$0xf] %vm712, %v732
          %736 = vrot.lane.b32.xlu0 %v716, 80
          %v737 = vpop.permute.xlu0 %736
          %s739 = scalar_lea.vmem [#allocation3], 8
          %740 = vst.msk [vmem:[%s739] sm:$0xf] %vm712, %v737
          %741 = vrot.lane.b32.xlu0 %v716, 104
          %v742 = vpop.permute.xlu0 %741
          %s744 = scalar_lea.vmem [#allocation2], 12
          %745 = vst.msk [vmem:[%s744] sm:$0xf] %vm712, %v742
          %746 = vrot.lane.b32.xlu0 %v716, 72
          %v747 = vpop.permute.xlu0 %746
          %s749 = scalar_lea.vmem [#allocation3], 12
          %750 = vst.msk [vmem:[%s749] sm:$0xf] %vm712, %v747
        $region100: #{tpu_custom_call.1} parent=83 // pred_fallthru
          _
        %v751 = vld [vmem:[%s632] sm:$0xff]
        %v752 = vpack.c.bf16 %v751, %v751
        %v753 = vld [vmem:[%s2] sm:$0xf]
        %v754 = vld [vmem:[%s2 + $0x4] sm:$0xf]
        %v755 = vld [vmem:[%s2 + $0x8] sm:$0xf]
        %v756 = vld [vmem:[%s2 + $0xc] sm:$0xf]
        %v757 = vld [vmem:[%s3] sm:$0x1]
        %v759 = vlaneseq
        %v760 = vshrl.u32 %v759, 7
        %v761 = vsub.s32 0, %v760
        %v762 = vrot.slane %v757, %v761
        %v768 = vunpack.c.l.b16 %v753
        %v769 = vunpack.c.l.b16 %v754
        %v770 = vunpack.c.l.b16 %v755
        %v771 = vunpack.c.l.b16 %v756
        %v772 = vpack.c.b16 %v769, %v768
        %v773 = vpack.c.b16 %v771, %v770
        %vm776 = vcmask 261120
        %v778 = vsel %vm776, %v752, 0
        %780 = vmatprep.subr.bf16.mxu0 0
        %781 = vmatpush1.bf16.msra.mxu0 %v772
        %782 = vmatprep.subr.bf16.mxu0 0
        %783 = vmatpush1.bf16.msra.mxu0 %v773
        %784 = vmatprep.subr.bf16.mxu0 0
        %785 = vmatpush1.bf16.msra.mxu0 0
        %786 = vmatprep.subr.bf16.mxu0 0
        %787 = vmatpush1.bf16.msra.mxu0 0
        %788 = vmatprep.subr.bf16.mxu0 0
        %789 = vmatpush1.bf16.msra.mxu0 0
        %790 = vmatprep.subr.bf16.mxu0 0
        %791 = vmatpush1.bf16.msra.mxu0 0
        %792 = vmatprep.subr.bf16.mxu0 0
        %793 = vmatpush1.bf16.msra.mxu0 0
        %794 = vmatprep.subr.bf16.mxu0 0
        %795 = vmatpush1.bf16.msra.mxu0 0
        %796 = vmatprep.subr.bf16.mxu0 0
        %797 = vmatpush1.bf16.msra.mxu0 0
        %798 = vmatprep.subr.bf16.mxu0 0
        %799 = vmatpush1.bf16.msra.mxu0 0
        %800 = vmatprep.subr.bf16.mxu0 0
        %801 = vmatpush1.bf16.msra.mxu0 0
        %802 = vmatprep.subr.bf16.mxu0 0
        %803 = vmatpush1.bf16.msra.mxu0 0
        %804 = vmatprep.subr.bf16.mxu0 0
        %805 = vmatpush1.bf16.msra.mxu0 0
        %806 = vmatprep.subr.bf16.mxu0 0
        %807 = vmatpush1.bf16.msra.mxu0 0
        %808 = vmatprep.subr.bf16.mxu0 0
        %809 = vmatpush1.bf16.msra.mxu0 0
        %810 = vmatprep.subr.bf16.mxu0 0
        %811 = vmatpush1.bf16.msra.mxu0 0
        %812 = vmatprep.mubr.bf16.mxu0 0
        %813 = vmatmul.mubr.bf16.gmra.mrb[0].mxu0 %v778
        %v814 = vpop.f32.mrb[0].mxu0
        %v815 = vadd.f32 %v762, %v814
        %v816 = vpop.f32.mrb[0].mxu0
        %v817 = vpop.f32.mrb[0].mxu0
        %v818 = vpop.f32.mrb[0].mxu0
        %819 = vdwg.mxu0
        %v820 = vmul.f32 %v815, 0.35355338
        %v821 = vpack.c.bf16 %v820, %v820
        %823 = vrot.lane.b32.xlu0 %v821, 120
        %v824 = vpop.permute.xlu0 %823
        %825 = vrot.lane.b32.xlu0 %v821, 112
        %v826 = vpop.permute.xlu0 %825
        %827 = vrot.lane.b32.xlu0 %v821, 104
        %v828 = vpop.permute.xlu0 %827
        %v829 = vld [vmem:[#allocation2] sm:$0xf]
        %v830 = vld [vmem:[#allocation2 + $0x4] sm:$0xf]
        %v831 = vld [vmem:[#allocation2 + $0x8] sm:$0xf]
        %v832 = vld [vmem:[#allocation2 + $0xc] sm:$0xf]
        %vm833 = vcmask 64512
        %v835 = vsel %vm833, %v821, 0
        %v838 = vsel %vm833, %v829, 0
        %840 = vmatprep.subr.bf16.mxu0 0
        %841 = vmatpush1.bf16.xpose.msra.mxu0 %v838
        %842 = vmatprep.subr.bf16.mxu0 0
        %843 = vmatpush1.bf16.xpose.msra.mxu0 0
        %844 = vmatprep.subr.bf16.mxu0 0
        %845 = vmatpush1.bf16.xpose.msra.mxu0 0
        %846 = vmatprep.subr.bf16.mxu0 0
        %847 = vmatpush1.bf16.xpose.msra.mxu0 0
        %848 = vmatprep.subr.bf16.mxu0 0
        %849 = vmatpush1.bf16.xpose.msra.mxu0 0
        %850 = vmatprep.subr.bf16.mxu0 0
        %851 = vmatpush1.bf16.xpose.msra.mxu0 0
        %852 = vmatprep.subr.bf16.mxu0 0
        %853 = vmatpush1.bf16.xpose.msra.mxu0 0
        %854 = vmatprep.subr.bf16.mxu0 0
        %855 = vmatpush1.bf16.xpose.msra.mxu0 0
        %856 = vmatprep.subr.bf16.mxu0 0
        %857 = vmatpush1.bf16.xpose.msra.mxu0 0
        %858 = vmatprep.subr.bf16.mxu0 0
        %859 = vmatpush1.bf16.xpose.msra.mxu0 0
        %860 = vmatprep.subr.bf16.mxu0 0
        %861 = vmatpush1.bf16.xpose.msra.mxu0 0
        %862 = vmatprep.subr.bf16.mxu0 0
        %863 = vmatpush1.bf16.xpose.msra.mxu0 0
        %864 = vmatprep.subr.bf16.mxu0 0
        %865 = vmatpush1.bf16.xpose.msra.mxu0 0
        %866 = vmatprep.subr.bf16.mxu0 0
        %867 = vmatpush1.bf16.xpose.msra.mxu0 0
        %868 = vmatprep.subr.bf16.mxu0 0
        %869 = vmatpush1.bf16.xpose.msra.mxu0 0
        %870 = vmatprep.subr.bf16.mxu0 0
        %871 = vmatpush1.bf16.xpose.msra.mxu0 0
        %872 = vmatprep.mubr.bf16.mxu0 0
        %873 = vmatmul.mubr.bf16.gmra.mrb[0].mxu0 %v835
        %v874 = vpop.f32.mrb[0].mxu0
        %v875 = vadd.f32 0.0, %v874
        %v876 = vpop.f32.mrb[0].mxu0
        %v877 = vpop.f32.mrb[0].mxu0
        %v878 = vpop.f32.mrb[0].mxu0
        %879 = vdwg.mxu0
        %v881 = vsel %vm833, %v824, 0
        %v884 = vsel %vm833, %v830, 0
        %886 = vmatprep.subr.bf16.mxu0 0
        %887 = vmatpush1.bf16.xpose.msra.mxu0 %v884
        %888 = vmatprep.subr.bf16.mxu0 0
        %889 = vmatpush1.bf16.xpose.msra.mxu0 0
        %890 = vmatprep.subr.bf16.mxu0 0
        %891 = vmatpush1.bf16.xpose.msra.mxu0 0
        %892 = vmatprep.subr.bf16.mxu0 0
        %893 = vmatpush1.bf16.xpose.msra.mxu0 0
        %894 = vmatprep.subr.bf16.mxu0 0
        %895 = vmatpush1.bf16.xpose.msra.mxu0 0
        %896 = vmatprep.subr.bf16.mxu0 0
        %897 = vmatpush1.bf16.xpose.msra.mxu0 0
        %898 = vmatprep.subr.bf16.mxu0 0
        %899 = vmatpush1.bf16.xpose.msra.mxu0 0
        %900 = vmatprep.subr.bf16.mxu0 0
        %901 = vmatpush1.bf16.xpose.msra.mxu0 0
        %902 = vmatprep.subr.bf16.mxu0 0
        %903 = vmatpush1.bf16.xpose.msra.mxu0 0
        %904 = vmatprep.subr.bf16.mxu0 0
        %905 = vmatpush1.bf16.xpose.msra.mxu0 0
        %906 = vmatprep.subr.bf16.mxu0 0
        %907 = vmatpush1.bf16.xpose.msra.mxu0 0
        %908 = vmatprep.subr.bf16.mxu0 0
        %909 = vmatpush1.bf16.xpose.msra.mxu0 0
        %910 = vmatprep.subr.bf16.mxu0 0
        %911 = vmatpush1.bf16.xpose.msra.mxu0 0
        %912 = vmatprep.subr.bf16.mxu0 0
        %913 = vmatpush1.bf16.xpose.msra.mxu0 0
        %914 = vmatprep.subr.bf16.mxu0 0
        %915 = vmatpush1.bf16.xpose.msra.mxu0 0
        %916 = vmatprep.subr.bf16.mxu0 0
        %917 = vmatpush1.bf16.xpose.msra.mxu0 0
        %918 = vmatprep.mubr.bf16.mxu0 0
        %919 = vmatmul.mubr.bf16.gmra.mrb[0].mxu0 %v881
        %v920 = vpop.f32.mrb[0].mxu0
        %v921 = vadd.f32 0.0, %v920
        %v922 = vpop.f32.mrb[0].mxu0
        %v923 = vpop.f32.mrb[0].mxu0
        %v924 = vpop.f32.mrb[0].mxu0
        %925 = vdwg.mxu0
        %v927 = vsel %vm833, %v826, 0
        %v930 = vsel %vm833, %v831, 0
        %932 = vmatprep.subr.bf16.mxu0 0
        %933 = vmatpush1.bf16.xpose.msra.mxu0 %v930
        %934 = vmatprep.subr.bf16.mxu0 0
        %935 = vmatpush1.bf16.xpose.msra.mxu0 0
        %936 = vmatprep.subr.bf16.mxu0 0
        %937 = vmatpush1.bf16.xpose.msra.mxu0 0
        %938 = vmatprep.subr.bf16.mxu0 0
        %939 = vmatpush1.bf16.xpose.msra.mxu0 0
        %940 = vmatprep.subr.bf16.mxu0 0
        %941 = vmatpush1.bf16.xpose.msra.mxu0 0
        %942 = vmatprep.subr.bf16.mxu0 0
        %943 = vmatpush1.bf16.xpose.msra.mxu0 0
        %944 = vmatprep.subr.bf16.mxu0 0
        %945 = vmatpush1.bf16.xpose.msra.mxu0 0
        %946 = vmatprep.subr.bf16.mxu0 0
        %947 = vmatpush1.bf16.xpose.msra.mxu0 0
        %948 = vmatprep.subr.bf16.mxu0 0
        %949 = vmatpush1.bf16.xpose.msra.mxu0 0
        %950 = vmatprep.subr.bf16.mxu0 0
        %951 = vmatpush1.bf16.xpose.msra.mxu0 0
        %952 = vmatprep.subr.bf16.mxu0 0
        %953 = vmatpush1.bf16.xpose.msra.mxu0 0
        %954 = vmatprep.subr.bf16.mxu0 0
        %955 = vmatpush1.bf16.xpose.msra.mxu0 0
        %956 = vmatprep.subr.bf16.mxu0 0
        %957 = vmatpush1.bf16.xpose.msra.mxu0 0
        %958 = vmatprep.subr.bf16.mxu0 0
        %959 = vmatpush1.bf16.xpose.msra.mxu0 0
        %960 = vmatprep.subr.bf16.mxu0 0
        %961 = vmatpush1.bf16.xpose.msra.mxu0 0
        %962 = vmatprep.subr.bf16.mxu0 0
        %963 = vmatpush1.bf16.xpose.msra.mxu0 0
        %964 = vmatprep.mubr.bf16.mxu0 0
        %965 = vmatmul.mubr.bf16.gmra.mrb[0].mxu0 %v927
        %v966 = vpop.f32.mrb[0].mxu0
        %v967 = vadd.f32 0.0, %v966
        %v968 = vpop.f32.mrb[0].mxu0
        %v969 = vpop.f32.mrb[0].mxu0
        %v970 = vpop.f32.mrb[0].mxu0
        %971 = vdwg.mxu0
        %v973 = vsel %vm833, %v828, 0
        %v976 = vsel %vm833, %v832, 0
        %978 = vmatprep.subr.bf16.mxu0 0
        %979 = vmatpush1.bf16.xpose.msra.mxu0 %v976
        %980 = vmatprep.subr.bf16.mxu0 0
        %981 = vmatpush1.bf16.xpose.msra.mxu0 0
        %982 = vmatprep.subr.bf16.mxu0 0
        %983 = vmatpush1.bf16.xpose.msra.mxu0 0
        %984 = vmatprep.subr.bf16.mxu0 0
        %985 = vmatpush1.bf16.xpose.msra.mxu0 0
        %986 = vmatprep.subr.bf16.mxu0 0
        %987 = vmatpush1.bf16.xpose.msra.mxu0 0
        %988 = vmatprep.subr.bf16.mxu0 0
        %989 = vmatpush1.bf16.xpose.msra.mxu0 0
        %990 = vmatprep.subr.bf16.mxu0 0
        %991 = vmatpush1.bf16.xpose.msra.mxu0 0
        %992 = vmatprep.subr.bf16.mxu0 0
        %993 = vmatpush1.bf16.xpose.msra.mxu0 0
        %994 = vmatprep.subr.bf16.mxu0 0
        %995 = vmatpush1.bf16.xpose.msra.mxu0 0
        %996 = vmatprep.subr.bf16.mxu0 0
        %997 = vmatpush1.bf16.xpose.msra.mxu0 0
        %998 = vmatprep.subr.bf16.mxu0 0
        %999 = vmatpush1.bf16.xpose.msra.mxu0 0
        %1000 = vmatprep.subr.bf16.mxu0 0
        %1001 = vmatpush1.bf16.xpose.msra.mxu0 0
        %1002 = vmatprep.subr.bf16.mxu0 0
        %1003 = vmatpush1.bf16.xpose.msra.mxu0 0
        %1004 = vmatprep.subr.bf16.mxu0 0
        %1005 = vmatpush1.bf16.xpose.msra.mxu0 0
        %1006 = vmatprep.subr.bf16.mxu0 0
        %1007 = vmatpush1.bf16.xpose.msra.mxu0 0
        %1008 = vmatprep.subr.bf16.mxu0 0
        %1009 = vmatpush1.bf16.xpose.msra.mxu0 0
        %1010 = vmatprep.mubr.bf16.mxu0 0
        %1011 = vmatmul.mubr.bf16.gmra.mrb[0].mxu0 %v973
        %v1012 = vpop.f32.mrb[0].mxu0
        %v1013 = vadd.f32 0.0, %v1012
        %v1014 = vpop.f32.mrb[0].mxu0
        %v1015 = vpop.f32.mrb[0].mxu0
        %v1016 = vpop.f32.mrb[0].mxu0
        %1017 = vdwg.mxu0
        %v1018 = vsel %vm833, %v875, -inf
        %1019 = vmax.xlane.f32.xlu0 %v1018
        %v1020 = vpop.xlane.xlu0 %1019
        %v1021 = vsel %vm833, %v921, -inf
        %1022 = vmax.xlane.f32.xlu0 %v1021
        %v1023 = vpop.xlane.xlu0 %1022
        %v1024 = vsel %vm833, %v967, -inf
        %1025 = vmax.xlane.f32.xlu0 %v1024
        %v1026 = vpop.xlane.xlu0 %1025
        %v1027 = vsel %vm833, %v1013, -inf
        %1028 = vmax.xlane.f32.xlu0 %v1027
        %v1029 = vpop.xlane.xlu0 %1028
        %v1030 = vsub.f32 %v875, %v1020
        %v1031 = vsub.f32 %v921, %v1023
        %v1032 = vsub.f32 %v967, %v1026
        %v1033 = vsub.f32 %v1013, %v1029
        %v1034 = vmul.f32 %v1030, 1.442695
        %v1035 = vpow.pop %v1034
        %v1036 = vmul.f32 %v1031, 1.442695
        %v1037 = vpow.pop %v1036
        %v1038 = vmul.f32 %v1032, 1.442695
        %v1039 = vpow.pop %v1038
        %v1040 = vmul.f32 %v1033, 1.442695
        %v1041 = vpow.pop %v1040
        %v1042 = vsel %vm833, %v1035, 0.0
        %1043 = vadd.xlane.f32.xlu0 %v1042
        %v1044 = vpop.xlane.xlu0 %1043
        %v1045 = vsel %vm833, %v1037, 0.0
        %1046 = vadd.xlane.f32.xlu0 %v1045
        %v1047 = vpop.xlane.xlu0 %1046
        %v1048 = vsel %vm833, %v1039, 0.0
        %1049 = vadd.xlane.f32.xlu0 %v1048
        %v1050 = vpop.xlane.xlu0 %1049
        %v1051 = vsel %vm833, %v1041, 0.0
        %1052 = vadd.xlane.f32.xlu0 %v1051
        %v1053 = vpop.xlane.xlu0 %1052
        %v1054 = vrcp.pop %v1044
        %v1055 = vmul.f32 1.0, %v1054
        %v1056 = vrcp.pop %v1047
        %v1057 = vmul.f32 1.0, %v1056
        %v1058 = vrcp.pop %v1050
        %v1059 = vmul.f32 1.0, %v1058
        %v1060 = vrcp.pop %v1053
        %v1061 = vmul.f32 1.0, %v1060
        %v1062 = vmul.f32 %v1035, %v1055
        %v1063 = vmul.f32 %v1037, %v1057
        %v1064 = vmul.f32 %v1039, %v1059
        %v1065 = vmul.f32 %v1041, %v1061
        %v1066 = vpack.c.bf16 %v1062, %v1062
        %v1067 = vpack.c.bf16 %v1063, %v1063
        %v1068 = vpack.c.bf16 %v1064, %v1064
        %v1069 = vpack.c.bf16 %v1065, %v1065
        %vm1070 = vcmask 60416
        %1071 = vst.msk [vmem:[%s625] sm:$0xf] %vm1070, %v1066
        %1072 = vst.msk [vmem:[%s625 + $0x4] sm:$0xf] %vm1070, %v1067
        %1073 = vst.msk [vmem:[%s625 + $0x8] sm:$0xf] %vm1070, %v1068
        %1074 = vst.msk [vmem:[%s625 + $0xc] sm:$0xf] %vm1070, %v1069
        %v1075 = vld [vmem:[#allocation3] sm:$0xf]
        %v1076 = vld [vmem:[#allocation3 + $0x4] sm:$0xf]
        %v1077 = vld [vmem:[#allocation3 + $0x8] sm:$0xf]
        %v1078 = vld [vmem:[#allocation3 + $0xc] sm:$0xf]
        %v1080 = vsel %vm833, %v1066, 0
        %vm1082 = vcmask 1043456
        %v1084 = vsel %vm1082, %v1075, 0
        %1086 = vmatprep.subr.bf16.mxu0 0
        %1087 = vmatpush1.bf16.msra.mxu0 %v1084
        %1088 = vmatprep.subr.bf16.mxu0 0
        %1089 = vmatpush1.bf16.msra.mxu0 0
        %1090 = vmatprep.subr.bf16.mxu0 0
        %1091 = vmatpush1.bf16.msra.mxu0 0
        %1092 = vmatprep.subr.bf16.mxu0 0
        %1093 = vmatpush1.bf16.msra.mxu0 0
        %1094 = vmatprep.subr.bf16.mxu0 0
        %1095 = vmatpush1.bf16.msra.mxu0 0
        %1096 = vmatprep.subr.bf16.mxu0 0
        %1097 = vmatpush1.bf16.msra.mxu0 0
        %1098 = vmatprep.subr.bf16.mxu0 0
        %1099 = vmatpush1.bf16.msra.mxu0 0
        %1100 = vmatprep.subr.bf16.mxu0 0
        %1101 = vmatpush1.bf16.msra.mxu0 0
        %1102 = vmatprep.subr.bf16.mxu0 0
        %1103 = vmatpush1.bf16.msra.mxu0 0
        %1104 = vmatprep.subr.bf16.mxu0 0
        %1105 = vmatpush1.bf16.msra.mxu0 0
        %1106 = vmatprep.subr.bf16.mxu0 0
        %1107 = vmatpush1.bf16.msra.mxu0 0
        %1108 = vmatprep.subr.bf16.mxu0 0
        %1109 = vmatpush1.bf16.msra.mxu0 0
        %1110 = vmatprep.subr.bf16.mxu0 0
        %1111 = vmatpush1.bf16.msra.mxu0 0
        %1112 = vmatprep.subr.bf16.mxu0 0
        %1113 = vmatpush1.bf16.msra.mxu0 0
        %1114 = vmatprep.subr.bf16.mxu0 0
        %1115 = vmatpush1.bf16.msra.mxu0 0
        %1116 = vmatprep.subr.bf16.mxu0 0
        %1117 = vmatpush1.bf16.msra.mxu0 0
        %1118 = vmatprep.mubr.bf16.mxu0 0
        %1119 = vmatmul.mubr.bf16.gmra.mrb[0].mxu0 %v1080
        %v1120 = vpop.f32.mrb[0].mxu0
        %v1121 = vadd.f32 0.0, %v1120
        %v1122 = vpop.f32.mrb[0].mxu0
        %v1123 = vpop.f32.mrb[0].mxu0
        %v1124 = vpop.f32.mrb[0].mxu0
        %1125 = vdwg.mxu0
        %v1127 = vsel %vm833, %v1067, 0
        %v1130 = vsel %vm1082, %v1076, 0
        %1132 = vmatprep.subr.bf16.mxu0 0
        %1133 = vmatpush1.bf16.msra.mxu0 %v1130
        %1134 = vmatprep.subr.bf16.mxu0 0
        %1135 = vmatpush1.bf16.msra.mxu0 0
        %1136 = vmatprep.subr.bf16.mxu0 0
        %1137 = vmatpush1.bf16.msra.mxu0 0
        %1138 = vmatprep.subr.bf16.mxu0 0
        %1139 = vmatpush1.bf16.msra.mxu0 0
        %1140 = vmatprep.subr.bf16.mxu0 0
        %1141 = vmatpush1.bf16.msra.mxu0 0
        %1142 = vmatprep.subr.bf16.mxu0 0
        %1143 = vmatpush1.bf16.msra.mxu0 0
        %1144 = vmatprep.subr.bf16.mxu0 0
        %1145 = vmatpush1.bf16.msra.mxu0 0
        %1146 = vmatprep.subr.bf16.mxu0 0
        %1147 = vmatpush1.bf16.msra.mxu0 0
        %1148 = vmatprep.subr.bf16.mxu0 0
        %1149 = vmatpush1.bf16.msra.mxu0 0
        %1150 = vmatprep.subr.bf16.mxu0 0
        %1151 = vmatpush1.bf16.msra.mxu0 0
        %1152 = vmatprep.subr.bf16.mxu0 0
        %1153 = vmatpush1.bf16.msra.mxu0 0
        %1154 = vmatprep.subr.bf16.mxu0 0
        %1155 = vmatpush1.bf16.msra.mxu0 0
        %1156 = vmatprep.subr.bf16.mxu0 0
        %1157 = vmatpush1.bf16.msra.mxu0 0
        %1158 = vmatprep.subr.bf16.mxu0 0
        %1159 = vmatpush1.bf16.msra.mxu0 0
        %1160 = vmatprep.subr.bf16.mxu0 0
        %1161 = vmatpush1.bf16.msra.mxu0 0
        %1162 = vmatprep.subr.bf16.mxu0 0
        %1163 = vmatpush1.bf16.msra.mxu0 0
        %1164 = vmatprep.mubr.bf16.mxu0 0
        %1165 = vmatmul.mubr.bf16.gmra.mrb[0].mxu0 %v1127
        %v1166 = vpop.f32.mrb[0].mxu0
        %v1167 = vadd.f32 0.0, %v1166
        %v1168 = vpop.f32.mrb[0].mxu0
        %v1169 = vpop.f32.mrb[0].mxu0
        %v1170 = vpop.f32.mrb[0].mxu0
        %1171 = vdwg.mxu0
        %v1173 = vsel %vm833, %v1068, 0
        %v1176 = vsel %vm1082, %v1077, 0
        %1178 = vmatprep.subr.bf16.mxu0 0
        %1179 = vmatpush1.bf16.msra.mxu0 %v1176
        %1180 = vmatprep.subr.bf16.mxu0 0
        %1181 = vmatpush1.bf16.msra.mxu0 0
        %1182 = vmatprep.subr.bf16.mxu0 0
        %1183 = vmatpush1.bf16.msra.mxu0 0
        %1184 = vmatprep.subr.bf16.mxu0 0
        %1185 = vmatpush1.bf16.msra.mxu0 0
        %1186 = vmatprep.subr.bf16.mxu0 0
        %1187 = vmatpush1.bf16.msra.mxu0 0
        %1188 = vmatprep.subr.bf16.mxu0 0
        %1189 = vmatpush1.bf16.msra.mxu0 0
        %1190 = vmatprep.subr.bf16.mxu0 0
        %1191 = vmatpush1.bf16.msra.mxu0 0
        %1192 = vmatprep.subr.bf16.mxu0 0
        %1193 = vmatpush1.bf16.msra.mxu0 0
        %1194 = vmatprep.subr.bf16.mxu0 0
        %1195 = vmatpush1.bf16.msra.mxu0 0
        %1196 = vmatprep.subr.bf16.mxu0 0
        %1197 = vmatpush1.bf16.msra.mxu0 0
        %1198 = vmatprep.subr.bf16.mxu0 0
        %1199 = vmatpush1.bf16.msra.mxu0 0
        %1200 = vmatprep.subr.bf16.mxu0 0
        %1201 = vmatpush1.bf16.msra.mxu0 0
        %1202 = vmatprep.subr.bf16.mxu0 0
        %1203 = vmatpush1.bf16.msra.mxu0 0
        %1204 = vmatprep.subr.bf16.mxu0 0
        %1205 = vmatpush1.bf16.msra.mxu0 0
        %1206 = vmatprep.subr.bf16.mxu0 0
        %1207 = vmatpush1.bf16.msra.mxu0 0
        %1208 = vmatprep.subr.bf16.mxu0 0
        %1209 = vmatpush1.bf16.msra.mxu0 0
        %1210 = vmatprep.mubr.bf16.mxu0 0
        %1211 = vmatmul.mubr.bf16.gmra.mrb[0].mxu0 %v1173
        %v1212 = vpop.f32.mrb[0].mxu0
        %v1213 = vadd.f32 0.0, %v1212
        %v1214 = vpop.f32.mrb[0].mxu0
        %v1215 = vpop.f32.mrb[0].mxu0
        %v1216 = vpop.f32.mrb[0].mxu0
        %1217 = vdwg.mxu0
        %v1219 = vsel %vm833, %v1069, 0
        %v1222 = vsel %vm1082, %v1078, 0
        %1224 = vmatprep.subr.bf16.mxu0 0
        %1225 = vmatpush1.bf16.msra.mxu0 %v1222
        %1226 = vmatprep.subr.bf16.mxu0 0
        %1227 = vmatpush1.bf16.msra.mxu0 0
        %1228 = vmatprep.subr.bf16.mxu0 0
        %1229 = vmatpush1.bf16.msra.mxu0 0
        %1230 = vmatprep.subr.bf16.mxu0 0
        %1231 = vmatpush1.bf16.msra.mxu0 0
        %1232 = vmatprep.subr.bf16.mxu0 0
        %1233 = vmatpush1.bf16.msra.mxu0 0
        %1234 = vmatprep.subr.bf16.mxu0 0
        %1235 = vmatpush1.bf16.msra.mxu0 0
        %1236 = vmatprep.subr.bf16.mxu0 0
        %1237 = vmatpush1.bf16.msra.mxu0 0
        %1238 = vmatprep.subr.bf16.mxu0 0
        %1239 = vmatpush1.bf16.msra.mxu0 0
        %1240 = vmatprep.subr.bf16.mxu0 0
        %1241 = vmatpush1.bf16.msra.mxu0 0
        %1242 = vmatprep.subr.bf16.mxu0 0
        %1243 = vmatpush1.bf16.msra.mxu0 0
        %1244 = vmatprep.subr.bf16.mxu0 0
        %1245 = vmatpush1.bf16.msra.mxu0 0
        %1246 = vmatprep.subr.bf16.mxu0 0
        %1247 = vmatpush1.bf16.msra.mxu0 0
        %1248 = vmatprep.subr.bf16.mxu0 0
        %1249 = vmatpush1.bf16.msra.mxu0 0
        %1250 = vmatprep.subr.bf16.mxu0 0
        %1251 = vmatpush1.bf16.msra.mxu0 0
        %1252 = vmatprep.subr.bf16.mxu0 0
        %1253 = vmatpush1.bf16.msra.mxu0 0
        %1254 = vmatprep.subr.bf16.mxu0 0
        %1255 = vmatpush1.bf16.msra.mxu0 0
        %1256 = vmatprep.mubr.bf16.mxu0 0
        %1257 = vmatmul.mubr.bf16.gmra.mrb[0].mxu0 %v1219
        %v1258 = vpop.f32.mrb[0].mxu0
        %v1259 = vadd.f32 0.0, %v1258
        %v1260 = vpop.f32.mrb[0].mxu0
        %v1261 = vpop.f32.mrb[0].mxu0
        %v1262 = vpop.f32.mrb[0].mxu0
        %1263 = vdwg.mxu0
        %v1264 = vpack.c.bf16 %v1121, %v1121
        %v1265 = vpack.c.bf16 %v1167, %v1167
        %v1266 = vpack.c.bf16 %v1213, %v1213
        %v1267 = vpack.c.bf16 %v1259, %v1259
        %v1268 = vld [vmem:[%s6] sm:$0xf]
        %v1269 = vld [vmem:[%s6 + $0x4] sm:$0xf]
        %v1270 = vld [vmem:[%s6 + $0x8] sm:$0xf]
        %v1271 = vld [vmem:[%s6 + $0xc] sm:$0xf]
        %v1273 = vsel %vm833, %v1264, 0
        %v1276 = vsel %vm1082, %v1268, 0
        %1278 = vmatprep.subr.bf16.mxu0 0
        %1279 = vmatpush1.bf16.msra.mxu0 %v1276
        %1280 = vmatprep.subr.bf16.mxu0 0
        %1281 = vmatpush1.bf16.msra.mxu0 0
        %1282 = vmatprep.subr.bf16.mxu0 0
        %1283 = vmatpush1.bf16.msra.mxu0 0
        %1284 = vmatprep.subr.bf16.mxu0 0
        %1285 = vmatpush1.bf16.msra.mxu0 0
        %1286 = vmatprep.subr.bf16.mxu0 0
        %1287 = vmatpush1.bf16.msra.mxu0 0
        %1288 = vmatprep.subr.bf16.mxu0 0
        %1289 = vmatpush1.bf16.msra.mxu0 0
        %1290 = vmatprep.subr.bf16.mxu0 0
        %1291 = vmatpush1.bf16.msra.mxu0 0
        %1292 = vmatprep.subr.bf16.mxu0 0
        %1293 = vmatpush1.bf16.msra.mxu0 0
        %1294 = vmatprep.subr.bf16.mxu0 0
        %1295 = vmatpush1.bf16.msra.mxu0 0
        %1296 = vmatprep.subr.bf16.mxu0 0
        %1297 = vmatpush1.bf16.msra.mxu0 0
        %1298 = vmatprep.subr.bf16.mxu0 0
        %1299 = vmatpush1.bf16.msra.mxu0 0
        %1300 = vmatprep.subr.bf16.mxu0 0
        %1301 = vmatpush1.bf16.msra.mxu0 0
        %1302 = vmatprep.subr.bf16.mxu0 0
        %1303 = vmatpush1.bf16.msra.mxu0 0
        %1304 = vmatprep.subr.bf16.mxu0 0
        %1305 = vmatpush1.bf16.msra.mxu0 0
        %1306 = vmatprep.subr.bf16.mxu0 0
        %1307 = vmatpush1.bf16.msra.mxu0 0
        %1308 = vmatprep.subr.bf16.mxu0 0
        %1309 = vmatpush1.bf16.msra.mxu0 0
        %1310 = vmatprep.mubr.bf16.mxu0 0
        %1311 = vmatmul.mubr.bf16.gmra.mrb[0].mxu0 %v1273
        %v1312 = vpop.f32.mrb[0].mxu0
        %v1313 = vadd.f32 0.0, %v1312
        %v1314 = vpop.f32.mrb[0].mxu0
        %v1315 = vpop.f32.mrb[0].mxu0
        %v1316 = vpop.f32.mrb[0].mxu0
        %1317 = vdwg.mxu0
        %v1319 = vsel %vm833, %v1265, 0
        %v1322 = vsel %vm1082, %v1269, 0
        %1324 = vmatprep.subr.bf16.mxu0 0
        %1325 = vmatpush1.bf16.msra.mxu0 %v1322
        %1326 = vmatprep.subr.bf16.mxu0 0
        %1327 = vmatpush1.bf16.msra.mxu0 0
        %1328 = vmatprep.subr.bf16.mxu0 0
        %1329 = vmatpush1.bf16.msra.mxu0 0
        %1330 = vmatprep.subr.bf16.mxu0 0
        %1331 = vmatpush1.bf16.msra.mxu0 0
        %1332 = vmatprep.subr.bf16.mxu0 0
        %1333 = vmatpush1.bf16.msra.mxu0 0
        %1334 = vmatprep.subr.bf16.mxu0 0
        %1335 = vmatpush1.bf16.msra.mxu0 0
        %1336 = vmatprep.subr.bf16.mxu0 0
        %1337 = vmatpush1.bf16.msra.mxu0 0
        %1338 = vmatprep.subr.bf16.mxu0 0
        %1339 = vmatpush1.bf16.msra.mxu0 0
        %1340 = vmatprep.subr.bf16.mxu0 0
        %1341 = vmatpush1.bf16.msra.mxu0 0
        %1342 = vmatprep.subr.bf16.mxu0 0
        %1343 = vmatpush1.bf16.msra.mxu0 0
        %1344 = vmatprep.subr.bf16.mxu0 0
        %1345 = vmatpush1.bf16.msra.mxu0 0
        %1346 = vmatprep.subr.bf16.mxu0 0
        %1347 = vmatpush1.bf16.msra.mxu0 0
        %1348 = vmatprep.subr.bf16.mxu0 0
        %1349 = vmatpush1.bf16.msra.mxu0 0
        %1350 = vmatprep.subr.bf16.mxu0 0
        %1351 = vmatpush1.bf16.msra.mxu0 0
        %1352 = vmatprep.subr.bf16.mxu0 0
        %1353 = vmatpush1.bf16.msra.mxu0 0
        %1354 = vmatprep.subr.bf16.mxu0 0
        %1355 = vmatpush1.bf16.msra.mxu0 0
        %1356 = vmatprep.mubr.bf16.mxu0 0
        %1357 = vmatmul.mubr.bf16.gmra.mrb[0].mxu0 %v1319
        %v1358 = vpop.f32.mrb[0].mxu0
        %v1359 = vadd.f32 0.0, %v1358
        %v1360 = vpop.f32.mrb[0].mxu0
        %v1361 = vpop.f32.mrb[0].mxu0
        %v1362 = vpop.f32.mrb[0].mxu0
        %1363 = vdwg.mxu0
        %v1365 = vsel %vm833, %v1266, 0
        %v1368 = vsel %vm1082, %v1270, 0
        %1370 = vmatprep.subr.bf16.mxu0 0
        %1371 = vmatpush1.bf16.msra.mxu0 %v1368
        %1372 = vmatprep.subr.bf16.mxu0 0
        %1373 = vmatpush1.bf16.msra.mxu0 0
        %1374 = vmatprep.subr.bf16.mxu0 0
        %1375 = vmatpush1.bf16.msra.mxu0 0
        %1376 = vmatprep.subr.bf16.mxu0 0
        %1377 = vmatpush1.bf16.msra.mxu0 0
        %1378 = vmatprep.subr.bf16.mxu0 0
        %1379 = vmatpush1.bf16.msra.mxu0 0
        %1380 = vmatprep.subr.bf16.mxu0 0
        %1381 = vmatpush1.bf16.msra.mxu0 0
        %1382 = vmatprep.subr.bf16.mxu0 0
        %1383 = vmatpush1.bf16.msra.mxu0 0
        %1384 = vmatprep.subr.bf16.mxu0 0
        %1385 = vmatpush1.bf16.msra.mxu0 0
        %1386 = vmatprep.subr.bf16.mxu0 0
        %1387 = vmatpush1.bf16.msra.mxu0 0
        %1388 = vmatprep.subr.bf16.mxu0 0
        %1389 = vmatpush1.bf16.msra.mxu0 0
        %1390 = vmatprep.subr.bf16.mxu0 0
        %1391 = vmatpush1.bf16.msra.mxu0 0
        %1392 = vmatprep.subr.bf16.mxu0 0
        %1393 = vmatpush1.bf16.msra.mxu0 0
        %1394 = vmatprep.subr.bf16.mxu0 0
        %1395 = vmatpush1.bf16.msra.mxu0 0
        %1396 = vmatprep.subr.bf16.mxu0 0
        %1397 = vmatpush1.bf16.msra.mxu0 0
        %1398 = vmatprep.subr.bf16.mxu0 0
        %1399 = vmatpush1.bf16.msra.mxu0 0
        %1400 = vmatprep.subr.bf16.mxu0 0
        %1401 = vmatpush1.bf16.msra.mxu0 0
        %1402 = vmatprep.mubr.bf16.mxu0 0
        %1403 = vmatmul.mubr.bf16.gmra.mrb[0].mxu0 %v1365
        %v1404 = vpop.f32.mrb[0].mxu0
        %v1405 = vadd.f32 0.0, %v1404
        %v1406 = vpop.f32.mrb[0].mxu0
        %v1407 = vpop.f32.mrb[0].mxu0
        %v1408 = vpop.f32.mrb[0].mxu0
        %1409 = vdwg.mxu0
        %v1411 = vsel %vm833, %v1267, 0
        %v1414 = vsel %vm1082, %v1271, 0
        %1416 = vmatprep.subr.bf16.mxu0 0
        %1417 = vmatpush1.bf16.msra.mxu0 %v1414
        %1418 = vmatprep.subr.bf16.mxu0 0
        %1419 = vmatpush1.bf16.msra.mxu0 0
        %1420 = vmatprep.subr.bf16.mxu0 0
        %1421 = vmatpush1.bf16.msra.mxu0 0
        %1422 = vmatprep.subr.bf16.mxu0 0
        %1423 = vmatpush1.bf16.msra.mxu0 0
        %1424 = vmatprep.subr.bf16.mxu0 0
        %1425 = vmatpush1.bf16.msra.mxu0 0
        %1426 = vmatprep.subr.bf16.mxu0 0
        %1427 = vmatpush1.bf16.msra.mxu0 0
        %1428 = vmatprep.subr.bf16.mxu0 0
        %1429 = vmatpush1.bf16.msra.mxu0 0
        %1430 = vmatprep.subr.bf16.mxu0 0
        %1431 = vmatpush1.bf16.msra.mxu0 0
        %1432 = vmatprep.subr.bf16.mxu0 0
        %1433 = vmatpush1.bf16.msra.mxu0 0
        %1434 = vmatprep.subr.bf16.mxu0 0
        %1435 = vmatpush1.bf16.msra.mxu0 0
        %1436 = vmatprep.subr.bf16.mxu0 0
        %1437 = vmatpush1.bf16.msra.mxu0 0
        %1438 = vmatprep.subr.bf16.mxu0 0
        %1439 = vmatpush1.bf16.msra.mxu0 0
        %1440 = vmatprep.subr.bf16.mxu0 0
        %1441 = vmatpush1.bf16.msra.mxu0 0
        %1442 = vmatprep.subr.bf16.mxu0 0
        %1443 = vmatpush1.bf16.msra.mxu0 0
        %1444 = vmatprep.subr.bf16.mxu0 0
        %1445 = vmatpush1.bf16.msra.mxu0 0
        %1446 = vmatprep.subr.bf16.mxu0 0
        %1447 = vmatpush1.bf16.msra.mxu0 0
        %1448 = vmatprep.mubr.bf16.mxu0 0
        %1449 = vmatmul.mubr.bf16.gmra.mrb[0].mxu0 %v1411
        %v1450 = vpop.f32.mrb[0].mxu0
        %v1451 = vadd.f32 0.0, %v1450
        %v1452 = vpop.f32.mrb[0].mxu0
        %v1453 = vpop.f32.mrb[0].mxu0
        %v1454 = vpop.f32.mrb[0].mxu0
        %1455 = vdwg.mxu0
        %v1456 = vsel %vm776, %v1313, 0.0
        %v1457 = vsel %vm776, %v1359, 0.0
        %v1458 = vadd.f32 %v1456, %v1457
        %v1459 = vsel %vm776, %v1405, 0.0
        %v1460 = vadd.f32 %v1458, %v1459
        %v1461 = vsel %vm776, %v1451, 0.0
        %v1462 = vadd.f32 %v1460, %v1461
        %v1463 = vld [vmem:[#allocation4] sm:$0x1]
        %v1465 = vlaneseq
        %v1466 = vshrl.u32 %v1465, 7
        %v1467 = vsub.s32 0, %v1466
        %v1468 = vrot.slane %v1463, %v1467
        %v1470 = vadd.f32 %v1462, %v1468
        %v1471 = vadd.f32 %v751, %v1470
        %v1472 = vld [vmem:[#allocation7] sm:$0x1]
        %v1473 = vld [vmem:[#allocation9] sm:$0x1]
        %v1474 = vsel %vm776, %v1471, 0.0
        %1475 = vadd.xlane.f32.xlu0 %v1474
        %v1476 = vpop.xlane.xlu0 %1475
        %v1477 = vrcp.pop 32.0
        %v1478 = vmul.f32 %v1476, %v1477
        %v1479 = vsub.f32 %v1471, %v1478
        %v1480 = vmul.f32 %v1479, %v1479
        %v1481 = vsel %vm776, %v1480, 0.0
        %1482 = vadd.xlane.f32.xlu0 %v1481
        %v1483 = vpop.xlane.xlu0 %1482
        %v1484 = vmul.f32 %v1483, %v1477
        %v1485 = vadd.f32 %v1484, 1e-05
        %v1486 = vrsqrt.pop %v1485
        %v1487 = vmul.f32 %v1479, %v1486
        %v1489 = vlaneseq
        %v1490 = vshrl.u32 %v1489, 7
        %v1491 = vsub.s32 0, %v1490
        %v1492 = vrot.slane %v1472, %v1491
        %v1494 = vmul.f32 %v1487, %v1492
        %v1496 = vlaneseq
        %v1497 = vshrl.u32 %v1496, 7
        %v1498 = vsub.s32 0, %v1497
        %v1499 = vrot.slane %v1473, %v1498
        %v1501 = vadd.f32 %v1494, %v1499
        %v1502 = vpack.c.bf16 %v1501, %v1501
        %v1503 = vld [vmem:[%s10] sm:$0xf]
        %v1504 = vld [vmem:[%s10 + $0x4] sm:$0xf]
        %v1505 = vld [vmem:[%s10 + $0x8] sm:$0xf]
        %v1506 = vld [vmem:[%s10 + $0xc] sm:$0xf]
        %v1507 = vld [vmem:[%s11] sm:$0x1]
        %v1509 = vlaneseq
        %v1510 = vshrl.u32 %v1509, 7
        %v1511 = vsub.s32 0, %v1510
        %v1512 = vrot.slane %v1507, %v1511
        %v1518 = vunpack.c.l.b16 %v1503
        %v1519 = vunpack.c.l.b16 %v1504
        %v1520 = vunpack.c.l.b16 %v1505
        %v1521 = vunpack.c.l.b16 %v1506
        %v1522 = vpack.c.b16 %v1519, %v1518
        %v1523 = vpack.c.b16 %v1521, %v1520
        %v1527 = vsel %vm776, %v1502, 0
        %1529 = vmatprep.subr.bf16.mxu0 0
        %1530 = vmatpush1.bf16.msra.mxu0 %v1522
        %1531 = vmatprep.subr.bf16.mxu0 0
        %1532 = vmatpush1.bf16.msra.mxu0 %v1523
        %1533 = vmatprep.subr.bf16.mxu0 0
        %1534 = vmatpush1.bf16.msra.mxu0 0
        %1535 = vmatprep.subr.bf16.mxu0 0
        %1536 = vmatpush1.bf16.msra.mxu0 0
        %1537 = vmatprep.subr.bf16.mxu0 0
        %1538 = vmatpush1.bf16.msra.mxu0 0
        %1539 = vmatprep.subr.bf16.mxu0 0
        %1540 = vmatpush1.bf16.msra.mxu0 0
        %1541 = vmatprep.subr.bf16.mxu0 0
        %1542 = vmatpush1.bf16.msra.mxu0 0
        %1543 = vmatprep.subr.bf16.mxu0 0
        %1544 = vmatpush1.bf16.msra.mxu0 0
        %1545 = vmatprep.subr.bf16.mxu0 0
        %1546 = vmatpush1.bf16.msra.mxu0 0
        %1547 = vmatprep.subr.bf16.mxu0 0
        %1548 = vmatpush1.bf16.msra.mxu0 0
        %1549 = vmatprep.subr.bf16.mxu0 0
        %1550 = vmatpush1.bf16.msra.mxu0 0
        %1551 = vmatprep.subr.bf16.mxu0 0
        %1552 = vmatpush1.bf16.msra.mxu0 0
        %1553 = vmatprep.subr.bf16.mxu0 0
        %1554 = vmatpush1.bf16.msra.mxu0 0
        %1555 = vmatprep.subr.bf16.mxu0 0
        %1556 = vmatpush1.bf16.msra.mxu0 0
        %1557 = vmatprep.subr.bf16.mxu0 0
        %1558 = vmatpush1.bf16.msra.mxu0 0
        %1559 = vmatprep.subr.bf16.mxu0 0
        %1560 = vmatpush1.bf16.msra.mxu0 0
        %1561 = vmatprep.mubr.bf16.mxu0 0
        %1562 = vmatmul.mubr.bf16.gmra.mrb[0].mxu0 %v1527
        %v1563 = vpop.f32.mrb[0].mxu0
        %v1564 = vadd.f32 %v1512, %v1563
        %v1565 = vpop.f32.mrb[0].mxu0
        %v1566 = vpop.f32.mrb[0].mxu0
        %v1567 = vpop.f32.mrb[0].mxu0
        %1568 = vdwg.mxu0
        %v1569 = vmax.f32 %v1564, 0.0
        %v1570 = vpack.c.bf16 %v1569, %v1569
        %v1571 = vld [vmem:[%s12] sm:$0xf]
        %v1572 = vld [vmem:[%s12 + $0x4] sm:$0xf]
        %v1573 = vld [vmem:[%s12 + $0x8] sm:$0xf]
        %v1574 = vld [vmem:[%s12 + $0xc] sm:$0xf]
        %v1575 = vld [vmem:[%s12 + $0x10] sm:$0xf]
        %v1576 = vld [vmem:[%s12 + $0x14] sm:$0xf]
        %v1577 = vld [vmem:[%s12 + $0x18] sm:$0xf]
        %v1578 = vld [vmem:[%s12 + $0x1c] sm:$0xf]
        %v1579 = vld [vmem:[%s12 + $0x20] sm:$0xf]
        %v1580 = vld [vmem:[%s12 + $0x24] sm:$0xf]
        %v1581 = vld [vmem:[%s12 + $0x28] sm:$0xf]
        %v1582 = vld [vmem:[%s12 + $0x2c] sm:$0xf]
        %v1583 = vld [vmem:[%s12 + $0x30] sm:$0xf]
        %v1584 = vld [vmem:[%s12 + $0x34] sm:$0xf]
        %v1585 = vld [vmem:[%s12 + $0x38] sm:$0xf]
        %v1586 = vld [vmem:[%s12 + $0x3c] sm:$0xf]
        %v1587 = vld [vmem:[%s13] sm:$0x1]
        %v1589 = vlaneseq
        %v1590 = vshrl.u32 %v1589, 7
        %v1591 = vsub.s32 0, %v1590
        %v1592 = vrot.slane %v1587, %v1591
        %v1610 = vunpack.c.l.b16 %v1571
        %v1611 = vunpack.c.l.b16 %v1572
        %v1612 = vunpack.c.l.b16 %v1573
        %v1613 = vunpack.c.l.b16 %v1574
        %v1614 = vunpack.c.l.b16 %v1575
        %v1615 = vunpack.c.l.b16 %v1576
        %v1616 = vunpack.c.l.b16 %v1577
        %v1617 = vunpack.c.l.b16 %v1578
        %v1618 = vunpack.c.l.b16 %v1579
        %v1619 = vunpack.c.l.b16 %v1580
        %v1620 = vunpack.c.l.b16 %v1581
        %v1621 = vunpack.c.l.b16 %v1582
        %v1622 = vunpack.c.l.b16 %v1583
        %v1623 = vunpack.c.l.b16 %v1584
        %v1624 = vunpack.c.l.b16 %v1585
        %v1625 = vunpack.c.l.b16 %v1586
        %v1626 = vpack.c.b16 %v1611, %v1610
        %v1627 = vpack.c.b16 %v1613, %v1612
        %v1628 = vpack.c.b16 %v1615, %v1614
        %v1629 = vpack.c.b16 %v1617, %v1616
        %v1630 = vpack.c.b16 %v1619, %v1618
        %v1631 = vpack.c.b16 %v1621, %v1620
        %v1632 = vpack.c.b16 %v1623, %v1622
        %v1633 = vpack.c.b16 %v1625, %v1624
        %1642 = vmatprep.subr.bf16.mxu0 0
        %1643 = vmatpush1.bf16.msra.mxu0 %v1626
        %1644 = vmatprep.subr.bf16.mxu0 0
        %1645 = vmatpush1.bf16.msra.mxu0 %v1627
        %1646 = vmatprep.subr.bf16.mxu0 0
        %1647 = vmatpush1.bf16.msra.mxu0 %v1628
        %1648 = vmatprep.subr.bf16.mxu0 0
        %1649 = vmatpush1.bf16.msra.mxu0 %v1629
        %1650 = vmatprep.subr.bf16.mxu0 0
        %1651 = vmatpush1.bf16.msra.mxu0 %v1630
        %1652 = vmatprep.subr.bf16.mxu0 0
        %1653 = vmatpush1.bf16.msra.mxu0 %v1631
        %1654 = vmatprep.subr.bf16.mxu0 0
        %1655 = vmatpush1.bf16.msra.mxu0 %v1632
        %1656 = vmatprep.subr.bf16.mxu0 0
        %1657 = vmatpush1.bf16.msra.mxu0 %v1633
        %1658 = vmatprep.subr.bf16.mxu0 0
        %1659 = vmatpush1.bf16.msra.mxu0 0
        %1660 = vmatprep.subr.bf16.mxu0 0
        %1661 = vmatpush1.bf16.msra.mxu0 0
        %1662 = vmatprep.subr.bf16.mxu0 0
        %1663 = vmatpush1.bf16.msra.mxu0 0
        %1664 = vmatprep.subr.bf16.mxu0 0
        %1665 = vmatpush1.bf16.msra.mxu0 0
        %1666 = vmatprep.subr.bf16.mxu0 0
        %1667 = vmatpush1.bf16.msra.mxu0 0
        %1668 = vmatprep.subr.bf16.mxu0 0
        %1669 = vmatpush1.bf16.msra.mxu0 0
        %1670 = vmatprep.subr.bf16.mxu0 0
        %1671 = vmatpush1.bf16.msra.mxu0 0
        %1672 = vmatprep.subr.bf16.mxu0 0
        %1673 = vmatpush1.bf16.msra.mxu0 0
        %1674 = vmatprep.mubr.bf16.mxu0 0
        %1675 = vmatmul.mubr.bf16.gmra.mrb[0].mxu0 %v1570
        %v1676 = vpop.f32.mrb[0].mxu0
        %v1677 = vadd.f32 %v1592, %v1676
        %v1678 = vpop.f32.mrb[0].mxu0
        %v1679 = vpop.f32.mrb[0].mxu0
        %v1680 = vpop.f32.mrb[0].mxu0
        %1681 = vdwg.mxu0
        %v1682 = vadd.f32 %v1471, %v1677
        %v1683 = vld [vmem:[%s14] sm:$0x1]
        %v1684 = vld [vmem:[%s15] sm:$0x1]
        %v1685 = vsel %vm776, %v1682, 0.0
        %1686 = vadd.xlane.f32.xlu0 %v1685
        %v1687 = vpop.xlane.xlu0 %1686
        %v1688 = vmul.f32 %v1687, %v1477
        %v1689 = vsub.f32 %v1682, %v1688
        %v1690 = vmul.f32 %v1689, %v1689
        %v1691 = vsel %vm776, %v1690, 0.0
        %1692 = vadd.xlane.f32.xlu0 %v1691
        %v1693 = vpop.xlane.xlu0 %1692
        %v1694 = vmul.f32 %v1693, %v1477
        %v1695 = vadd.f32 %v1694, 1e-05
        %v1696 = vrsqrt.pop %v1695
        %v1697 = vmul.f32 %v1689, %v1696
        %v1699 = vlaneseq
        %v1700 = vshrl.u32 %v1699, 7
        %v1701 = vsub.s32 0, %v1700
        %v1702 = vrot.slane %v1683, %v1701
        %v1704 = vmul.f32 %v1697, %v1702
        %v1706 = vlaneseq
        %v1707 = vshrl.u32 %v1706, 7
        %v1708 = vsub.s32 0, %v1707
        %v1709 = vrot.slane %v1684, %v1708
        %v1711 = vadd.f32 %v1704, %v1709
        %1712 = vst.msk [vmem:[%s618] sm:$0xff] %vm776, %v1711
        %s1713 = sand.u32 %s407, 1
        %s1714 = scalar_lea.sflag [#allocation6], %s1713
        %s1715 = sand.u32 %s407, 1
        %s1716 = smul.addr %s1715, 8
        %s1717 = scalar_lea.vmem [#allocation10], %s1716
        %s1718 = sand.u32 %s435, 1
        %s1719 = scalar_lea.sflag [#allocation12], %s1718
        %s1720 = sand.u32 %s435, 1
        %s1721 = smul.addr %s1720, 16
        %s1722 = scalar_lea.vmem [#allocation11], %s1721
        // Predicated region
        $region101: #{tpu_custom_call.1} parent=83 // pred_check
          %p1723 = pneg %p417
        $region102: #{tpu_custom_call.1} parent=83 // pred_check_branch
          %1725 = sbr.rel (%p1723) target = $region104
        $region103: #{tpu_custom_call.1} parent=83 // pred_region
          %s1727 = ssub.s32 128, 128
          %1728 = vsyncadd %s1714, %s1727
          %s1729 = sadd.s32 %s42, %s41
          %s1730 = smul.addr %s1729, 128
          %s1731 = scalar_lea.hbm %s16, %s1730
          %s1733 = sshll.u32 %s1717, 4
          %s1734 = int_to_ptr.vmem [resolvable:$true] %s1733
          %1736 = dma.vmem_to_hbm [thread:$0]  %s1734, 128, %s1731, %s1714
        $region104: #{tpu_custom_call.1} parent=83 // pred_fallthru
          _
        // Predicated region
        $region105: #{tpu_custom_call.1} parent=83 // pred_check
          %p1737 = pneg %p445
        $region106: #{tpu_custom_call.1} parent=83 // pred_check_branch
          %1739 = sbr.rel (%p1737) target = $region108
        $region107: #{tpu_custom_call.1} parent=83 // pred_region
          %s1741 = ssub.s32 256, 256
          %1742 = vsyncadd %s1719, %s1741
          %s1743 = smul.addr %s41, 4
          %s1744 = sadd.s32 %s42, %s1743
          %s1745 = smul.addr %s1744, 64
          %s1746 = scalar_lea.hbm %s17, %s1745
          %s1747 = sshll.u32 %s1722, 4
          %s1748 = int_to_ptr.vmem [resolvable:$true] %s1747
          %1753 = dma.vmem_to_hbm [thread:$0]  %s1748, 256, %s1746, %s1719, 64, 64, 4
        $region108: #{tpu_custom_call.1} parent=83 // pred_fallthru
          _
      $region84: #{tpu_custom_call.1} parent=5 // pred_fallthru
        _
      %p1754 = scmp.le.s32.totalorder 2, %s32
      // Predicated region
      $region109: #{tpu_custom_call.1} parent=5 // pred_check
        %p1755 = pneg %p1754
      $region110: #{tpu_custom_call.1} parent=5 // pred_check_branch
        %1757 = sbr.rel (%p1755) target = $region112
      $region111: #{tpu_custom_call.1} parent=5 // pred_region
        %s1758 = ssub.s32 %s32, 2
        // Predicated region
        $region113: #{tpu_custom_call.1} parent=111 // pred_check
          %p1759 = pneg %p423
        $region114: #{tpu_custom_call.1} parent=111 // pred_check_branch
          %1761 = sbr.rel (%p1759) target = $region116
        $region115: #{tpu_custom_call.1} parent=111 // pred_region
          %s1762 = sand.u32 %s408, 1
          %s1763 = scalar_lea.sflag [#allocation6], %s1762
          %s1764 = sand.u32 %s408, 1
          %s1765 = smul.addr %s1764, 8
          %s1766 = scalar_lea.vmem [#allocation10], %s1765
          %1767 = dma.done %s1763, 128
        $region116: #{tpu_custom_call.1} parent=111 // pred_fallthru
          _
        // Predicated region
        $region117: #{tpu_custom_call.1} parent=111 // pred_check
          %p1768 = pneg %p451
        $region118: #{tpu_custom_call.1} parent=111 // pred_check_branch
          %1770 = sbr.rel (%p1768) target = $region120
        $region119: #{tpu_custom_call.1} parent=111 // pred_region
          %s1771 = sand.u32 %s436, 1
          %s1772 = scalar_lea.sflag [#allocation12], %s1771
          %s1773 = sand.u32 %s436, 1
          %s1774 = smul.addr %s1773, 16
          %s1775 = scalar_lea.vmem [#allocation11], %s1774
          %1776 = dma.done %s1772, 256
        $region120: #{tpu_custom_call.1} parent=111 // pred_fallthru
          _
      $region112: #{tpu_custom_call.1} parent=5 // pred_fallthru
        _
    $region6: #{tpu_custom_call.1} parent=1 // loop_footer
      %s36 = sadd.s32 1, %s32
    $region7: #{tpu_custom_call.1} parent=1 // loop_footer_branch
      %31 = sbr.rel target = $region3
    $region8: #{tpu_custom_call.1} parent=1 // loop_exit
      _
    %1777 = vsyncpa [#allocation5], 1
    %s1778 = scalar_lea.sflag [#allocation5], 1
    %1779 = vsyncpa %s1778, 1
    %1780 = vsyncpa [#allocation8], 1
    %1781 = vsyncpa [#allocation6], 1
    %s1782 = scalar_lea.sflag [#allocation6], 1
    %1783 = vsyncpa %s1782, 1
    %1784 = vsyncpa [#allocation12], 1
    %s1785 = scalar_lea.sflag [#allocation12], 1
    %1786 = vsyncpa %s1785, 1

// kernel: tpu_custom_call.1
$region0: #{tpu_custom_call.1}
  #allocation0 [shape = 'u32[]', space=smem, size = 0x4, offset = 0x4, fixed_abs, tag = 'smem constant byte address 0x4 - core index']
  #allocation1 [shape = 'u32[144,128]{1,0:T(1,128)}', space=vmem, size = 0x12000, scoped, tag = 'internal scratch']
  #allocation2 [shape = 'bf16[4,8,8]{2,1,0:T(8,128)(2,1)}', space=vmem, size = 0x2000, scoped, tag = 'scratch operand']
  #allocation3 [shape = 'bf16[4,8,8]{2,1,0:T(8,128)(2,1)}', space=vmem, size = 0x2000, scoped, tag = 'scratch operand']
  %s0 = inlined_call_operand.vmem [shape: f32[2,8,32], index: 0, kind: input, shape index: {}]
  %s1 = inlined_call_operand.vmem [shape: f32[2,8,32], index: 1, kind: input, shape index: {}]
  %s2 = inlined_call_operand.vmem [shape: bf16[32,32], index: 2, kind: input, shape index: {}]
  %s3 = inlined_call_operand.vmem [shape: f32[1,32], index: 3, kind: input, shape index: {}]
  %s4 = inlined_call_operand.vmem [shape: bf16[32,64], index: 4, kind: input, shape index: {}]
  %s5 = inlined_call_operand.vmem [shape: f32[1,64], index: 5, kind: input, shape index: {}]
  %s6 = inlined_call_operand.vmem [shape: bf16[4,8,32], index: 6, kind: input, shape index: {}]
  %s7 = inlined_call_operand.hbm [shape: f32[1,32], index: 7, kind: input, shape index: {}]
  %s8 = inlined_call_operand.hbm [shape: f32[1,32], index: 8, kind: input, shape index: {}]
  %s9 = inlined_call_operand.hbm [shape: f32[1,32], index: 9, kind: input, shape index: {}]
  %s10 = inlined_call_operand.vmem [shape: bf16[32,128], index: 10, kind: input, shape index: {}]
  %s11 = inlined_call_operand.vmem [shape: f32[1,128], index: 11, kind: input, shape index: {}]
  %s12 = inlined_call_operand.vmem [shape: bf16[128,32], index: 12, kind: input, shape index: {}]
  %s13 = inlined_call_operand.vmem [shape: f32[1,32], index: 13, kind: input, shape index: {}]
  %s14 = inlined_call_operand.vmem [shape: f32[1,32], index: 14, kind: input, shape index: {}]
  %s15 = inlined_call_operand.vmem [shape: f32[1,32], index: 15, kind: input, shape index: {}]
  %s16 = inlined_call_operand.hbm [shape: f32[2,8,32], index: 16, kind: output, shape index: {0}]
  %s17 = inlined_call_operand.hbm [shape: bf16[2,4,8,8], index: 17, kind: output, shape index: {1}]
  %18 = xla_tuple %s16, %s17
  %s19 = sld [smem:[#allocation0]]
  $region121: #{tpu_custom_call.1} parent=0
    _
  %s21 = ssub.s32 1, %s19
  %s22 = scalar_select 0, %s21, %s19
  $region1: #{tpu_custom_call.1} parent=0
    #allocation4 [shape = 'u8[512]{0}', space=vmem, size = 0x400, scoped, tag = 'input window, operand 7, single buffered']
    #allocation5 [shape = 's32[2]{0}', space=sflag, size = 0x8, scoped, tag = 'scoped memory for tpu_custom_call.1']
    #allocation6 [shape = 's32[2]{0}', space=sflag, size = 0x8, scoped, tag = 'scoped memory for tpu_custom_call.1']
    #allocation7 [shape = 'u8[512]{0}', space=vmem, size = 0x400, scoped, tag = 'input window, operand 8, single buffered']
    #allocation8 [shape = 's32[1]{0}', space=sflag, size = 0x4, scoped, tag = 'scoped memory for tpu_custom_call.1']
    #allocation9 [shape = 'u8[512]{0}', space=vmem, size = 0x400, scoped, tag = 'input window, operand 9, single buffered']
    #allocation10 [shape = 'u8[8192]{0}', space=vmem, size = 0x2000, scoped, tag = 'output window, operand 0']
    #allocation11 [shape = 'u8[16384]{0}', space=vmem, size = 0x4000, scoped, tag = 'output window, operand 1']
    #allocation12 [shape = 's32[2]{0}', space=sflag, size = 0x8, scoped, tag = 'scoped memory for tpu_custom_call.1']
    %23 = vsyncpa [#allocation5], 0
    %24 = vsyncpa [#allocation8], 0
    %25 = vsyncpa [#allocation6], 0
    %s26 = scalar_lea.sflag [#allocation6], 1
    %27 = vsyncpa %s26, 0
    %28 = vsyncpa [#allocation12], 0
    %s29 = scalar_lea.sflag [#allocation12], 1
    %30 = vsyncpa %s29, 0
    loop: start=0, step=1, limit=4
    $region2: #{tpu_custom_call.1} parent=1 // loop_pre_header
      _
    $region3: #{tpu_custom_call.1} parent=1 // loop_header
      %s32 = sphi 0, %s36
      %p33 = scmp.ge.s32.totalorder %s32, 4
      %s39 = sphi 0, %s51
      %s40 = sphi 0, %s47
      %s41 = sphi 0, %s39
      %s42 = sphi 0, %s40
      %s43 = sphi 0, %s41
      %s44 = sphi 0, %s42
      %s56 = sphi 0, %s58
      %s59 = sphi 0, %s56
      %s60 = sphi 0, %s59
      %s76 = sphi 0, %s60
      %s82 = sphi 0, %s84
      %s85 = sphi 0, %s82
      %s86 = sphi 0, %s85
      %s102 = sphi 0, %s86
      %s106 = sphi 0, %s106
      %s108 = sphi 0, %s106
      %s109 = sphi 0, %s108
      %s123 = sphi 0, %s109
      %s127 = sphi 0, %s127
      %s129 = sphi 0, %s127
      %s130 = sphi 0, %s129
      %s144 = sphi 0, %s130
      %s148 = sphi 0, %s148
      %s150 = sphi 0, %s148
      %s151 = sphi 0, %s150
      %s165 = sphi 0, %s151
      %s169 = sphi 0, %s169
      %s171 = sphi 0, %s169
      %s172 = sphi 0, %s171
      %s186 = sphi 0, %s172
      %s190 = sphi 0, %s190
      %s192 = sphi 0, %s190
      %s193 = sphi 0, %s192
      %s207 = sphi 0, %s193
      %s211 = sphi 0, %s211
      %s213 = sphi 0, %s211
      %s214 = sphi 0, %s213
      %s228 = sphi 0, %s214
      %s232 = sphi 0, %s232
      %s234 = sphi 0, %s232
      %s235 = sphi 0, %s234
      %s249 = sphi 0, %s235
      %s253 = sphi 0, %s253
      %s255 = sphi 0, %s253
      %s256 = sphi 0, %s255
      %s270 = sphi 0, %s256
      %s274 = sphi 0, %s274
      %s276 = sphi 0, %s274
      %s277 = sphi 0, %s276
      %s291 = sphi 0, %s277
      %s295 = sphi 0, %s295
      %s297 = sphi 0, %s295
      %s298 = sphi 0, %s297
      %s312 = sphi 0, %s298
      %s316 = sphi 0, %s316
      %s318 = sphi 0, %s316
      %s319 = sphi 0, %s318
      %s333 = sphi 0, %s319
      %s337 = sphi 0, %s337
      %s339 = sphi 0, %s337
      %s340 = sphi 0, %s339
      %s354 = sphi 0, %s340
      %s358 = sphi 0, %s358
      %s360 = sphi 0, %s358
      %s361 = sphi 0, %s360
      %s375 = sphi 0, %s361
      %s379 = sphi 0, %s379
      %s381 = sphi 0, %s379
      %s382 = sphi 0, %s381
      %s396 = sphi 0, %s382
      %s404 = sphi 0, %s406
      %s407 = sphi 0, %s404
      %s408 = sphi 0, %s407
      %s424 = sphi 0, %s408
      %s432 = sphi 0, %s434
      %s435 = sphi 0, %s432
      %s436 = sphi 0, %s435
      %s452 = sphi 0, %s436
    $region4: #{tpu_custom_call.1} parent=1 // loop_header_branch
      %35 = sbr.rel (%p33) target = $region8
    $region5: #{tpu_custom_call.1} parent=1 // loop_body
      %s37 = ssub.s32 %s32, 1
      %s38 = ssub.s32 %s32, 2
      %s45 = sadd.s32 1, %s40
      %p46 = scmp.ge.s32.totalorder %s45, 1
      %s47 = scalar_select %p46, 0, %s45
      %s48 = sadd.s32 1, %s39
      %s49 = scalar_select %p46, %s48, %s39
      %p50 = scmp.ge.s32.totalorder %s49, 2
      %s51 = scalar_select %p50, 0, %s49
      %s52 = ssub.s32 %s39, %s51
      %s53 = ssub.s32 %s40, %s47
      %s54 = sor.u32 %s52, %s53
      %p55 = scmp.eq.s32.totalorder %s54, 0
      %s57 = sadd.s32 %s56, 1
      %s58 = scalar_select %p55, %s56, %s57
      %p61 = pneg %p55
      %p62 = scmp.eq.s32.totalorder %s32, 1
      %p63 = por %p61, %p62
      %p64 = scmp.ne.s32.totalorder %s56, %s59
      %p65 = scmp.eq.s32.totalorder %s32, 0
      %p66 = por %p64, %p65
      %p67 = scmp.ne.s32.totalorder %s56, %s59
      %p68 = scmp.eq.s32.totalorder %s37, 1
      %p69 = por %p67, %p68
      %p70 = scmp.ne.s32.totalorder %s59, %s60
      %p71 = scmp.eq.s32.totalorder %s37, 0
      %p72 = por %p70, %p71
      %p73 = scmp.ne.s32.totalorder %s59, %s60
      %p74 = scmp.eq.s32.totalorder %s38, 1
      %p75 = por %p73, %p74
      %p77 = scmp.ne.s32.totalorder %s60, %s76
      %p78 = scmp.eq.s32.totalorder %s38, 0
      %p79 = por %p77, %p78
      %s80 = ssub.s32 %s39, %s51
      %p81 = scmp.eq.s32.totalorder %s80, 0
      %s83 = sadd.s32 %s82, 1
      %s84 = scalar_select %p81, %s82, %s83
      %p87 = pneg %p81
      %p88 = scmp.eq.s32.totalorder %s32, 1
      %p89 = por %p87, %p88
      %p90 = scmp.ne.s32.totalorder %s82, %s85
      %p91 = scmp.eq.s32.totalorder %s32, 0
      %p92 = por %p90, %p91
      %p93 = scmp.ne.s32.totalorder %s82, %s85
      %p94 = scmp.eq.s32.totalorder %s37, 1
      %p95 = por %p93, %p94
      %p96 = scmp.ne.s32.totalorder %s85, %s86
      %p97 = scmp.eq.s32.totalorder %s37, 0
      %p98 = por %p96, %p97
      %p99 = scmp.ne.s32.totalorder %s85, %s86
      %p100 = scmp.eq.s32.totalorder %s38, 1
      %p101 = por %p99, %p100
      %p103 = scmp.ne.s32.totalorder %s86, %s102
      %p104 = scmp.eq.s32.totalorder %s38, 0
      %p105 = por %p103, %p104
      %s107 = sadd.s32 %s106, 1
      %p110 = scmp.eq.s32.totalorder %s32, 1
      %p111 = scmp.ne.s32.totalorder %s106, %s108
      %p112 = scmp.eq.s32.totalorder %s32, 0
      %p113 = por %p111, %p112
      %p114 = scmp.ne.s32.totalorder %s106, %s108
      %p115 = scmp.eq.s32.totalorder %s37, 1
      %p116 = por %p114, %p115
      %p117 = scmp.ne.s32.totalorder %s108, %s109
      %p118 = scmp.eq.s32.totalorder %s37, 0
      %p119 = por %p117, %p118
      %p120 = scmp.ne.s32.totalorder %s108, %s109
      %p121 = scmp.eq.s32.totalorder %s38, 1
      %p122 = por %p120, %p121
      %p124 = scmp.ne.s32.totalorder %s109, %s123
      %p125 = scmp.eq.s32.totalorder %s38, 0
      %p126 = por %p124, %p125
      %s128 = sadd.s32 %s127, 1
      %p131 = scmp.eq.s32.totalorder %s32, 1
      %p132 = scmp.ne.s32.totalorder %s127, %s129
      %p133 = scmp.eq.s32.totalorder %s32, 0
      %p134 = por %p132, %p133
      %p135 = scmp.ne.s32.totalorder %s127, %s129
      %p136 = scmp.eq.s32.totalorder %s37, 1
      %p137 = por %p135, %p136
      %p138 = scmp.ne.s32.totalorder %s129, %s130
      %p139 = scmp.eq.s32.totalorder %s37, 0
      %p140 = por %p138, %p139
      %p141 = scmp.ne.s32.totalorder %s129, %s130
      %p142 = scmp.eq.s32.totalorder %s38, 1
      %p143 = por %p141, %p142
      %p145 = scmp.ne.s32.totalorder %s130, %s144
      %p146 = scmp.eq.s32.totalorder %s38, 0
      %p147 = por %p145, %p146
      %s149 = sadd.s32 %s148, 1
      %p152 = scmp.eq.s32.totalorder %s32, 1
      %p153 = scmp.ne.s32.totalorder %s148, %s150
      %p154 = scmp.eq.s32.totalorder %s32, 0
      %p155 = por %p153, %p154
      %p156 = scmp.ne.s32.totalorder %s148, %s150
      %p157 = scmp.eq.s32.totalorder %s37, 1
      %p158 = por %p156, %p157
      %p159 = scmp.ne.s32.totalorder %s150, %s151
      %p160 = scmp.eq.s32.totalorder %s37, 0
      %p161 = por %p159, %p160
      %p162 = scmp.ne.s32.totalorder %s150, %s151
      %p163 = scmp.eq.s32.totalorder %s38, 1
      %p164 = por %p162, %p163
      %p166 = scmp.ne.s32.totalorder %s151, %s165
      %p167 = scmp.eq.s32.totalorder %s38, 0
      %p168 = por %p166, %p167
      %s170 = sadd.s32 %s169, 1
      %p173 = scmp.eq.s32.totalorder %s32, 1
      %p174 = scmp.ne.s32.totalorder %s169, %s171
      %p175 = scmp.eq.s32.totalorder %s32, 0
      %p176 = por %p174, %p175
      %p177 = scmp.ne.s32.totalorder %s169, %s171
      %p178 = scmp.eq.s32.totalorder %s37, 1
      %p179 = por %p177, %p178
      %p180 = scmp.ne.s32.totalorder %s171, %s172
      %p181 = scmp.eq.s32.totalorder %s37, 0
      %p182 = por %p180, %p181
      %p183 = scmp.ne.s32.totalorder %s171, %s172
      %p184 = scmp.eq.s32.totalorder %s38, 1
      %p185 = por %p183, %p184
      %p187 = scmp.ne.s32.totalorder %s172, %s186
      %p188 = scmp.eq.s32.totalorder %s38, 0
      %p189 = por %p187, %p188
      %s191 = sadd.s32 %s190, 1
      %p194 = scmp.eq.s32.totalorder %s32, 1
      %p195 = scmp.ne.s32.totalorder %s190, %s192
      %p196 = scmp.eq.s32.totalorder %s32, 0
      %p197 = por %p195, %p196
      %p198 = scmp.ne.s32.totalorder %s190, %s192
      %p199 = scmp.eq.s32.totalorder %s37, 1
      %p200 = por %p198, %p199
      %p201 = scmp.ne.s32.totalorder %s192, %s193
      %p202 = scmp.eq.s32.totalorder %s37, 0
      %p203 = por %p201, %p202
      %p204 = scmp.ne.s32.totalorder %s192, %s193
      %p205 = scmp.eq.s32.totalorder %s38, 1
      %p206 = por %p204, %p205
      %p208 = scmp.ne.s32.totalorder %s193, %s207
      %p209 = scmp.eq.s32.totalorder %s38, 0
      %p210 = por %p208, %p209
      %s212 = sadd.s32 %s211, 1
      %p215 = scmp.eq.s32.totalorder %s32, 1
      %p216 = scmp.ne.s32.totalorder %s211, %s213
      %p217 = scmp.eq.s32.totalorder %s32, 0
      %p218 = por %p216, %p217
      %p219 = scmp.ne.s32.totalorder %s211, %s213
      %p220 = scmp.eq.s32.totalorder %s37, 1
      %p221 = por %p219, %p220
      %p222 = scmp.ne.s32.totalorder %s213, %s214
      %p223 = scmp.eq.s32.totalorder %s37, 0
      %p224 = por %p222, %p223
      %p225 = scmp.ne.s32.totalorder %s213, %s214
      %p226 = scmp.eq.s32.totalorder %s38, 1
      %p227 = por %p225, %p226
      %p229 = scmp.ne.s32.totalorder %s214, %s228
      %p230 = scmp.eq.s32.totalorder %s38, 0
      %p231 = por %p229, %p230
      %s233 = sadd.s32 %s232, 1
      %p236 = scmp.eq.s32.totalorder %s32, 1
      %p237 = scmp.ne.s32.totalorder %s232, %s234
      %p238 = scmp.eq.s32.totalorder %s32, 0
      %p239 = por %p237, %p238
      %p240 = scmp.ne.s32.totalorder %s232, %s234
      %p241 = scmp.eq.s32.totalorder %s37, 1
      %p242 = por %p240, %p241
      %p243 = scmp.ne.s32.totalorder %s234, %s235
      %p244 = scmp.eq.s32.totalorder %s37, 0
      %p245 = por %p243, %p244
      %p246 = scmp.ne.s32.totalorder %s234, %s235
      %p247 = scmp.eq.s32.totalorder %s38, 1
      %p248 = por %p246, %p247
      %p250 = scmp.ne.s32.totalorder %s235, %s249
      %p251 = scmp.eq.s32.totalorder %s38, 0
      %p252 = por %p250, %p251
      %s254 = sadd.s32 %s253, 1
      %p257 = scmp.eq.s32.totalorder %s32, 1
      %p258 = scmp.ne.s32.totalorder %s253, %s255
      %p259 = scmp.eq.s32.totalorder %s32, 0
      %p260 = por %p258, %p259
      %p261 = scmp.ne.s32.totalorder %s253, %s255
      %p262 = scmp.eq.s32.totalorder %s37, 1
      %p263 = por %p261, %p262
      %p264 = scmp.ne.s32.totalorder %s255, %s256
      %p265 = scmp.eq.s32.totalorder %s37, 0
      %p266 = por %p264, %p265
      %p267 = scmp.ne.s32.totalorder %s255, %s256
      %p268 = scmp.eq.s32.totalorder %s38, 1
      %p269 = por %p267, %p268
      %p271 = scmp.ne.s32.totalorder %s256, %s270
      %p272 = scmp.eq.s32.totalorder %s38, 0
      %p273 = por %p271, %p272
      %s275 = sadd.s32 %s274, 1
      %p278 = scmp.eq.s32.totalorder %s32, 1
      %p279 = scmp.ne.s32.totalorder %s274, %s276
      %p280 = scmp.eq.s32.totalorder %s32, 0
      %p281 = por %p279, %p280
      %p282 = scmp.ne.s32.totalorder %s274, %s276
      %p283 = scmp.eq.s32.totalorder %s37, 1
      %p284 = por %p282, %p283
      %p285 = scmp.ne.s32.totalorder %s276, %s277
      %p286 = scmp.eq.s32.totalorder %s37, 0
      %p287 = por %p285, %p286
      %p288 = scmp.ne.s32.totalorder %s276, %s277
      %p289 = scmp.eq.s32.totalorder %s38, 1
      %p290 = por %p288, %p289
      %p292 = scmp.ne.s32.totalorder %s277, %s291
      %p293 = scmp.eq.s32.totalorder %s38, 0
      %p294 = por %p292, %p293
      %s296 = sadd.s32 %s295, 1
      %p299 = scmp.eq.s32.totalorder %s32, 1
      %p300 = scmp.ne.s32.totalorder %s295, %s297
      %p301 = scmp.eq.s32.totalorder %s32, 0
      %p302 = por %p300, %p301
      %p303 = scmp.ne.s32.totalorder %s295, %s297
      %p304 = scmp.eq.s32.totalorder %s37, 1
      %p305 = por %p303, %p304
      %p306 = scmp.ne.s32.totalorder %s297, %s298
      %p307 = scmp.eq.s32.totalorder %s37, 0
      %p308 = por %p306, %p307
      %p309 = scmp.ne.s32.totalorder %s297, %s298
      %p310 = scmp.eq.s32.totalorder %s38, 1
      %p311 = por %p309, %p310
      %p313 = scmp.ne.s32.totalorder %s298, %s312
      %p314 = scmp.eq.s32.totalorder %s38, 0
      %p315 = por %p313, %p314
      %s317 = sadd.s32 %s316, 1
      %p320 = scmp.eq.s32.totalorder %s32, 1
      %p321 = scmp.ne.s32.totalorder %s316, %s318
      %p322 = scmp.eq.s32.totalorder %s32, 0
      %p323 = por %p321, %p322
      %p324 = scmp.ne.s32.totalorder %s316, %s318
      %p325 = scmp.eq.s32.totalorder %s37, 1
      %p326 = por %p324, %p325
      %p327 = scmp.ne.s32.totalorder %s318, %s319
      %p328 = scmp.eq.s32.totalorder %s37, 0
      %p329 = por %p327, %p328
      %p330 = scmp.ne.s32.totalorder %s318, %s319
      %p331 = scmp.eq.s32.totalorder %s38, 1
      %p332 = por %p330, %p331
      %p334 = scmp.ne.s32.totalorder %s319, %s333
      %p335 = scmp.eq.s32.totalorder %s38, 0
      %p336 = por %p334, %p335
      %s338 = sadd.s32 %s337, 1
      %p341 = scmp.eq.s32.totalorder %s32, 1
      %p342 = scmp.ne.s32.totalorder %s337, %s339
      %p343 = scmp.eq.s32.totalorder %s32, 0
      %p344 = por %p342, %p343
      %p345 = scmp.ne.s32.totalorder %s337, %s339
      %p346 = scmp.eq.s32.totalorder %s37, 1
      %p347 = por %p345, %p346
      %p348 = scmp.ne.s32.totalorder %s339, %s340
      %p349 = scmp.eq.s32.totalorder %s37, 0
      %p350 = por %p348, %p349
      %p351 = scmp.ne.s32.totalorder %s339, %s340
      %p352 = scmp.eq.s32.totalorder %s38, 1
      %p353 = por %p351, %p352
      %p355 = scmp.ne.s32.totalorder %s340, %s354
      %p356 = scmp.eq.s32.totalorder %s38, 0
      %p357 = por %p355, %p356
      %s359 = sadd.s32 %s358, 1
      %p362 = scmp.eq.s32.totalorder %s32, 1
      %p363 = scmp.ne.s32.totalorder %s358, %s360
      %p364 = scmp.eq.s32.totalorder %s32, 0
      %p365 = por %p363, %p364
      %p366 = scmp.ne.s32.totalorder %s358, %s360
      %p367 = scmp.eq.s32.totalorder %s37, 1
      %p368 = por %p366, %p367
      %p369 = scmp.ne.s32.totalorder %s360, %s361
      %p370 = scmp.eq.s32.totalorder %s37, 0
      %p371 = por %p369, %p370
      %p372 = scmp.ne.s32.totalorder %s360, %s361
      %p373 = scmp.eq.s32.totalorder %s38, 1
      %p374 = por %p372, %p373
      %p376 = scmp.ne.s32.totalorder %s361, %s375
      %p377 = scmp.eq.s32.totalorder %s38, 0
      %p378 = por %p376, %p377
      %s380 = sadd.s32 %s379, 1
      %p383 = scmp.eq.s32.totalorder %s32, 1
      %p384 = scmp.ne.s32.totalorder %s379, %s381
      %p385 = scmp.eq.s32.totalorder %s32, 0
      %p386 = por %p384, %p385
      %p387 = scmp.ne.s32.totalorder %s379, %s381
      %p388 = scmp.eq.s32.totalorder %s37, 1
      %p389 = por %p387, %p388
      %p390 = scmp.ne.s32.totalorder %s381, %s382
      %p391 = scmp.eq.s32.totalorder %s37, 0
      %p392 = por %p390, %p391
      %p393 = scmp.ne.s32.totalorder %s381, %s382
      %p394 = scmp.eq.s32.totalorder %s38, 1
      %p395 = por %p393, %p394
      %p397 = scmp.ne.s32.totalorder %s382, %s396
      %p398 = scmp.eq.s32.totalorder %s38, 0
      %p399 = por %p397, %p398
      %s400 = ssub.s32 %s39, %s51
      %s401 = ssub.s32 %s40, %s47
      %s402 = sor.u32 %s400, %s401
      %p403 = scmp.eq.s32.totalorder %s402, 0
      %s405 = sadd.s32 %s404, 1
      %s406 = scalar_select %p403, %s404, %s405
      %p409 = pneg %p403
      %p410 = scmp.eq.s32.totalorder %s32, 1
      %p411 = por %p409, %p410
      %p412 = scmp.ne.s32.totalorder %s404, %s407
      %p413 = scmp.eq.s32.totalorder %s32, 0
      %p414 = por %p412, %p413
      %p415 = scmp.ne.s32.totalorder %s404, %s407
      %p416 = scmp.eq.s32.totalorder %s37, 1
      %p417 = por %p415, %p416
      %p418 = scmp.ne.s32.totalorder %s407, %s408
      %p419 = scmp.eq.s32.totalorder %s37, 0
      %p420 = por %p418, %p419
      %p421 = scmp.ne.s32.totalorder %s407, %s408
      %p422 = scmp.eq.s32.totalorder %s38, 1
      %p423 = por %p421, %p422
      %p425 = scmp.ne.s32.totalorder %s408, %s424
      %p426 = scmp.eq.s32.totalorder %s38, 0
      %p427 = por %p425, %p426
      %s428 = ssub.s32 %s39, %s51
      %s429 = ssub.s32 %s40, %s47
      %s430 = sor.u32 %s428, %s429
      %p431 = scmp.eq.s32.totalorder %s430, 0
      %s433 = sadd.s32 %s432, 1
      %s434 = scalar_select %p431, %s432, %s433
      %p437 = pneg %p431
      %p438 = scmp.eq.s32.totalorder %s32, 1
      %p439 = por %p437, %p438
      %p440 = scmp.ne.s32.totalorder %s432, %s435
      %p441 = scmp.eq.s32.totalorder %s32, 0
      %p442 = por %p440, %p441
      %p443 = scmp.ne.s32.totalorder %s432, %s435
      %p444 = scmp.eq.s32.totalorder %s37, 1
      %p445 = por %p443, %p444
      %p446 = scmp.ne.s32.totalorder %s435, %s436
      %p447 = scmp.eq.s32.totalorder %s37, 0
      %p448 = por %p446, %p447
      %p449 = scmp.ne.s32.totalorder %s435, %s436
      %p450 = scmp.eq.s32.totalorder %s38, 1
      %p451 = por %p449, %p450
      %p453 = scmp.ne.s32.totalorder %s436, %s452
      %p454 = scmp.eq.s32.totalorder %s38, 0
      %p455 = por %p453, %p454
      %p456 = scmp.le.s32.totalorder 1, %s32
      %p457 = scmp.lt.s32.totalorder %s32, 3
      %p458 = pnand %p456, %p457
      %p459 = pneg %p458
      // Predicated region
      $region9: #{tpu_custom_call.1} parent=5 // pred_check
        _
      $region10: #{tpu_custom_call.1} parent=5 // pred_check_branch
        %461 = sbr.rel (%p458) target = $region12
      $region11: #{tpu_custom_call.1} parent=5 // pred_region
        %s462 = ssub.s32 %s32, 1
        // Predicated region
        $region13: #{tpu_custom_call.1} parent=11 // pred_check
          %p463 = pneg %p119
        $region14: #{tpu_custom_call.1} parent=11 // pred_check_branch
          %465 = sbr.rel (%p463) target = $region16
        $region15: #{tpu_custom_call.1} parent=11 // pred_region
          _
        $region16: #{tpu_custom_call.1} parent=11 // pred_fallthru
          _
        // Predicated region
        $region17: #{tpu_custom_call.1} parent=11 // pred_check
          %p466 = pneg %p140
        $region18: #{tpu_custom_call.1} parent=11 // pred_check_branch
          %468 = sbr.rel (%p466) target = $region20
        $region19: #{tpu_custom_call.1} parent=11 // pred_region
          _
        $region20: #{tpu_custom_call.1} parent=11 // pred_fallthru
          _
        // Predicated region
        $region21: #{tpu_custom_call.1} parent=11 // pred_check
          %p469 = pneg %p161
        $region22: #{tpu_custom_call.1} parent=11 // pred_check_branch
          %471 = sbr.rel (%p469) target = $region24
        $region23: #{tpu_custom_call.1} parent=11 // pred_region
          _
        $region24: #{tpu_custom_call.1} parent=11 // pred_fallthru
          _
        // Predicated region
        $region25: #{tpu_custom_call.1} parent=11 // pred_check
          %p472 = pneg %p182
        $region26: #{tpu_custom_call.1} parent=11 // pred_check_branch
          %474 = sbr.rel (%p472) target = $region28
        $region27: #{tpu_custom_call.1} parent=11 // pred_region
          _
        $region28: #{tpu_custom_call.1} parent=11 // pred_fallthru
          _
        // Predicated region
        $region29: #{tpu_custom_call.1} parent=11 // pred_check
          %p475 = pneg %p203
        $region30: #{tpu_custom_call.1} parent=11 // pred_check_branch
          %477 = sbr.rel (%p475) target = $region32
        $region31: #{tpu_custom_call.1} parent=11 // pred_region
          _
        $region32: #{tpu_custom_call.1} parent=11 // pred_fallthru
          _
        // Predicated region
        $region33: #{tpu_custom_call.1} parent=11 // pred_check
          %p478 = pneg %p224
        $region34: #{tpu_custom_call.1} parent=11 // pred_check_branch
          %480 = sbr.rel (%p478) target = $region36
        $region35: #{tpu_custom_call.1} parent=11 // pred_region
          %s482 = ssub.s32 16, 16
          %483 = vsyncadd [#allocation5], %s482
          %s485 = sshll.u32 [#allocation4], 4
          %s486 = int_to_ptr.vmem [resolvable:$true] %s485
          %488 = dma.hbm_to_vmem [thread:$0]  %s7, 16, %s486, [#allocation5]
        $region36: #{tpu_custom_call.1} parent=11 // pred_fallthru
          _
        // Predicated region
        $region37: #{tpu_custom_call.1} parent=11 // pred_check
          %p489 = pneg %p245
        $region38: #{tpu_custom_call.1} parent=11 // pred_check_branch
          %491 = sbr.rel (%p489) target = $region40
        $region39: #{tpu_custom_call.1} parent=11 // pred_region
          %s493 = ssub.s32 16, 16
          %494 = vsyncadd [#allocation8], %s493
          %s496 = sshll.u32 [#allocation7], 4
          %s497 = int_to_ptr.vmem [resolvable:$true] %s496
          %499 = dma.hbm_to_vmem [thread:$0]  %s8, 16, %s497, [#allocation8]
        $region40: #{tpu_custom_call.1} parent=11 // pred_fallthru
          _
        // Predicated region
        $region41: #{tpu_custom_call.1} parent=11 // pred_check
          %p500 = pneg %p266
        $region42: #{tpu_custom_call.1} parent=11 // pred_check_branch
          %502 = sbr.rel (%p500) target = $region44
        $region43: #{tpu_custom_call.1} parent=11 // pred_region
          %s504 = ssub.s32 16, 16
          %505 = vsyncadd [#allocation8], %s504
          %s507 = sshll.u32 [#allocation9], 4
          %s508 = int_to_ptr.vmem [resolvable:$true] %s507
          %510 = dma.hbm_to_vmem [thread:$0]  %s9, 16, %s508, [#allocation8]
        $region44: #{tpu_custom_call.1} parent=11 // pred_fallthru
          _
        // Predicated region
        $region45: #{tpu_custom_call.1} parent=11 // pred_check
          %p511 = pneg %p287
        $region46: #{tpu_custom_call.1} parent=11 // pred_check_branch
          %513 = sbr.rel (%p511) target = $region48
        $region47: #{tpu_custom_call.1} parent=11 // pred_region
          _
        $region48: #{tpu_custom_call.1} parent=11 // pred_fallthru
          _
        // Predicated region
        $region49: #{tpu_custom_call.1} parent=11 // pred_check
          %p514 = pneg %p308
        $region50: #{tpu_custom_call.1} parent=11 // pred_check_branch
          %516 = sbr.rel (%p514) target = $region52
        $region51: #{tpu_custom_call.1} parent=11 // pred_region
          _
        $region52: #{tpu_custom_call.1} parent=11 // pred_fallthru
          _
        // Predicated region
        $region53: #{tpu_custom_call.1} parent=11 // pred_check
          %p517 = pneg %p329
        $region54: #{tpu_custom_call.1} parent=11 // pred_check_branch
          %519 = sbr.rel (%p517) target = $region56
        $region55: #{tpu_custom_call.1} parent=11 // pred_region
          _
        $region56: #{tpu_custom_call.1} parent=11 // pred_fallthru
          _
        // Predicated region
        $region57: #{tpu_custom_call.1} parent=11 // pred_check
          %p520 = pneg %p350
        $region58: #{tpu_custom_call.1} parent=11 // pred_check_branch
          %522 = sbr.rel (%p520) target = $region60
        $region59: #{tpu_custom_call.1} parent=11 // pred_region
          _
        $region60: #{tpu_custom_call.1} parent=11 // pred_fallthru
          _
        // Predicated region
        $region61: #{tpu_custom_call.1} parent=11 // pred_check
          %p523 = pneg %p371
        $region62: #{tpu_custom_call.1} parent=11 // pred_check_branch
          %525 = sbr.rel (%p523) target = $region64
        $region63: #{tpu_custom_call.1} parent=11 // pred_region
          _
        $region64: #{tpu_custom_call.1} parent=11 // pred_fallthru
          _
        // Predicated region
        $region65: #{tpu_custom_call.1} parent=11 // pred_check
          %p526 = pneg %p392
        $region66: #{tpu_custom_call.1} parent=11 // pred_check_branch
          %528 = sbr.rel (%p526) target = $region68
        $region67: #{tpu_custom_call.1} parent=11 // pred_region
          _
        $region68: #{tpu_custom_call.1} parent=11 // pred_fallthru
          _
      $region12: #{tpu_custom_call.1} parent=5 // pred_fallthru
        _
      %p529 = scmp.lt.s32.totalorder %s32, 2
      // Predicated region
      $region69: #{tpu_custom_call.1} parent=5 // pred_check
        %p530 = pneg %p529
      $region70: #{tpu_custom_call.1} parent=5 // pred_check_branch
        %532 = sbr.rel (%p530) target = $region72
      $region71: #{tpu_custom_call.1} parent=5 // pred_region
        // Predicated region
        $region73: #{tpu_custom_call.1} parent=71 // pred_check
          %p533 = pneg %p66
        $region74: #{tpu_custom_call.1} parent=71 // pred_check_branch
          %535 = sbr.rel (%p533) target = $region76
        $region75: #{tpu_custom_call.1} parent=71 // pred_region
          %p536 = scmp.lt.s32.totalorder %s39, 1
          %s537 = scalar_select %p536, %s39, 1
          %p538 = scmp.lt.s32.totalorder %s40, 0
          %s539 = scalar_select %p538, %s40, 0
          %s540 = sadd.s32 %s539, %s537
          %s541 = smul.addr %s540, 8
          %s542 = scalar_lea.vmem %s0, %s541
        $region76: #{tpu_custom_call.1} parent=71 // pred_fallthru
          _
        // Predicated region
        $region77: #{tpu_custom_call.1} parent=71 // pred_check
          %p543 = pneg %p92
        $region78: #{tpu_custom_call.1} parent=71 // pred_check_branch
          %545 = sbr.rel (%p543) target = $region80
        $region79: #{tpu_custom_call.1} parent=71 // pred_region
          %p546 = scmp.lt.s32.totalorder %s39, 1
          %s547 = scalar_select %p546, %s39, 1
          %s548 = smul.addr %s547, 8
          %s549 = scalar_lea.vmem %s1, %s548
        $region80: #{tpu_custom_call.1} parent=71 // pred_fallthru
          _
      $region72: #{tpu_custom_call.1} parent=5 // pred_fallthru
        _
      %p550 = scmp.le.s32.totalorder 1, %s32
      %p551 = scmp.lt.s32.totalorder %s32, 3
      %p552 = pnand %p550, %p551
      %p553 = pneg %p552
      // Predicated region
      $region81: #{tpu_custom_call.1} parent=5 // pred_check
        _
      $region82: #{tpu_custom_call.1} parent=5 // pred_check_branch
        %555 = sbr.rel (%p552) target = $region84
      $region83: #{tpu_custom_call.1} parent=5 // pred_region
        %s556 = ssub.s32 %s32, 1
        // Predicated region
        $region85: #{tpu_custom_call.1} parent=83 // pred_check
          %p557 = pneg %p224
        $region86: #{tpu_custom_call.1} parent=83 // pred_check_branch
          %559 = sbr.rel (%p557) target = $region88
        $region87: #{tpu_custom_call.1} parent=83 // pred_region
          %560 = dma.done [#allocation5], 16
        $region88: #{tpu_custom_call.1} parent=83 // pred_fallthru
          _
        // Predicated region
        $region89: #{tpu_custom_call.1} parent=83 // pred_check
          %p561 = pneg %p245
        $region90: #{tpu_custom_call.1} parent=83 // pred_check_branch
          %563 = sbr.rel (%p561) target = $region92
        $region91: #{tpu_custom_call.1} parent=83 // pred_region
          %564 = dma.done [#allocation8], 16
        $region92: #{tpu_custom_call.1} parent=83 // pred_fallthru
          _
        // Predicated region
        $region93: #{tpu_custom_call.1} parent=83 // pred_check
          %p565 = pneg %p266
        $region94: #{tpu_custom_call.1} parent=83 // pred_check_branch
          %567 = sbr.rel (%p565) target = $region96
        $region95: #{tpu_custom_call.1} parent=83 // pred_region
          %568 = dma.done [#allocation8], 16
        $region96: #{tpu_custom_call.1} parent=83 // pred_fallthru
          _
        %p569 = scmp.lt.s32.totalorder %s41, 1
        %s570 = scalar_select %p569, %s41, 1
        %p571 = scmp.lt.s32.totalorder %s42, 0
        %s572 = scalar_select %p571, %s42, 0
        %s573 = sadd.s32 %s572, %s570
        %s574 = smul.addr %s573, 8
        %s575 = scalar_lea.vmem %s0, %s574
        %p576 = pneg %p72
        %p577 = pneg %p69
        %p578 = scmp.lt.s32.totalorder %s41, 1
        %s579 = scalar_select %p578, %s41, 1
        %s580 = smul.addr %s579, 8
        %s581 = scalar_lea.vmem %s1, %s580
        %p582 = pneg %p98
        %p583 = pneg %p95
        %p584 = pneg %p119
        %p585 = pneg %p116
        %p586 = pneg %p140
        %p587 = pneg %p137
        %p588 = pneg %p161
        %p589 = pneg %p158
        %p590 = pneg %p182
        %p591 = pneg %p179
        %p592 = pneg %p203
        %p593 = pneg %p200
        %p594 = pneg %p224
        %p595 = pneg %p221
        %p596 = pneg %p245
        %p597 = pneg %p242
        %p598 = pneg %p266
        %p599 = pneg %p263
        %p600 = pneg %p287
        %p601 = pneg %p284
        %p602 = pneg %p308
        %p603 = pneg %p305
        %p604 = pneg %p329
        %p605 = pneg %p326
        %p606 = pneg %p350
        %p607 = pneg %p347
        %p608 = pneg %p371
        %p609 = pneg %p368
        %p610 = pneg %p392
        %p611 = pneg %p389
        %p612 = pneg %p420
        %p613 = pneg %p417
        %s614 = sand.u32 %s407, 1
        %s615 = scalar_lea.sflag [#allocation6], %s614
        %s616 = sand.u32 %s407, 1
        %s617 = smul.addr %s616, 8
        %s618 = scalar_lea.vmem [#allocation10], %s617
        %p619 = pneg %p448
        %p620 = pneg %p445
        %s621 = sand.u32 %s435, 1
        %s622 = scalar_lea.sflag [#allocation12], %s621
        %s623 = sand.u32 %s435, 1
        %s624 = smul.addr %s623, 16
        %s625 = scalar_lea.vmem [#allocation11], %s624
        %p626 = scmp.lt.s32.totalorder %s41, 1
        %s627 = scalar_select %p626, %s41, 1
        %p628 = scmp.lt.s32.totalorder %s42, 0
        %s629 = scalar_select %p628, %s42, 0
        %s630 = sadd.s32 %s629, %s627
        %s631 = smul.addr %s630, 8
        %s632 = scalar_lea.vmem %s0, %s631
        %p633 = scmp.lt.s32.totalorder %s41, 1
        %s634 = scalar_select %p633, %s41, 1
        %s635 = smul.addr %s634, 8
        %s636 = scalar_lea.vmem %s1, %s635
        %p638 = scmp.eq.s32.totalorder %s42, 0
        // Predicated region
        $region97: #{tpu_custom_call.1} parent=83 // pred_check
          %p639 = pneg %p638
        $region98: #{tpu_custom_call.1} parent=83 // pred_check_branch
          %641 = sbr.rel (%p639) target = $region100
        $region99: #{tpu_custom_call.1} parent=83 // pred_region
          %v642 = vld [vmem:[%s636] sm:$0xff]
          %v643 = vpack.c.bf16 %v642, %v642
          %v644 = vld [vmem:[%s4] sm:$0xf]
          %v645 = vld [vmem:[%s4 + $0x4] sm:$0xf]
          %v646 = vld [vmem:[%s4 + $0x8] sm:$0xf]
          %v647 = vld [vmem:[%s4 + $0xc] sm:$0xf]
          %v648 = vld [vmem:[%s5] sm:$0x1]
          %v650 = vlaneseq
          %v651 = vshrl.u32 %v650, 7
          %v652 = vsub.s32 0, %v651
          %v653 = vrot.slane %v648, %v652
          %v659 = vunpack.c.l.b16 %v644
          %v660 = vunpack.c.l.b16 %v645
          %v661 = vunpack.c.l.b16 %v646
          %v662 = vunpack.c.l.b16 %v647
          %v663 = vpack.c.b16 %v660, %v659
          %v664 = vpack.c.b16 %v662, %v661
          %vm667 = vcmask 261120
          %v669 = vsel %vm667, %v643, 0
          %671 = vmatprep.subr.bf16.mxu0 0
          %672 = vmatpush1.bf16.msra.mxu0 %v663
          %673 = vmatprep.subr.bf16.mxu0 0
          %674 = vmatpush1.bf16.msra.mxu0 %v664
          %675 = vmatprep.subr.bf16.mxu0 0
          %676 = vmatpush1.bf16.msra.mxu0 0
          %677 = vmatprep.subr.bf16.mxu0 0
          %678 = vmatpush1.bf16.msra.mxu0 0
          %679 = vmatprep.subr.bf16.mxu0 0
          %680 = vmatpush1.bf16.msra.mxu0 0
          %681 = vmatprep.subr.bf16.mxu0 0
          %682 = vmatpush1.bf16.msra.mxu0 0
          %683 = vmatprep.subr.bf16.mxu0 0
          %684 = vmatpush1.bf16.msra.mxu0 0
          %685 = vmatprep.subr.bf16.mxu0 0
          %686 = vmatpush1.bf16.msra.mxu0 0
          %687 = vmatprep.subr.bf16.mxu0 0
          %688 = vmatpush1.bf16.msra.mxu0 0
          %689 = vmatprep.subr.bf16.mxu0 0
          %690 = vmatpush1.bf16.msra.mxu0 0
          %691 = vmatprep.subr.bf16.mxu0 0
          %692 = vmatpush1.bf16.msra.mxu0 0
          %693 = vmatprep.subr.bf16.mxu0 0
          %694 = vmatpush1.bf16.msra.mxu0 0
          %695 = vmatprep.subr.bf16.mxu0 0
          %696 = vmatpush1.bf16.msra.mxu0 0
          %697 = vmatprep.subr.bf16.mxu0 0
          %698 = vmatpush1.bf16.msra.mxu0 0
          %699 = vmatprep.subr.bf16.mxu0 0
          %700 = vmatpush1.bf16.msra.mxu0 0
          %701 = vmatprep.subr.bf16.mxu0 0
          %702 = vmatpush1.bf16.msra.mxu0 0
          %703 = vmatprep.mubr.bf16.mxu0 0
          %704 = vmatmul.mubr.bf16.gmra.mrb[0].mxu0 %v669
          %v705 = vpop.f32.mrb[0].mxu0
          %v706 = vadd.f32 %v653, %v705
          %v707 = vpop.f32.mrb[0].mxu0
          %v708 = vpop.f32.mrb[0].mxu0
          %v709 = vpop.f32.mrb[0].mxu0
          %710 = vdwg.mxu0
          %v711 = vpack.c.bf16 %v706, %v706
          %vm712 = vcmask 60416
          %713 = vst.msk [vmem:[#allocation2] sm:$0xf] %vm712, %v711
          %v715 = vunpack.c.l.b16 %v711
          %v716 = vpack.c.b16 %v715, %v715
          %717 = vrot.lane.b32.xlu0 %v716, 96
          %v718 = vpop.permute.xlu0 %717
          %720 = vst.msk [vmem:[#allocation3] sm:$0xf] %vm712, %v718
          %721 = vrot.lane.b32.xlu0 %v716, 120
          %v722 = vpop.permute.xlu0 %721
          %s724 = scalar_lea.vmem [#allocation2], 4
          %725 = vst.msk [vmem:[%s724] sm:$0xf] %vm712, %v722
          %726 = vrot.lane.b32.xlu0 %v716, 88
          %v727 = vpop.permute.xlu0 %726
          %s729 = scalar_lea.vmem [#allocation3], 4
          %730 = vst.msk [vmem:[%s729] sm:$0xf] %vm712, %v727
          %731 = vrot.lane.b32.xlu0 %v716, 112
          %v732 = vpop.permute.xlu0 %731
          %s734 = scalar_lea.vmem [#allocation2], 8
          %735 = vst.msk [vmem:[%s734] sm:$0xf] %vm712, %v732
          %736 = vrot.lane.b32.xlu0 %v716, 80
          %v737 = vpop.permute.xlu0 %736
          %s739 = scalar_lea.vmem [#allocation3], 8
          %740 = vst.msk [vmem:[%s739] sm:$0xf] %vm712, %v737
          %741 = vrot.lane.b32.xlu0 %v716, 104
          %v742 = vpop.permute.xlu0 %741
          %s744 = scalar_lea.vmem [#allocation2], 12
          %745 = vst.msk [vmem:[%s744] sm:$0xf] %vm712, %v742
          %746 = vrot.lane.b32.xlu0 %v716, 72
          %v747 = vpop.permute.xlu0 %746
          %s749 = scalar_lea.vmem [#allocation3], 12
          %750 = vst.msk [vmem:[%s749] sm:$0xf] %vm712, %v747
        $region100: #{tpu_custom_call.1} parent=83 // pred_fallthru
          _
        %v751 = vld [vmem:[%s632] sm:$0xff]
        %v752 = vpack.c.bf16 %v751, %v751
        %v753 = vld [vmem:[%s2] sm:$0xf]
        %v754 = vld [vmem:[%s2 + $0x4] sm:$0xf]
        %v755 = vld [vmem:[%s2 + $0x8] sm:$0xf]
        %v756 = vld [vmem:[%s2 + $0xc] sm:$0xf]
        %v757 = vld [vmem:[%s3] sm:$0x1]
        %v759 = vlaneseq
        %v760 = vshrl.u32 %v759, 7
        %v761 = vsub.s32 0, %v760
        %v762 = vrot.slane %v757, %v761
        %v768 = vunpack.c.l.b16 %v753
        %v769 = vunpack.c.l.b16 %v754
        %v770 = vunpack.c.l.b16 %v755
        %v771 = vunpack.c.l.b16 %v756
        %v772 = vpack.c.b16 %v769, %v768
        %v773 = vpack.c.b16 %v771, %v770
        %vm776 = vcmask 261120
        %v778 = vsel %vm776, %v752, 0
        %780 = vmatprep.subr.bf16.mxu0 0
        %781 = vmatpush1.bf16.msra.mxu0 %v772
        %782 = vmatprep.subr.bf16.mxu0 0
        %783 = vmatpush1.bf16.msra.mxu0 %v773
        %784 = vmatprep.subr.bf16.mxu0 0
        %785 = vmatpush1.bf16.msra.mxu0 0
        %786 = vmatprep.subr.bf16.mxu0 0
        %787 = vmatpush1.bf16.msra.mxu0 0
        %788 = vmatprep.subr.bf16.mxu0 0
        %789 = vmatpush1.bf16.msra.mxu0 0
        %790 = vmatprep.subr.bf16.mxu0 0
        %791 = vmatpush1.bf16.msra.mxu0 0
        %792 = vmatprep.subr.bf16.mxu0 0
        %793 = vmatpush1.bf16.msra.mxu0 0
        %794 = vmatprep.subr.bf16.mxu0 0
        %795 = vmatpush1.bf16.msra.mxu0 0
        %796 = vmatprep.subr.bf16.mxu0 0
        %797 = vmatpush1.bf16.msra.mxu0 0
        %798 = vmatprep.subr.bf16.mxu0 0
        %799 = vmatpush1.bf16.msra.mxu0 0
        %800 = vmatprep.subr.bf16.mxu0 0
        %801 = vmatpush1.bf16.msra.mxu0 0
        %802 = vmatprep.subr.bf16.mxu0 0
        %803 = vmatpush1.bf16.msra.mxu0 0
        %804 = vmatprep.subr.bf16.mxu0 0
        %805 = vmatpush1.bf16.msra.mxu0 0
        %806 = vmatprep.subr.bf16.mxu0 0
        %807 = vmatpush1.bf16.msra.mxu0 0
        %808 = vmatprep.subr.bf16.mxu0 0
        %809 = vmatpush1.bf16.msra.mxu0 0
        %810 = vmatprep.subr.bf16.mxu0 0
        %811 = vmatpush1.bf16.msra.mxu0 0
        %812 = vmatprep.mubr.bf16.mxu0 0
        %813 = vmatmul.mubr.bf16.gmra.mrb[0].mxu0 %v778
        %v814 = vpop.f32.mrb[0].mxu0
        %v815 = vadd.f32 %v762, %v814
        %v816 = vpop.f32.mrb[0].mxu0
        %v817 = vpop.f32.mrb[0].mxu0
        %v818 = vpop.f32.mrb[0].mxu0
        %819 = vdwg.mxu0
        %v820 = vmul.f32 %v815, 0.35355338
        %v821 = vpack.c.bf16 %v820, %v820
        %823 = vrot.lane.b32.xlu0 %v821, 120
        %v824 = vpop.permute.xlu0 %823
        %825 = vrot.lane.b32.xlu0 %v821, 112
        %v826 = vpop.permute.xlu0 %825
        %827 = vrot.lane.b32.xlu0 %v821, 104
        %v828 = vpop.permute.xlu0 %827
        %v829 = vld [vmem:[#allocation2] sm:$0xf]
        %v830 = vld [vmem:[#allocation2 + $0x4] sm:$0xf]
        %v831 = vld [vmem:[#allocation2 + $0x8] sm:$0xf]
        %v832 = vld [vmem:[#allocation2 + $0xc] sm:$0xf]
        %vm833 = vcmask 64512
        %v835 = vsel %vm833, %v821, 0
        %v838 = vsel %vm833, %v829, 0
        %840 = vmatprep.subr.bf16.mxu0 0
        %841 = vmatpush1.bf16.xpose.msra.mxu0 %v838
        %842 = vmatprep.subr.bf16.mxu0 0
        %843 = vmatpush1.bf16.xpose.msra.mxu0 0
        %844 = vmatprep.subr.bf16.mxu0 0
        %845 = vmatpush1.bf16.xpose.msra.mxu0 0
        %846 = vmatprep.subr.bf16.mxu0 0
        %847 = vmatpush1.bf16.xpose.msra.mxu0 0
        %848 = vmatprep.subr.bf16.mxu0 0
        %849 = vmatpush1.bf16.xpose.msra.mxu0 0
        %850 = vmatprep.subr.bf16.mxu0 0
        %851 = vmatpush1.bf16.xpose.msra.mxu0 0
        %852 = vmatprep.subr.bf16.mxu0 0
        %853 = vmatpush1.bf16.xpose.msra.mxu0 0
        %854 = vmatprep.subr.bf16.mxu0 0
        %855 = vmatpush1.bf16.xpose.msra.mxu0 0
        %856 = vmatprep.subr.bf16.mxu0 0
        %857 = vmatpush1.bf16.xpose.msra.mxu0 0
        %858 = vmatprep.subr.bf16.mxu0 0
        %859 = vmatpush1.bf16.xpose.msra.mxu0 0
        %860 = vmatprep.subr.bf16.mxu0 0
        %861 = vmatpush1.bf16.xpose.msra.mxu0 0
        %862 = vmatprep.subr.bf16.mxu0 0
        %863 = vmatpush1.bf16.xpose.msra.mxu0 0
        %864 = vmatprep.subr.bf16.mxu0 0
        %865 = vmatpush1.bf16.xpose.msra.mxu0 0
        %866 = vmatprep.subr.bf16.mxu0 0
        %867 = vmatpush1.bf16.xpose.msra.mxu0 0
        %868 = vmatprep.subr.bf16.mxu0 0
        %869 = vmatpush1.bf16.xpose.msra.mxu0 0
        %870 = vmatprep.subr.bf16.mxu0 0
        %871 = vmatpush1.bf16.xpose.msra.mxu0 0
        %872 = vmatprep.mubr.bf16.mxu0 0
        %873 = vmatmul.mubr.bf16.gmra.mrb[0].mxu0 %v835
        %v874 = vpop.f32.mrb[0].mxu0
        %v875 = vadd.f32 0.0, %v874
        %v876 = vpop.f32.mrb[0].mxu0
        %v877 = vpop.f32.mrb[0].mxu0
        %v878 = vpop.f32.mrb[0].mxu0
        %879 = vdwg.mxu0
        %v881 = vsel %vm833, %v824, 0
        %v884 = vsel %vm833, %v830, 0
        %886 = vmatprep.subr.bf16.mxu0 0
        %887 = vmatpush1.bf16.xpose.msra.mxu0 %v884
        %888 = vmatprep.subr.bf16.mxu0 0
        %889 = vmatpush1.bf16.xpose.msra.mxu0 0
        %890 = vmatprep.subr.bf16.mxu0 0
        %891 = vmatpush1.bf16.xpose.msra.mxu0 0
        %892 = vmatprep.subr.bf16.mxu0 0
        %893 = vmatpush1.bf16.xpose.msra.mxu0 0
        %894 = vmatprep.subr.bf16.mxu0 0
        %895 = vmatpush1.bf16.xpose.msra.mxu0 0
        %896 = vmatprep.subr.bf16.mxu0 0
        %897 = vmatpush1.bf16.xpose.msra.mxu0 0
        %898 = vmatprep.subr.bf16.mxu0 0
        %899 = vmatpush1.bf16.xpose.msra.mxu0 0
        %900 = vmatprep.subr.bf16.mxu0 0
        %901 = vmatpush1.bf16.xpose.msra.mxu0 0
        %902 = vmatprep.subr.bf16.mxu0 0
        %903 = vmatpush1.bf16.xpose.msra.mxu0 0
        %904 = vmatprep.subr.bf16.mxu0 0
        %905 = vmatpush1.bf16.xpose.msra.mxu0 0
        %906 = vmatprep.subr.bf16.mxu0 0
        %907 = vmatpush1.bf16.xpose.msra.mxu0 0
        %908 = vmatprep.subr.bf16.mxu0 0
        %909 = vmatpush1.bf16.xpose.msra.mxu0 0
        %910 = vmatprep.subr.bf16.mxu0 0
        %911 = vmatpush1.bf16.xpose.msra.mxu0 0
        %912 = vmatprep.subr.bf16.mxu0 0
        %913 = vmatpush1.bf16.xpose.msra.mxu0 0
        %914 = vmatprep.subr.bf16.mxu0 0
        %915 = vmatpush1.bf16.xpose.msra.mxu0 0
        %916 = vmatprep.subr.bf16.mxu0 0
        %917 = vmatpush1.bf16.xpose.msra.mxu0 0
        %918 = vmatprep.mubr.bf16.mxu0 0
        %919 = vmatmul.mubr.bf16.gmra.mrb[0].mxu0 %v881
        %v920 = vpop.f32.mrb[0].mxu0
        %v921 = vadd.f32 0.0, %v920
        %v922 = vpop.f32.mrb[0].mxu0
        %v923 = vpop.f32.mrb[0].mxu0
        %v924 = vpop.f32.mrb[0].mxu0
        %925 = vdwg.mxu0
        %v927 = vsel %vm833, %v826, 0
        %v930 = vsel %vm833, %v831, 0
        %932 = vmatprep.subr.bf16.mxu0 0
        %933 = vmatpush1.bf16.xpose.msra.mxu0 %v930
        %934 = vmatprep.subr.bf16.mxu0 0
        %935 = vmatpush1.bf16.xpose.msra.mxu0 0
        %936 = vmatprep.subr.bf16.mxu0 0
        %937 = vmatpush1.bf16.xpose.msra.mxu0 0
        %938 = vmatprep.subr.bf16.mxu0 0
        %939 = vmatpush1.bf16.xpose.msra.mxu0 0
        %940 = vmatprep.subr.bf16.mxu0 0
        %941 = vmatpush1.bf16.xpose.msra.mxu0 0
        %942 = vmatprep.subr.bf16.mxu0 0
        %943 = vmatpush1.bf16.xpose.msra.mxu0 0
        %944 = vmatprep.subr.bf16.mxu0 0
        %945 = vmatpush1.bf16.xpose.msra.mxu0 0
        %946 = vmatprep.subr.bf16.mxu0 0
        %947 = vmatpush1.bf16.xpose.msra.mxu0 0
        %948 = vmatprep.subr.bf16.mxu0 0
        %949 = vmatpush1.bf16.xpose.msra.mxu0 0
        %950 = vmatprep.subr.bf16.mxu0 0
        %951 = vmatpush1.bf16.xpose.msra.mxu0 0
        %952 = vmatprep.subr.bf16.mxu0 0
        %953 = vmatpush1.bf16.xpose.msra.mxu0 0
        %954 = vmatprep.subr.bf16.mxu0 0
        %955 = vmatpush1.bf16.xpose.msra.mxu0 0
        %956 = vmatprep.subr.bf16.mxu0 0
        %957 = vmatpush1.bf16.xpose.msra.mxu0 0
        %958 = vmatprep.subr.bf16.mxu0 0
        %959 = vmatpush1.bf16.xpose.msra.mxu0 0
        %960 = vmatprep.subr.bf16.mxu0 0
        %961 = vmatpush1.bf16.xpose.msra.mxu0 0
        %962 = vmatprep.subr.bf16.mxu0 0
        %963 = vmatpush1.bf16.xpose.msra.mxu0 0
        %964 = vmatprep.mubr.bf16.mxu0 0
        %965 = vmatmul.mubr.bf16.gmra.mrb[0].mxu0 %v927
        %v966 = vpop.f32.mrb[0].mxu0
        %v967 = vadd.f32 0.0, %v966
        %v968 = vpop.f32.mrb[0].mxu0
        %v969 = vpop.f32.mrb[0].mxu0
        %v970 = vpop.f32.mrb[0].mxu0
        %971 = vdwg.mxu0
        %v973 = vsel %vm833, %v828, 0
        %v976 = vsel %vm833, %v832, 0
        %978 = vmatprep.subr.bf16.mxu0 0
        %979 = vmatpush1.bf16.xpose.msra.mxu0 %v976
        %980 = vmatprep.subr.bf16.mxu0 0
        %981 = vmatpush1.bf16.xpose.msra.mxu0 0
        %982 = vmatprep.subr.bf16.mxu0 0
        %983 = vmatpush1.bf16.xpose.msra.mxu0 0
        %984 = vmatprep.subr.bf16.mxu0 0
        %985 = vmatpush1.bf16.xpose.msra.mxu0 0
        %986 = vmatprep.subr.bf16.mxu0 0
        %987 = vmatpush1.bf16.xpose.msra.mxu0 0
        %988 = vmatprep.subr.bf16.mxu0 0
        %989 = vmatpush1.bf16.xpose.msra.mxu0 0
        %990 = vmatprep.subr.bf16.mxu0 0
        %991 = vmatpush1.bf16.xpose.msra.mxu0 0
        %992 = vmatprep.subr.bf16.mxu0 0
        %993 = vmatpush1.bf16.xpose.msra.mxu0 0
        %994 = vmatprep.subr.bf16.mxu0 0
        %995 = vmatpush1.bf16.xpose.msra.mxu0 0
        %996 = vmatprep.subr.bf16.mxu0 0
        %997 = vmatpush1.bf16.xpose.msra.mxu0 0
        %998 = vmatprep.subr.bf16.mxu0 0
        %999 = vmatpush1.bf16.xpose.msra.mxu0 0
        %1000 = vmatprep.subr.bf16.mxu0 0
        %1001 = vmatpush1.bf16.xpose.msra.mxu0 0
        %1002 = vmatprep.subr.bf16.mxu0 0
        %1003 = vmatpush1.bf16.xpose.msra.mxu0 0
        %1004 = vmatprep.subr.bf16.mxu0 0
        %1005 = vmatpush1.bf16.xpose.msra.mxu0 0
        %1006 = vmatprep.subr.bf16.mxu0 0
        %1007 = vmatpush1.bf16.xpose.msra.mxu0 0
        %1008 = vmatprep.subr.bf16.mxu0 0
        %1009 = vmatpush1.bf16.xpose.msra.mxu0 0
        %1010 = vmatprep.mubr.bf16.mxu0 0
        %1011 = vmatmul.mubr.bf16.gmra.mrb[0].mxu0 %v973
        %v1012 = vpop.f32.mrb[0].mxu0
        %v1013 = vadd.f32 0.0, %v1012
        %v1014 = vpop.f32.mrb[0].mxu0
        %v1015 = vpop.f32.mrb[0].mxu0
        %v1016 = vpop.f32.mrb[0].mxu0
        %1017 = vdwg.mxu0
        %v1018 = vsel %vm833, %v875, -inf
        %1019 = vmax.xlane.f32.xlu0 %v1018
        %v1020 = vpop.xlane.xlu0 %1019
        %v1021 = vsel %vm833, %v921, -inf
        %1022 = vmax.xlane.f32.xlu0 %v1021
        %v1023 = vpop.xlane.xlu0 %1022
        %v1024 = vsel %vm833, %v967, -inf
        %1025 = vmax.xlane.f32.xlu0 %v1024
        %v1026 = vpop.xlane.xlu0 %1025
        %v1027 = vsel %vm833, %v1013, -inf
        %1028 = vmax.xlane.f32.xlu0 %v1027
        %v1029 = vpop.xlane.xlu0 %1028
        %v1030 = vsub.f32 %v875, %v1020
        %v1031 = vsub.f32 %v921, %v1023
        %v1032 = vsub.f32 %v967, %v1026
        %v1033 = vsub.f32 %v1013, %v1029
        %v1034 = vmul.f32 %v1030, 1.442695
        %v1035 = vpow.pop %v1034
        %v1036 = vmul.f32 %v1031, 1.442695
        %v1037 = vpow.pop %v1036
        %v1038 = vmul.f32 %v1032, 1.442695
        %v1039 = vpow.pop %v1038
        %v1040 = vmul.f32 %v1033, 1.442695
        %v1041 = vpow.pop %v1040
        %v1042 = vsel %vm833, %v1035, 0.0
        %1043 = vadd.xlane.f32.xlu0 %v1042
        %v1044 = vpop.xlane.xlu0 %1043
        %v1045 = vsel %vm833, %v1037, 0.0
        %1046 = vadd.xlane.f32.xlu0 %v1045
        %v1047 = vpop.xlane.xlu0 %1046
        %v1048 = vsel %vm833, %v1039, 0.0
        %1049 = vadd.xlane.f32.xlu0 %v1048
        %v1050 = vpop.xlane.xlu0 %1049
        %v1051 = vsel %vm833, %v1041, 0.0
        %1052 = vadd.xlane.f32.xlu0 %v1051
        %v1053 = vpop.xlane.xlu0 %1052
        %v1054 = vrcp.pop %v1044
        %v1055 = vmul.f32 1.0, %v1054
        %v1056 = vrcp.pop %v1047
        %v1057 = vmul.f32 1.0, %v1056
        %v1058 = vrcp.pop %v1050
        %v1059 = vmul.f32 1.0, %v1058
        %v1060 = vrcp.pop %v1053
        %v1061 = vmul.f32 1.0, %v1060
        %v1062 = vmul.f32 %v1035, %v1055
        %v1063 = vmul.f32 %v1037, %v1057
        %v1064 = vmul.f32 %v1039, %v1059
        %v1065 = vmul.f32 %v1041, %v1061
        %v1066 = vpack.c.bf16 %v1062, %v1062
        %v1067 = vpack.c.bf16 %v1063, %v1063
        %v1068 = vpack.c.bf16 %v1064, %v1064
        %v1069 = vpack.c.bf16 %v1065, %v1065
        %vm1070 = vcmask 60416
        %1071 = vst.msk [vmem:[%s625] sm:$0xf] %vm1070, %v1066
        %1072 = vst.msk [vmem:[%s625 + $0x4] sm:$0xf] %vm1070, %v1067
        %1073 = vst.msk [vmem:[%s625 + $0x8] sm:$0xf] %vm1070, %v1068
        %1074 = vst.msk [vmem:[%s625 + $0xc] sm:$0xf] %vm1070, %v1069
        %v1075 = vld [vmem:[#allocation3] sm:$0xf]
        %v1076 = vld [vmem:[#allocation3 + $0x4] sm:$0xf]
        %v1077 = vld [vmem:[#allocation3 + $0x8] sm:$0xf]
        %v1078 = vld [vmem:[#allocation3 + $0xc] sm:$0xf]
        %v1080 = vsel %vm833, %v1066, 0
        %vm1082 = vcmask 1043456
        %v1084 = vsel %vm1082, %v1075, 0
        %1086 = vmatprep.subr.bf16.mxu0 0
        %1087 = vmatpush1.bf16.msra.mxu0 %v1084
        %1088 = vmatprep.subr.bf16.mxu0 0
        %1089 = vmatpush1.bf16.msra.mxu0 0
        %1090 = vmatprep.subr.bf16.mxu0 0
        %1091 = vmatpush1.bf16.msra.mxu0 0
        %1092 = vmatprep.subr.bf16.mxu0 0
        %1093 = vmatpush1.bf16.msra.mxu0 0
        %1094 = vmatprep.subr.bf16.mxu0 0
        %1095 = vmatpush1.bf16.msra.mxu0 0
        %1096 = vmatprep.subr.bf16.mxu0 0
        %1097 = vmatpush1.bf16.msra.mxu0 0
        %1098 = vmatprep.subr.bf16.mxu0 0
        %1099 = vmatpush1.bf16.msra.mxu0 0
        %1100 = vmatprep.subr.bf16.mxu0 0
        %1101 = vmatpush1.bf16.msra.mxu0 0
        %1102 = vmatprep.subr.bf16.mxu0 0
        %1103 = vmatpush1.bf16.msra.mxu0 0
        %1104 = vmatprep.subr.bf16.mxu0 0
        %1105 = vmatpush1.bf16.msra.mxu0 0
        %1106 = vmatprep.subr.bf16.mxu0 0
        %1107 = vmatpush1.bf16.msra.mxu0 0
        %1108 = vmatprep.subr.bf16.mxu0 0
        %1109 = vmatpush1.bf16.msra.mxu0 0
        %1110 = vmatprep.subr.bf16.mxu0 0
        %1111 = vmatpush1.bf16.msra.mxu0 0
        %1112 = vmatprep.subr.bf16.mxu0 0
        %1113 = vmatpush1.bf16.msra.mxu0 0
        %1114 = vmatprep.subr.bf16.mxu0 0
        %1115 = vmatpush1.bf16.msra.mxu0 0
        %1116 = vmatprep.subr.bf16.mxu0 0
        %1117 = vmatpush1.bf16.msra.mxu0 0
        %1118 = vmatprep.mubr.bf16.mxu0 0
        %1119 = vmatmul.mubr.bf16.gmra.mrb[0].mxu0 %v1080
        %v1120 = vpop.f32.mrb[0].mxu0
        %v1121 = vadd.f32 0.0, %v1120
        %v1122 = vpop.f32.mrb[0].mxu0
        %v1123 = vpop.f32.mrb[0].mxu0
        %v1124 = vpop.f32.mrb[0].mxu0
        %1125 = vdwg.mxu0
        %v1127 = vsel %vm833, %v1067, 0
        %v1130 = vsel %vm1082, %v1076, 0
        %1132 = vmatprep.subr.bf16.mxu0 0
        %1133 = vmatpush1.bf16.msra.mxu0 %v1130
        %1134 = vmatprep.subr.bf16.mxu0 0
        %1135 = vmatpush1.bf16.msra.mxu0 0
        %1136 = vmatprep.subr.bf16.mxu0 0
        %1137 = vmatpush1.bf16.msra.mxu0 0
        %1138 = vmatprep.subr.bf16.mxu0 0
        %1139 = vmatpush1.bf16.msra.mxu0 0
        %1140 = vmatprep.subr.bf16.mxu0 0
        %1141 = vmatpush1.bf16.msra.mxu0 0
        %1142 = vmatprep.subr.bf16.mxu0 0
        %1143 = vmatpush1.bf16.msra.mxu0 0
        %1144 = vmatprep.subr.bf16.mxu0 0
        %1145 = vmatpush1.bf16.msra.mxu0 0
        %1146 = vmatprep.subr.bf16.mxu0 0
        %1147 = vmatpush1.bf16.msra.mxu0 0
        %1148 = vmatprep.subr.bf16.mxu0 0
        %1149 = vmatpush1.bf16.msra.mxu0 0
        %1150 = vmatprep.subr.bf16.mxu0 0
        %1151 = vmatpush1.bf16.msra.mxu0 0
        %1152 = vmatprep.subr.bf16.mxu0 0
        %1153 = vmatpush1.bf16.msra.mxu0 0
        %1154 = vmatprep.subr.bf16.mxu0 0
        %1155 = vmatpush1.bf16.msra.mxu0 0
        %1156 = vmatprep.subr.bf16.mxu0 0
        %1157 = vmatpush1.bf16.msra.mxu0 0
        %1158 = vmatprep.subr.bf16.mxu0 0
        %1159 = vmatpush1.bf16.msra.mxu0 0
        %1160 = vmatprep.subr.bf16.mxu0 0
        %1161 = vmatpush1.bf16.msra.mxu0 0
        %1162 = vmatprep.subr.bf16.mxu0 0
        %1163 = vmatpush1.bf16.msra.mxu0 0
        %1164 = vmatprep.mubr.bf16.mxu0 0
        %1165 = vmatmul.mubr.bf16.gmra.mrb[0].mxu0 %v1127
        %v1166 = vpop.f32.mrb[0].mxu0
        %v1167 = vadd.f32 0.0, %v1166
        %v1168 = vpop.f32.mrb[0].mxu0
        %v1169 = vpop.f32.mrb[0].mxu0
        %v1170 = vpop.f32.mrb[0].mxu0
        %1171 = vdwg.mxu0
        %v1173 = vsel %vm833, %v1068, 0
        %v1176 = vsel %vm1082, %v1077, 0
        %1178 = vmatprep.subr.bf16.mxu0 0
        %1179 = vmatpush1.bf16.msra.mxu0 %v1176
        %1180 = vmatprep.subr.bf16.mxu0 0
        %1181 = vmatpush1.bf16.msra.mxu0 0
        %1182 = vmatprep.subr.bf16.mxu0 0
        %1183 = vmatpush1.bf16.msra.mxu0 0
        %1184 = vmatprep.subr.bf16.mxu0 0
        %1185 = vmatpush1.bf16.msra.mxu0 0
        %1186 = vmatprep.subr.bf16.mxu0 0
        %1187 = vmatpush1.bf16.msra.mxu0 0
        %1188 = vmatprep.subr.bf16.mxu0 0
        %1189 = vmatpush1.bf16.msra.mxu0 0
        %1190 = vmatprep.subr.bf16.mxu0 0
        %1191 = vmatpush1.bf16.msra.mxu0 0
        %1192 = vmatprep.subr.bf16.mxu0 0
        %1193 = vmatpush1.bf16.msra.mxu0 0
        %1194 = vmatprep.subr.bf16.mxu0 0
        %1195 = vmatpush1.bf16.msra.mxu0 0
        %1196 = vmatprep.subr.bf16.mxu0 0
        %1197 = vmatpush1.bf16.msra.mxu0 0
        %1198 = vmatprep.subr.bf16.mxu0 0
        %1199 = vmatpush1.bf16.msra.mxu0 0
        %1200 = vmatprep.subr.bf16.mxu0 0
        %1201 = vmatpush1.bf16.msra.mxu0 0
        %1202 = vmatprep.subr.bf16.mxu0 0
        %1203 = vmatpush1.bf16.msra.mxu0 0
        %1204 = vmatprep.subr.bf16.mxu0 0
        %1205 = vmatpush1.bf16.msra.mxu0 0
        %1206 = vmatprep.subr.bf16.mxu0 0
        %1207 = vmatpush1.bf16.msra.mxu0 0
        %1208 = vmatprep.subr.bf16.mxu0 0
        %1209 = vmatpush1.bf16.msra.mxu0 0
        %1210 = vmatprep.mubr.bf16.mxu0 0
        %1211 = vmatmul.mubr.bf16.gmra.mrb[0].mxu0 %v1173
        %v1212 = vpop.f32.mrb[0].mxu0
        %v1213 = vadd.f32 0.0, %v1212
        %v1214 = vpop.f32.mrb[0].mxu0
        %v1215 = vpop.f32.mrb[0].mxu0
        %v1216 = vpop.f32.mrb[0].mxu0
        %1217 = vdwg.mxu0
        %v1219 = vsel %vm833, %v1069, 0
        %v1222 = vsel %vm1082, %v1078, 0
        %1224 = vmatprep.subr.bf16.mxu0 0
        %1225 = vmatpush1.bf16.msra.mxu0 %v1222
        %1226 = vmatprep.subr.bf16.mxu0 0
        %1227 = vmatpush1.bf16.msra.mxu0 0
        %1228 = vmatprep.subr.bf16.mxu0 0
        %1229 = vmatpush1.bf16.msra.mxu0 0
        %1230 = vmatprep.subr.bf16.mxu0 0
        %1231 = vmatpush1.bf16.msra.mxu0 0
        %1232 = vmatprep.subr.bf16.mxu0 0
        %1233 = vmatpush1.bf16.msra.mxu0 0
        %1234 = vmatprep.subr.bf16.mxu0 0
        %1235 = vmatpush1.bf16.msra.mxu0 0
        %1236 = vmatprep.subr.bf16.mxu0 0
        %1237 = vmatpush1.bf16.msra.mxu0 0
        %1238 = vmatprep.subr.bf16.mxu0 0
        %1239 = vmatpush1.bf16.msra.mxu0 0
        %1240 = vmatprep.subr.bf16.mxu0 0
        %1241 = vmatpush1.bf16.msra.mxu0 0
        %1242 = vmatprep.subr.bf16.mxu0 0
        %1243 = vmatpush1.bf16.msra.mxu0 0
        %1244 = vmatprep.subr.bf16.mxu0 0
        %1245 = vmatpush1.bf16.msra.mxu0 0
        %1246 = vmatprep.subr.bf16.mxu0 0
        %1247 = vmatpush1.bf16.msra.mxu0 0
        %1248 = vmatprep.subr.bf16.mxu0 0
        %1249 = vmatpush1.bf16.msra.mxu0 0
        %1250 = vmatprep.subr.bf16.mxu0 0
        %1251 = vmatpush1.bf16.msra.mxu0 0
        %1252 = vmatprep.subr.bf16.mxu0 0
        %1253 = vmatpush1.bf16.msra.mxu0 0
        %1254 = vmatprep.subr.bf16.mxu0 0
        %1255 = vmatpush1.bf16.msra.mxu0 0
        %1256 = vmatprep.mubr.bf16.mxu0 0
        %1257 = vmatmul.mubr.bf16.gmra.mrb[0].mxu0 %v1219
        %v1258 = vpop.f32.mrb[0].mxu0
        %v1259 = vadd.f32 0.0, %v1258
        %v1260 = vpop.f32.mrb[0].mxu0
        %v1261 = vpop.f32.mrb[0].mxu0
        %v1262 = vpop.f32.mrb[0].mxu0
        %1263 = vdwg.mxu0
        %v1264 = vpack.c.bf16 %v1121, %v1121
        %v1265 = vpack.c.bf16 %v1167, %v1167
        %v1266 = vpack.c.bf16 %v1213, %v1213
        %v1267 = vpack.c.bf16 %v1259, %v1259
        %v1268 = vld [vmem:[%s6] sm:$0xf]
        %v1269 = vld [vmem:[%s6 + $0x4] sm:$0xf]
        %v1270 = vld [vmem:[%s6 + $0x8] sm:$0xf]
        %v1271 = vld [vmem:[%s6 + $0xc] sm:$0xf]
        %v1273 = vsel %vm833, %v1264, 0
        %v1276 = vsel %vm1082, %v1268, 0
        %1278 = vmatprep.subr.bf16.mxu0 0
        %1279 = vmatpush1.bf16.msra.mxu0 %v1276
        %1280 = vmatprep.subr.bf16.mxu0 0
        %1281 = vmatpush1.bf16.msra.mxu0 0
        %1282 = vmatprep.subr.bf16.mxu0 0
        %1283 = vmatpush1.bf16.msra.mxu0 0
        %1284 = vmatprep.subr.bf16.mxu0 0
        %1285 = vmatpush1.bf16.msra.mxu0 0
        %1286 = vmatprep.subr.bf16.mxu0 0
        %1287 = vmatpush1.bf16.msra.mxu0 0
        %1288 = vmatprep.subr.bf16.mxu0 0
        %1289 = vmatpush1.bf16.msra.mxu0 0
        %1290 = vmatprep.subr.bf16.mxu0 0
        %1291 = vmatpush1.bf16.msra.mxu0 0
        %1292 = vmatprep.subr.bf16.mxu0 0
        %1293 = vmatpush1.bf16.msra.mxu0 0
        %1294 = vmatprep.subr.bf16.mxu0 0
        %1295 = vmatpush1.bf16.msra.mxu0 0
        %1296 = vmatprep.subr.bf16.mxu0 0
        %1297 = vmatpush1.bf16.msra.mxu0 0
        %1298 = vmatprep.subr.bf16.mxu0 0
        %1299 = vmatpush1.bf16.msra.mxu0 0
        %1300 = vmatprep.subr.bf16.mxu0 0
        %1301 = vmatpush1.bf16.msra.mxu0 0
        %1302 = vmatprep.subr.bf16.mxu0 0
        %1303 = vmatpush1.bf16.msra.mxu0 0
        %1304 = vmatprep.subr.bf16.mxu0 0
        %1305 = vmatpush1.bf16.msra.mxu0 0
        %1306 = vmatprep.subr.bf16.mxu0 0
        %1307 = vmatpush1.bf16.msra.mxu0 0
        %1308 = vmatprep.subr.bf16.mxu0 0
        %1309 = vmatpush1.bf16.msra.mxu0 0
        %1310 = vmatprep.mubr.bf16.mxu0 0
        %1311 = vmatmul.mubr.bf16.gmra.mrb[0].mxu0 %v1273
        %v1312 = vpop.f32.mrb[0].mxu0
        %v1313 = vadd.f32 0.0, %v1312
        %v1314 = vpop.f32.mrb[0].mxu0
        %v1315 = vpop.f32.mrb[0].mxu0
        %v1316 = vpop.f32.mrb[0].mxu0
        %1317 = vdwg.mxu0
        %v1319 = vsel %vm833, %v1265, 0
        %v1322 = vsel %vm1082, %v1269, 0
        %1324 = vmatprep.subr.bf16.mxu0 0
        %1325 = vmatpush1.bf16.msra.mxu0 %v1322
        %1326 = vmatprep.subr.bf16.mxu0 0
        %1327 = vmatpush1.bf16.msra.mxu0 0
        %1328 = vmatprep.subr.bf16.mxu0 0
        %1329 = vmatpush1.bf16.msra.mxu0 0
        %1330 = vmatprep.subr.bf16.mxu0 0
        %1331 = vmatpush1.bf16.msra.mxu0 0
        %1332 = vmatprep.subr.bf16.mxu0 0
        %1333 = vmatpush1.bf16.msra.mxu0 0
        %1334 = vmatprep.subr.bf16.mxu0 0
        %1335 = vmatpush1.bf16.msra.mxu0 0
        %1336 = vmatprep.subr.bf16.mxu0 0
        %1337 = vmatpush1.bf16.msra.mxu0 0
        %1338 = vmatprep.subr.bf16.mxu0 0
        %1339 = vmatpush1.bf16.msra.mxu0 0
        %1340 = vmatprep.subr.bf16.mxu0 0
        %1341 = vmatpush1.bf16.msra.mxu0 0
        %1342 = vmatprep.subr.bf16.mxu0 0
        %1343 = vmatpush1.bf16.msra.mxu0 0
        %1344 = vmatprep.subr.bf16.mxu0 0
        %1345 = vmatpush1.bf16.msra.mxu0 0
        %1346 = vmatprep.subr.bf16.mxu0 0
        %1347 = vmatpush1.bf16.msra.mxu0 0
        %1348 = vmatprep.subr.bf16.mxu0 0
        %1349 = vmatpush1.bf16.msra.mxu0 0
        %1350 = vmatprep.subr.bf16.mxu0 0
        %1351 = vmatpush1.bf16.msra.mxu0 0
        %1352 = vmatprep.subr.bf16.mxu0 0
        %1353 = vmatpush1.bf16.msra.mxu0 0
        %1354 = vmatprep.subr.bf16.mxu0 0
        %1355 = vmatpush1.bf16.msra.mxu0 0
        %1356 = vmatprep.mubr.bf16.mxu0 0
        %1357 = vmatmul.mubr.bf16.gmra.mrb[0].mxu0 %v1319
        %v1358 = vpop.f32.mrb[0].mxu0
        %v1359 = vadd.f32 0.0, %v1358
        %v1360 = vpop.f32.mrb[0].mxu0
        %v1361 = vpop.f32.mrb[0].mxu0
        %v1362 = vpop.f32.mrb[0].mxu0
        %1363 = vdwg.mxu0
        %v1365 = vsel %vm833, %v1266, 0
        %v1368 = vsel %vm1082, %v1270, 0
        %1370 = vmatprep.subr.bf16.mxu0 0
        %1371 = vmatpush1.bf16.msra.mxu0 %v1368
        %1372 = vmatprep.subr.bf16.mxu0 0
        %1373 = vmatpush1.bf16.msra.mxu0 0
        %1374 = vmatprep.subr.bf16.mxu0 0
        %1375 = vmatpush1.bf16.msra.mxu0 0
        %1376 = vmatprep.subr.bf16.mxu0 0
        %1377 = vmatpush1.bf16.msra.mxu0 0
        %1378 = vmatprep.subr.bf16.mxu0 0
        %1379 = vmatpush1.bf16.msra.mxu0 0
        %1380 = vmatprep.subr.bf16.mxu0 0
        %1381 = vmatpush1.bf16.msra.mxu0 0
        %1382 = vmatprep.subr.bf16.mxu0 0
        %1383 = vmatpush1.bf16.msra.mxu0 0
        %1384 = vmatprep.subr.bf16.mxu0 0
        %1385 = vmatpush1.bf16.msra.mxu0 0
        %1386 = vmatprep.subr.bf16.mxu0 0
        %1387 = vmatpush1.bf16.msra.mxu0 0
        %1388 = vmatprep.subr.bf16.mxu0 0
        %1389 = vmatpush1.bf16.msra.mxu0 0
        %1390 = vmatprep.subr.bf16.mxu0 0
        %1391 = vmatpush1.bf16.msra.mxu0 0
        %1392 = vmatprep.subr.bf16.mxu0 0
        %1393 = vmatpush1.bf16.msra.mxu0 0
        %1394 = vmatprep.subr.bf16.mxu0 0
        %1395 = vmatpush1.bf16.msra.mxu0 0
        %1396 = vmatprep.subr.bf16.mxu0 0
        %1397 = vmatpush1.bf16.msra.mxu0 0
        %1398 = vmatprep.subr.bf16.mxu0 0
        %1399 = vmatpush1.bf16.msra.mxu0 0
        %1400 = vmatprep.subr.bf16.mxu0 0
        %1401 = vmatpush1.bf16.msra.mxu0 0
        %1402 = vmatprep.mubr.bf16.mxu0 0
        %1403 = vmatmul.mubr.bf16.gmra.mrb[0].mxu0 %v1365
        %v1404 = vpop.f32.mrb[0].mxu0
        %v1405 = vadd.f32 0.0, %v1404
        %v1406 = vpop.f32.mrb[0].mxu0
        %v1407 = vpop.f32.mrb[0].mxu0
        %v1408 = vpop.f32.mrb[0].mxu0
        %1409 = vdwg.mxu0
        %v1411 = vsel %vm833, %v1267, 0
        %v1414 = vsel %vm1082, %v1271, 0
        %1416 = vmatprep.subr.bf16.mxu0 0
        %1417 = vmatpush1.bf16.msra.mxu0 %v1414
        %1418 = vmatprep.subr.bf16.mxu0 0
        %1419 = vmatpush1.bf16.msra.mxu0 0
        %1420 = vmatprep.subr.bf16.mxu0 0
        %1421 = vmatpush1.bf16.msra.mxu0 0
        %1422 = vmatprep.subr.bf16.mxu0 0
        %1423 = vmatpush1.bf16.msra.mxu0 0
        %1424 = vmatprep.subr.bf16.mxu0 0
        %1425 = vmatpush1.bf16.msra.mxu0 0
        %1426 = vmatprep.subr.bf16.mxu0 0
        %1427 = vmatpush1.bf16.msra.mxu0 0
        %1428 = vmatprep.subr.bf16.mxu0 0
        %1429 = vmatpush1.bf16.msra.mxu0 0
        %1430 = vmatprep.subr.bf16.mxu0 0
        %1431 = vmatpush1.bf16.msra.mxu0 0
        %1432 = vmatprep.subr.bf16.mxu0 0
        %1433 = vmatpush1.bf16.msra.mxu0 0
        %1434 = vmatprep.subr.bf16.mxu0 0
        %1435 = vmatpush1.bf16.msra.mxu0 0
        %1436 = vmatprep.subr.bf16.mxu0 0
        %1437 = vmatpush1.bf16.msra.mxu0 0
        %1438 = vmatprep.subr.bf16.mxu0 0
        %1439 = vmatpush1.bf16.msra.mxu0 0
        %1440 = vmatprep.subr.bf16.mxu0 0
        %1441 = vmatpush1.bf16.msra.mxu0 0
        %1442 = vmatprep.subr.bf16.mxu0 0
        %1443 = vmatpush1.bf16.msra.mxu0 0
        %1444 = vmatprep.subr.bf16.mxu0 0
        %1445 = vmatpush1.bf16.msra.mxu0 0
        %1446 = vmatprep.subr.bf16.mxu0 0
        %1447 = vmatpush1.bf16.msra.mxu0 0
        %1448 = vmatprep.mubr.bf16.mxu0 0
        %1449 = vmatmul.mubr.bf16.gmra.mrb[0].mxu0 %v1411
        %v1450 = vpop.f32.mrb[0].mxu0
        %v1451 = vadd.f32 0.0, %v1450
        %v1452 = vpop.f32.mrb[0].mxu0
        %v1453 = vpop.f32.mrb[0].mxu0
        %v1454 = vpop.f32.mrb[0].mxu0
        %1455 = vdwg.mxu0
        %v1456 = vsel %vm776, %v1313, 0.0
        %v1457 = vsel %vm776, %v1359, 0.0
        %v1458 = vadd.f32 %v1456, %v1457
        %v1459 = vsel %vm776, %v1405, 0.0
        %v1460 = vadd.f32 %v1458, %v1459
        %v1461 = vsel %vm776, %v1451, 0.0
        %v1462 = vadd.f32 %v1460, %v1461
        %v1463 = vld [vmem:[#allocation4] sm:$0x1]
        %v1465 = vlaneseq
        %v1466 = vshrl.u32 %v1465, 7
        %v1467 = vsub.s32 0, %v1466
        %v1468 = vrot.slane %v1463, %v1467
        %v1470 = vadd.f32 %v1462, %v1468
        %v1471 = vadd.f32 %v751, %v1470
        %v1472 = vld [vmem:[#allocation7] sm:$0x1]
        %v1473 = vld [vmem:[#allocation9] sm:$0x1]
        %v1474 = vsel %vm776, %v1471, 0.0
        %1475 = vadd.xlane.f32.xlu0 %v1474
        %v1476 = vpop.xlane.xlu0 %1475
        %v1477 = vrcp.pop 32.0
        %v1478 = vmul.f32 %v1476, %v1477
        %v1479 = vsub.f32 %v1471, %v1478
        %v1480 = vmul.f32 %v1479, %v1479
        %v1481 = vsel %vm776, %v1480, 0.0
        %1482 = vadd.xlane.f32.xlu0 %v1481
        %v1483 = vpop.xlane.xlu0 %1482
        %v1484 = vmul.f32 %v1483, %v1477
        %v1485 = vadd.f32 %v1484, 1e-05
        %v1486 = vrsqrt.pop %v1485
        %v1487 = vmul.f32 %v1479, %v1486
        %v1489 = vlaneseq
        %v1490 = vshrl.u32 %v1489, 7
        %v1491 = vsub.s32 0, %v1490
        %v1492 = vrot.slane %v1472, %v1491
        %v1494 = vmul.f32 %v1487, %v1492
        %v1496 = vlaneseq
        %v1497 = vshrl.u32 %v1496, 7
        %v1498 = vsub.s32 0, %v1497
        %v1499 = vrot.slane %v1473, %v1498
        %v1501 = vadd.f32 %v1494, %v1499
        %v1502 = vpack.c.bf16 %v1501, %v1501
        %v1503 = vld [vmem:[%s10] sm:$0xf]
        %v1504 = vld [vmem:[%s10 + $0x4] sm:$0xf]
        %v1505 = vld [vmem:[%s10 + $0x8] sm:$0xf]
        %v1506 = vld [vmem:[%s10 + $0xc] sm:$0xf]
        %v1507 = vld [vmem:[%s11] sm:$0x1]
        %v1509 = vlaneseq
        %v1510 = vshrl.u32 %v1509, 7
        %v1511 = vsub.s32 0, %v1510
        %v1512 = vrot.slane %v1507, %v1511
        %v1518 = vunpack.c.l.b16 %v1503
        %v1519 = vunpack.c.l.b16 %v1504
        %v1520 = vunpack.c.l.b16 %v1505
        %v1521 = vunpack.c.l.b16 %v1506
        %v1522 = vpack.c.b16 %v1519, %v1518
        %v1523 = vpack.c.b16 %v1521, %v1520
        %v1527 = vsel %vm776, %v1502, 0
        %1529 = vmatprep.subr.bf16.mxu0 0
        %1530 = vmatpush1.bf16.msra.mxu0 %v1522
        %1531 = vmatprep.subr.bf16.mxu0 0
        %1532 = vmatpush1.bf16.msra.mxu0 %v1523
        %1533 = vmatprep.subr.bf16.mxu0 0
        %1534 = vmatpush1.bf16.msra.mxu0 0
        %1535 = vmatprep.subr.bf16.mxu0 0
        %1536 = vmatpush1.bf16.msra.mxu0 0
        %1537 = vmatprep.subr.bf16.mxu0 0
        %1538 = vmatpush1.bf16.msra.mxu0 0
        %1539 = vmatprep.subr.bf16.mxu0 0
        %1540 = vmatpush1.bf16.msra.mxu0 0
        %1541 = vmatprep.subr.bf16.mxu0 0
        %1542 = vmatpush1.bf16.msra.mxu0 0
        %1543 = vmatprep.subr.bf16.mxu0 0
        %1544 = vmatpush1.bf16.msra.mxu0 0
        %1545 = vmatprep.subr.bf16.mxu0 0
        %1546 = vmatpush1.bf16.msra.mxu0 0
        %1547 = vmatprep.subr.bf16.mxu0 0
        %1548 = vmatpush1.bf16.msra.mxu0 0
        %1549 = vmatprep.subr.bf16.mxu0 0
        %1550 = vmatpush1.bf16.msra.mxu0 0
        %1551 = vmatprep.subr.bf16.mxu0 0
        %1552 = vmatpush1.bf16.msra.mxu0 0
        %1553 = vmatprep.subr.bf16.mxu0 0
        %1554 = vmatpush1.bf16.msra.mxu0 0
        %1555 = vmatprep.subr.bf16.mxu0 0
        %1556 = vmatpush1.bf16.msra.mxu0 0
        %1557 = vmatprep.subr.bf16.mxu0 0
        %1558 = vmatpush1.bf16.msra.mxu0 0
        %1559 = vmatprep.subr.bf16.mxu0 0
        %1560 = vmatpush1.bf16.msra.mxu0 0
        %1561 = vmatprep.mubr.bf16.mxu0 0
        %1562 = vmatmul.mubr.bf16.gmra.mrb[0].mxu0 %v1527
        %v1563 = vpop.f32.mrb[0].mxu0
        %v1564 = vadd.f32 %v1512, %v1563
        %v1565 = vpop.f32.mrb[0].mxu0
        %v1566 = vpop.f32.mrb[0].mxu0
        %v1567 = vpop.f32.mrb[0].mxu0
        %1568 = vdwg.mxu0
        %v1569 = vmax.f32 %v1564, 0.0
        %v1570 = vpack.c.bf16 %v1569, %v1569
        %v1571 = vld [vmem:[%s12] sm:$0xf]
        %v1572 = vld [vmem:[%s12 + $0x4] sm:$0xf]
        %v1573 = vld [vmem:[%s12 + $0x8] sm:$0xf]
        %v1574 = vld [vmem:[%s12 + $0xc] sm:$0xf]
        %v1575 = vld [vmem:[%s12 + $0x10] sm:$0xf]
        %v1576 = vld [vmem:[%s12 + $0x14] sm:$0xf]
        %v1577 = vld [vmem:[%s12 + $0x18] sm:$0xf]
        %v1578 = vld [vmem:[%s12 + $0x1c] sm:$0xf]
        %v1579 = vld [vmem:[%s12 + $0x20] sm:$0xf]
        %v1580 = vld [vmem:[%s12 + $0x24] sm:$0xf]
        %v1581 = vld [vmem:[%s12 + $0x28] sm:$0xf]
        %v1582 = vld [vmem:[%s12 + $0x2c] sm:$0xf]
        %v1583 = vld [vmem:[%s12 + $0x30] sm:$0xf]
        %v1584 = vld [vmem:[%s12 + $0x34] sm:$0xf]
        %v1585 = vld [vmem:[%s12 + $0x38] sm:$0xf]
        %v1586 = vld [vmem:[%s12 + $0x3c] sm:$0xf]
        %v1587 = vld [vmem:[%s13] sm:$0x1]
        %v1589 = vlaneseq
        %v1590 = vshrl.u32 %v1589, 7
        %v1591 = vsub.s32 0, %v1590
        %v1592 = vrot.slane %v1587, %v1591
        %v1610 = vunpack.c.l.b16 %v1571
        %v1611 = vunpack.c.l.b16 %v1572
        %v1612 = vunpack.c.l.b16 %v1573
        %v1613 = vunpack.c.l.b16 %v1574
        %v1614 = vunpack.c.l.b16 %v1575
        %v1615 = vunpack.c.l.b16 %v1576
        %v1616 = vunpack.c.l.b16 %v1577
        %v1617 = vunpack.c.l.b16 %v1578
        %v1618 = vunpack.c.l.b16 %v1579
        %v1619 = vunpack.c.l.b16 %v1580
        %v1620 = vunpack.c.l.b16 %v1581
        %v1621 = vunpack.c.l.b16 %v1582
        %v1622 = vunpack.c.l.b16 %v1583
        %v1623 = vunpack.c.l.b16 %v1584
        %v1624 = vunpack.c.l.b16 %v1585
        %v1625 = vunpack.c.l.b16 %v1586
        %v1626 = vpack.c.b16 %v1611, %v1610
        %v1627 = vpack.c.b16 %v1613, %v1612
        %v1628 = vpack.c.b16 %v1615, %v1614
        %v1629 = vpack.c.b16 %v1617, %v1616
        %v1630 = vpack.c.b16 %v1619, %v1618
        %v1631 = vpack.c.b16 %v1621, %v1620
        %v1632 = vpack.c.b16 %v1623, %v1622
        %v1633 = vpack.c.b16 %v1625, %v1624
        %1642 = vmatprep.subr.bf16.mxu0 0
        %1643 = vmatpush1.bf16.msra.mxu0 %v1626
        %1644 = vmatprep.subr.bf16.mxu0 0
        %1645 = vmatpush1.bf16.msra.mxu0 %v1627
        %1646 = vmatprep.subr.bf16.mxu0 0
        %1647 = vmatpush1.bf16.msra.mxu0 %v1628
        %1648 = vmatprep.subr.bf16.mxu0 0
        %1649 = vmatpush1.bf16.msra.mxu0 %v1629
        %1650 = vmatprep.subr.bf16.mxu0 0
        %1651 = vmatpush1.bf16.msra.mxu0 %v1630
        %1652 = vmatprep.subr.bf16.mxu0 0
        %1653 = vmatpush1.bf16.msra.mxu0 %v1631
        %1654 = vmatprep.subr.bf16.mxu0 0
        %1655 = vmatpush1.bf16.msra.mxu0 %v1632
        %1656 = vmatprep.subr.bf16.mxu0 0
        %1657 = vmatpush1.bf16.msra.mxu0 %v1633
        %1658 = vmatprep.subr.bf16.mxu0 0
        %1659 = vmatpush1.bf16.msra.mxu0 0
        %1660 = vmatprep.subr.bf16.mxu0 0
        %1661 = vmatpush1.bf16.msra.mxu0 0
        %1662 = vmatprep.subr.bf16.mxu0 0
        %1663 = vmatpush1.bf16.msra.mxu0 0
        %1664 = vmatprep.subr.bf16.mxu0 0
        %1665 = vmatpush1.bf16.msra.mxu0 0
        %1666 = vmatprep.subr.bf16.mxu0 0
        %1667 = vmatpush1.bf16.msra.mxu0 0
        %1668 = vmatprep.subr.bf16.mxu0 0
        %1669 = vmatpush1.bf16.msra.mxu0 0
        %1670 = vmatprep.subr.bf16.mxu0 0
        %1671 = vmatpush1.bf16.msra.mxu0 0
        %1672 = vmatprep.subr.bf16.mxu0 0
        %1673 = vmatpush1.bf16.msra.mxu0 0
        %1674 = vmatprep.mubr.bf16.mxu0 0
        %1675 = vmatmul.mubr.bf16.gmra.mrb[0].mxu0 %v1570
        %v1676 = vpop.f32.mrb[0].mxu0
        %v1677 = vadd.f32 %v1592, %v1676
        %v1678 = vpop.f32.mrb[0].mxu0
        %v1679 = vpop.f32.mrb[0].mxu0
        %v1680 = vpop.f32.mrb[0].mxu0
        %1681 = vdwg.mxu0
        %v1682 = vadd.f32 %v1471, %v1677
        %v1683 = vld [vmem:[%s14] sm:$0x1]
        %v1684 = vld [vmem:[%s15] sm:$0x1]
        %v1685 = vsel %vm776, %v1682, 0.0
        %1686 = vadd.xlane.f32.xlu0 %v1685
        %v1687 = vpop.xlane.xlu0 %1686
        %v1688 = vmul.f32 %v1687, %v1477
        %v1689 = vsub.f32 %v1682, %v1688
        %v1690 = vmul.f32 %v1689, %v1689
        %v1691 = vsel %vm776, %v1690, 0.0
        %1692 = vadd.xlane.f32.xlu0 %v1691
        %v1693 = vpop.xlane.xlu0 %1692
        %v1694 = vmul.f32 %v1693, %v1477
        %v1695 = vadd.f32 %v1694, 1e-05
        %v1696 = vrsqrt.pop %v1695
        %v1697 = vmul.f32 %v1689, %v1696
        %v1699 = vlaneseq
        %v1700 = vshrl.u32 %v1699, 7
        %v1701 = vsub.s32 0, %v1700
        %v1702 = vrot.slane %v1683, %v1701
        %v1704 = vmul.f32 %v1697, %v1702
        %v1706 = vlaneseq
        %v1707 = vshrl.u32 %v1706, 7
        %v1708 = vsub.s32 0, %v1707
        %v1709 = vrot.slane %v1684, %v1708
        %v1711 = vadd.f32 %v1704, %v1709
        %1712 = vst.msk [vmem:[%s618] sm:$0xff] %vm776, %v1711
        %s1713 = sand.u32 %s407, 1
        %s1714 = scalar_lea.sflag [#allocation6], %s1713
        %s1715 = sand.u32 %s407, 1
        %s1716 = smul.addr %s1715, 8
        %s1717 = scalar_lea.vmem [#allocation10], %s1716
        %s1718 = sand.u32 %s435, 1
        %s1719 = scalar_lea.sflag [#allocation12], %s1718
        %s1720 = sand.u32 %s435, 1
        %s1721 = smul.addr %s1720, 16
        %s1722 = scalar_lea.vmem [#allocation11], %s1721
        // Predicated region
        $region101: #{tpu_custom_call.1} parent=83 // pred_check
          %p1723 = pneg %p417
        $region102: #{tpu_custom_call.1} parent=83 // pred_check_branch
          %1725 = sbr.rel (%p1723) target = $region104
        $region103: #{tpu_custom_call.1} parent=83 // pred_region
          %s1727 = ssub.s32 128, 128
          %1728 = vsyncadd %s1714, %s1727
          %s1729 = sadd.s32 %s42, %s41
          %s1730 = smul.addr %s1729, 128
          %s1731 = scalar_lea.hbm %s16, %s1730
          %s1733 = sshll.u32 %s1717, 4
          %s1734 = int_to_ptr.vmem [resolvable:$true] %s1733
          %1736 = dma.vmem_to_hbm [thread:$0]  %s1734, 128, %s1731, %s1714
        $region104: #{tpu_custom_call.1} parent=83 // pred_fallthru
          _
        // Predicated region
        $region105: #{tpu_custom_call.1} parent=83 // pred_check
          %p1737 = pneg %p445
        $region106: #{tpu_custom_call.1} parent=83 // pred_check_branch
          %1739 = sbr.rel (%p1737) target = $region108
        $region107: #{tpu_custom_call.1} parent=83 // pred_region
          %s1741 = ssub.s32 256, 256
          %1742 = vsyncadd %s1719, %s1741
          %s1743 = smul.addr %s41, 4
          %s1744 = sadd.s32 %s42, %s1743
          %s1745 = smul.addr %s1744, 64
          %s1746 = scalar_lea.hbm %s17, %s1745
          %s1747 = sshll.u32 %s1722, 4
          %s1748 = int_to_ptr.vmem [resolvable:$true] %s1747
          %1753 = dma.vmem_to_hbm [thread:$0]  %s1748, 256, %s1746, %s1719, 64, 64, 4
        $region108: #{tpu_custom_call.1} parent=83 // pred_fallthru
          _
      $region84: #{tpu_custom_call.1} parent=5 // pred_fallthru
        _
      %p1754 = scmp.le.s32.totalorder 2, %s32
      // Predicated region
      $region109: #{tpu_custom_call.1} parent=5 // pred_check
        %p1755 = pneg %p1754
      $region110: #{tpu_custom_call.1} parent=5 // pred_check_branch
        %1757 = sbr.rel (%p1755) target = $region112
      $region111: #{tpu_custom_call.1} parent=5 // pred_region
        %s1758 = ssub.s32 %s32, 2
        // Predicated region
        $region113: #{tpu_custom_call.1} parent=111 // pred_check
          %p1759 = pneg %p423
        $region114: #{tpu_custom_call.1} parent=111 // pred_check_branch
          %1761 = sbr.rel (%p1759) target = $region116
        $region115: #{tpu_custom_call.1} parent=111 // pred_region
          %s1762 = sand.u32 %s408, 1
          %s1763 = scalar_lea.sflag [#allocation6], %s1762
          %s1764 = sand.u32 %s408, 1
          %s1765 = smul.addr %s1764, 8
          %s1766 = scalar_lea.vmem [#allocation10], %s1765
          %1767 = dma.done %s1763, 128
        $region116: #{tpu_custom_call.1} parent=111 // pred_fallthru
          _
        // Predicated region
        $region117: #{tpu_custom_call.1} parent=111 // pred_check
          %p1768 = pneg %p451
        $region118: #{tpu_custom_call.1} parent=111 // pred_check_branch
          %1770 = sbr.rel (%p1768) target = $region120
        $region119: #{tpu_custom_call.1} parent=111 // pred_region
          %s1771 = sand.u32 %s436, 1
          %s1772 = scalar_lea.sflag [#allocation12], %s1771
          %s1773 = sand.u32 %s436, 1
          %s1774 = smul.addr %s1773, 16
          %s1775 = scalar_lea.vmem [#allocation11], %s1774
          %1776 = dma.done %s1772, 256
        $region120: #{tpu_custom_call.1} parent=111 // pred_fallthru
          _
      $region112: #{tpu_custom_call.1} parent=5 // pred_fallthru
        _
    $region6: #{tpu_custom_call.1} parent=1 // loop_footer
      %s36 = sadd.s32 1, %s32
    $region7: #{tpu_custom_call.1} parent=1 // loop_footer_branch
      %31 = sbr.rel target = $region3
    $region8: #{tpu_custom_call.1} parent=1 // loop_exit
      _
    %1777 = vsyncpa [#allocation5], 1
    %s1778 = scalar_lea.sflag [#allocation5], 1
    %1779 = vsyncpa %s1778, 1
    %1780 = vsyncpa [#allocation8], 1
    %1781 = vsyncpa [#allocation6], 1
    %s1782 = scalar_lea.sflag [#allocation6], 1
    %1783 = vsyncpa %s1782, 1
    %1784 = vsyncpa [#allocation12], 1
    %s1785 = scalar_lea.sflag [#allocation12], 1
    %1786 = vsyncpa %s1785, 1

</llo_original>
